<compile_context>
chip_gen: v7x
topology: tpu7x:2x2x1
jax: 0.10.0
libtpu: 0.0.40
codegen_flags: <defaults>
</compile_context>

<pallas_src>
import functools

import jax
import jax.numpy as jnp
from jax.experimental import pallas as pl
from jax.experimental.pallas import tpu as pltpu


_VMEM_LIMIT_BYTES = 48 * 1024 * 1024       # safe on v7x (64 MiB phys) and v5e/v6e
_MAX_W_TILE_BYTES = 16 * 1024 * 1024       # per weight buffer (double-buffered)


# ----------------------------------------------------------------------------
# Single linear layer: y = relu?(x @ W + b), full-K block, grid tiles N only.
# ----------------------------------------------------------------------------
def _linear_kernel(x_ref, w_ref, b_ref, o_ref, *, apply_relu):
    y = jnp.dot(x_ref[...], w_ref[...], preferred_element_type=jnp.float32)
    y = y + b_ref[...]
    if apply_relu:
        y = jnp.maximum(y, 0.0)
    o_ref[...] = y.astype(o_ref.dtype)


def _pick_tn(K, N, itemsize):
    """Largest multiple-of-128 divisor of N such that a (K, tn) weight tile is
    <= _MAX_W_TILE_BYTES and there are >= 2 blocks along N (megacore on v7x)."""
    if N < 256:
        return N                      # full-dim block (handles N < 128 too)
    best = 128 if N % 128 == 0 else N
    t = 128
    while t <= N // 2:
        if N % t == 0 and K * t * itemsize <= _MAX_W_TILE_BYTES:
            best = t
        t += 128
    return best


def linear_pallas(x, w, b, *, apply_relu):
    M, K = x.shape
    Kw, N = w.shape
    assert K == Kw, (K, Kw)

    tn = _pick_tn(K, N, jnp.dtype(w.dtype).itemsize)
    assert N % tn == 0
    b2 = b.reshape(1, N)

    kernel = functools.partial(_linear_kernel, apply_relu=apply_relu)

    return pl.pallas_call(
        kernel,
        out_shape=jax.ShapeDtypeStruct((M, N), x.dtype),
        grid_spec=pltpu.PrefetchScalarGridSpec(
            num_scalar_prefetch=0,
            grid=(N // tn,),
            in_specs=[
                pl.BlockSpec((M, K), lambda j: (0, 0)),    # full batch, full K
                pl.BlockSpec((K, tn), lambda j: (0, j)),   # streamed weight tile
                pl.BlockSpec((1, tn), lambda j: (0, j)),   # bias tile
            ],
            out_specs=pl.BlockSpec((M, tn), lambda j: (0, j)),
        ),
        compiler_params=pltpu.CompilerParams(
            dimension_semantics=("parallel",),
            vmem_limit_bytes=_VMEM_LIMIT_BYTES,
        ),
    )(x, w, b2)


# ----------------------------------------------------------------------------
# Fused tail: efc4..efc7 (2048 -> 1024 -> 256 -> 128 -> z) in one kernel.
# All weights (~9 MB) + the tiny activation stay resident in VMEM.
# ----------------------------------------------------------------------------
def _fused_tail_kernel(x_ref, *refs):
    o_ref = refs[-1]
    wb_refs = refs[:-1]
    n_layers = len(wb_refs) // 2
    y = x_ref[...]
    for i in range(n_layers):
        w = wb_refs[2 * i][...]
        b = wb_refs[2 * i + 1][...]
        y = jnp.dot(y, w, preferred_element_type=jnp.float32) + b
        if i < n_layers - 1:
            y = jnp.maximum(y, 0.0)
    o_ref[...] = y.astype(o_ref.dtype)


def fused_tail_pallas(x, layers):
    """layers: list of (w, b) applied in order; ReLU after all but the last."""
    M = x.shape[0]
    N_out = layers[-1][0].shape[1]

    flat_args = [x]
    in_specs = [pl.BlockSpec(x.shape, lambda i: (0, 0))]
    for (w, b) in layers:
        flat_args.append(w)
        flat_args.append(b.reshape(1, -1))
        in_specs.append(pl.BlockSpec(w.shape, lambda i: (0, 0)))
        in_specs.append(pl.BlockSpec((1, b.shape[0]), lambda i: (0, 0)))

    return pl.pallas_call(
        _fused_tail_kernel,
        out_shape=jax.ShapeDtypeStruct((M, N_out), x.dtype),
        grid_spec=pltpu.PrefetchScalarGridSpec(
            num_scalar_prefetch=0,
            grid=(1,),
            in_specs=in_specs,
            out_specs=pl.BlockSpec((M, N_out), lambda i: (0, 0)),
        ),
        compiler_params=pltpu.CompilerParams(
            dimension_semantics=("arbitrary",),
            vmem_limit_bytes=_VMEM_LIMIT_BYTES,
        ),
    )(*flat_args)


# ----------------------------------------------------------------------------
# Encoder_base parameters and forward pass
# ----------------------------------------------------------------------------
_HIDDEN = (8192, 4096, 2048, 1024, 256, 128)   # fixed by the module's __init__
_N_TAIL_FUSED = 4                              # fuse efc4..efc7


def init_encoder_params(key, input_size, z_size=64):
    """Deterministic PyTorch-style uniform(-1/sqrt(fan_in)) init."""
    sizes = (input_size,) + _HIDDEN + (z_size,)
    params = []
    for i in range(len(sizes) - 1):
        key, wk, bk = jax.random.split(key, 3)
        fan_in = sizes[i]
        bound = 1.0 / float(fan_in) ** 0.5
        w = jax.random.uniform(
            wk, (sizes[i], sizes[i + 1]), jnp.float32, -bound, bound
        )
        b = jax.random.uniform(bk, (sizes[i + 1],), jnp.float32, -bound, bound)
        params.append((w, b))
    return params


def encoder_forward(params, x):
    """Matches Encoder_base.forward: flatten, 6x (Linear+ReLU), final Linear."""
    x = x.reshape(x.shape[0], -1)
    head = params[:-_N_TAIL_FUSED]     # efc1..efc3, each followed by ReLU
    tail = params[-_N_TAIL_FUSED:]     # efc4..efc6 (+ReLU) and efc7 (no ReLU)
    for (w, b) in head:
        x = linear_pallas(x, w, b, apply_relu=True)
    return fused_tail_pallas(x, tail)


def encoder_reference(params, x):
    """Plain-JAX reference for correctness checking."""
    x = x.reshape(x.shape[0], -1)
    for idx, (w, b) in enumerate(params):
        x = jnp.dot(x, w, preferred_element_type=jnp.float32) + b
        if idx < len(params) - 1:
            x = jnp.maximum(x, 0.0)
    return x


if __name__ == "__main__":
    # Small-but-consistent shapes: category one-hot (5) + alpha one-hot (52)
    # + flattened 16x16 font image = 313 input features, batch = 2.
    batch = 2
    input_category_size = 5
    input_alpha_size = 52
    input_font_size = 16 * 16
    z_size = 64
    input_size = input_category_size + input_alpha_size + input_font_size

    key = jax.random.PRNGKey(0)
    pkey, xkey = jax.random.split(key)

    params = init_encoder_params(pkey, input_size, z_size=z_size)
    x = jax.random.uniform(xkey, (batch, input_size), jnp.float32)

    z = encoder_forward(params, x)
    z = jax.block_until_ready(z)

    assert z.shape == (batch, z_size), z.shape
    z_ref = encoder_reference(params, x)
    assert jnp.allclose(z, z_ref, rtol=1e-2, atol=1e-2), (
        float(jnp.max(jnp.abs(z - z_ref)))
    )

    print("KERNEL_OK")
</pallas_src>

<mosaic_0001>
module attributes {stable_mosaic.version = 11 : i64} {
  func.func @_linear_kernel(%arg0: i32, %arg1: memref<2x313xf32, #tpu.memory_space<vmem>>, %arg2: memref<313x4096xf32, #tpu.memory_space<vmem>>, %arg3: memref<1x4096xf32, #tpu.memory_space<vmem>>, %arg4: memref<2x4096xf32, #tpu.memory_space<vmem>>) attributes {dimension_semantics = [#tpu.dimension_semantics<parallel>], iteration_bounds = array<i64: 2>, scalar_prefetch = 0 : i64, scratch_operands = 0 : i64, tpu.core_type = #tpu.core_type<tc>, window_params = [{pipeline_mode = #tpu.pipeline_mode<synchronous>, transform_indices = @transform_0, window_bounds = array<i64: 2, 313>}, {transform_indices = @transform_1, window_bounds = array<i64: 313, 4096>}, {transform_indices = @transform_2, window_bounds = array<i64: 1, 4096>}, {transform_indices = @transform_3, window_bounds = array<i64: 2, 4096>}]} {
    %c0 = arith.constant 0 : index
    %c0_0 = arith.constant 0 : index
    %0 = vector.load %arg1[%c0, %c0_0] : memref<2x313xf32, #tpu.memory_space<vmem>>, vector<2x313xf32>
    %c0_1 = arith.constant 0 : index
    %c0_2 = arith.constant 0 : index
    %1 = vector.load %arg2[%c0_1, %c0_2] : memref<313x4096xf32, #tpu.memory_space<vmem>>, vector<313x4096xf32>
    %cst = arith.constant dense<0.000000e+00> : vector<2x4096xf32>
    %2 = tpu.matmul %0, %1, %cst {dimension_numbers = #tpu.dot_dimension_numbers<[1], [0], [0], [1], [0, 0, 1, 1], [], []>} : vector<2x313xf32>, vector<313x4096xf32>, vector<2x4096xf32> -> vector<2x4096xf32>
    %c0_3 = arith.constant 0 : index
    %c0_4 = arith.constant 0 : index
    %3 = vector.load %arg3[%c0_3, %c0_4] : memref<1x4096xf32, #tpu.memory_space<vmem>>, vector<1x4096xf32>
    %4 = vector.broadcast %3 : vector<1x4096xf32> to vector<2x4096xf32>
    %5 = arith.addf %2, %4 : vector<2x4096xf32>
    %cst_5 = arith.constant 0.000000e+00 : f32
    %6 = vector.broadcast %cst_5 : f32 to vector<2x4096xf32>
    %7 = arith.maximumf %5, %6 : vector<2x4096xf32>
    %c0_6 = arith.constant 0 : index
    %c0_7 = arith.constant 0 : index
    %8 = vector.load %arg4[%c0_6, %c0_7] : memref<2x4096xf32, #tpu.memory_space<vmem>>, vector<2x4096xf32>
    tpu.vector_store %arg4[%c0_6, %c0_7], %7 {strides = array<i32>} : memref<2x4096xf32, #tpu.memory_space<vmem>>, vector<2x4096xf32>,
    return
  }
  func.func @transform_0(%arg0: i32) -> (i32, i32) {
    %c0_i32 = arith.constant 0 : i32
    %c0_i32_0 = arith.constant 0 : i32
    %c0_i32_1 = arith.constant 0 : i32
    return %c0_i32, %c0_i32_0 : i32, i32
  }
  func.func @transform_1(%arg0: i32) -> (i32, i32) {
    %c0_i32 = arith.constant 0 : i32
    %c0_i32_0 = arith.constant 0 : i32
    return %c0_i32, %arg0 : i32, i32
  }
  func.func @transform_2(%arg0: i32) -> (i32, i32) {
    %c0_i32 = arith.constant 0 : i32
    %c0_i32_0 = arith.constant 0 : i32
    return %c0_i32, %arg0 : i32, i32
  }
  func.func @transform_3(%arg0: i32) -> (i32, i32) {
    %c0_i32 = arith.constant 0 : i32
    %c0_i32_0 = arith.constant 0 : i32
    return %c0_i32, %arg0 : i32, i32
  }
}

</mosaic_0001>

<llo_original>
// kernel: tpu_custom_call.1
$region0: #{tpu_custom_call.1}
  #allocation0 [shape = 'u32[]', space=smem, size = 0x4, offset = 0x4, fixed_abs, tag = 'smem constant byte address 0x4 - core index']
  #allocation1 [shape = 'u32[144,128]{1,0:T(1,128)}', space=vmem, size = 0x12000, scoped, tag = 'internal scratch']
  %s0 = inlined_call_operand.hbm [shape: f32[2,313], index: 0, kind: input, shape index: {}]
  %s1 = inlined_call_operand.hbm [shape: f32[313,8192], index: 1, kind: input, shape index: {}]
  %s2 = inlined_call_operand.hbm [shape: f32[1,8192], index: 2, kind: input, shape index: {}]
  %s3 = inlined_call_operand.hbm [shape: f32[2,8192], index: 3, kind: output, shape index: {}]
  %s4 = sld [smem:[#allocation0]]
  $region57: #{tpu_custom_call.1} parent=0
    _
  %s6 = ssub.s32 1, %s4
  %s7 = scalar_select 0, %s6, %s4
  $region1: #{tpu_custom_call.1} parent=0
    #allocation2 [shape = 'u8[3072]{0}', space=vmem, size = 0xc00, scoped, tag = 'input window, operand 0, single buffered']
    #allocation3 [shape = 's32[2]{0}', space=sflag, size = 0x8, scoped, tag = 'scoped memory for tpu_custom_call.1']
    #allocation4 [shape = 's32[2]{0}', space=sflag, size = 0x8, scoped, tag = 'scoped memory for tpu_custom_call.1']
    #allocation5 [shape = 'u8[10485760]{0}', space=vmem, size = 0xa00000, scoped, tag = 'input window, operand 1']
    #allocation6 [shape = 's32[2]{0}', space=sflag, size = 0x8, scoped, tag = 'scoped memory for tpu_custom_call.1']
    #allocation7 [shape = 'u8[32768]{0}', space=vmem, size = 0x8000, scoped, tag = 'input window, operand 2']
    #allocation8 [shape = 'u8[65536]{0}', space=vmem, size = 0x10000, scoped, tag = 'output window, operand 0']
    %8 = vsyncpa [#allocation3], 0
    %9 = vsyncpa [#allocation6], 0
    %s10 = scalar_lea.sflag [#allocation6], 1
    %11 = vsyncpa %s10, 0
    %12 = vsyncpa [#allocation4], 0
    %s13 = scalar_lea.sflag [#allocation4], 1
    %14 = vsyncpa %s13, 0
    loop: start=0, step=1, limit=4
    $region2: #{tpu_custom_call.1} parent=1 // loop_pre_header
      _
    $region3: #{tpu_custom_call.1} parent=1 // loop_header
      %s16 = sphi 0, %s20
      %p17 = scmp.ge.s32.totalorder %s16, 4
      %s24 = sphi 0, %s24
      %s26 = sphi 0, %s24
      %s27 = sphi 0, %s26
      %s41 = sphi 0, %s27
      %s47 = sphi 0, %s49
      %s50 = sphi 0, %s47
      %s51 = sphi 0, %s50
      %s67 = sphi 0, %s51
      %s73 = sphi 0, %s75
      %s76 = sphi 0, %s73
      %s77 = sphi 0, %s76
      %s93 = sphi 0, %s77
      %s99 = sphi 0, %s101
      %s102 = sphi 0, %s99
      %s103 = sphi 0, %s102
      %s119 = sphi 0, %s103
    $region4: #{tpu_custom_call.1} parent=1 // loop_header_branch
      %19 = sbr.rel (%p17) target = $region8
    $region5: #{tpu_custom_call.1} parent=1 // loop_body
      %s21 = ssub.s32 %s16, 1
      %s22 = ssub.s32 %s16, 2
      %s23 = sadd.s32 %s16, 1
      %s25 = sadd.s32 %s24, 1
      %p28 = scmp.eq.s32.totalorder %s16, 1
      %p29 = scmp.ne.s32.totalorder %s24, %s26
      %p30 = scmp.eq.s32.totalorder %s16, 0
      %p31 = por %p29, %p30
      %p32 = scmp.ne.s32.totalorder %s24, %s26
      %p33 = scmp.eq.s32.totalorder %s21, 1
      %p34 = por %p32, %p33
      %p35 = scmp.ne.s32.totalorder %s26, %s27
      %p36 = scmp.eq.s32.totalorder %s21, 0
      %p37 = por %p35, %p36
      %p38 = scmp.ne.s32.totalorder %s26, %s27
      %p39 = scmp.eq.s32.totalorder %s22, 1
      %p40 = por %p38, %p39
      %p42 = scmp.ne.s32.totalorder %s27, %s41
      %p43 = scmp.eq.s32.totalorder %s22, 0
      %p44 = por %p42, %p43
      %s45 = ssub.s32 %s16, %s23
      %p46 = scmp.eq.s32.totalorder %s45, 0
      %s48 = sadd.s32 %s47, 1
      %s49 = scalar_select %p46, %s47, %s48
      %p52 = pneg %p46
      %p53 = scmp.eq.s32.totalorder %s16, 1
      %p54 = por %p52, %p53
      %p55 = scmp.ne.s32.totalorder %s47, %s50
      %p56 = scmp.eq.s32.totalorder %s16, 0
      %p57 = por %p55, %p56
      %p58 = scmp.ne.s32.totalorder %s47, %s50
      %p59 = scmp.eq.s32.totalorder %s21, 1
      %p60 = por %p58, %p59
      %p61 = scmp.ne.s32.totalorder %s50, %s51
      %p62 = scmp.eq.s32.totalorder %s21, 0
      %p63 = por %p61, %p62
      %p64 = scmp.ne.s32.totalorder %s50, %s51
      %p65 = scmp.eq.s32.totalorder %s22, 1
      %p66 = por %p64, %p65
      %p68 = scmp.ne.s32.totalorder %s51, %s67
      %p69 = scmp.eq.s32.totalorder %s22, 0
      %p70 = por %p68, %p69
      %s71 = ssub.s32 %s16, %s23
      %p72 = scmp.eq.s32.totalorder %s71, 0
      %s74 = sadd.s32 %s73, 1
      %s75 = scalar_select %p72, %s73, %s74
      %p78 = pneg %p72
      %p79 = scmp.eq.s32.totalorder %s16, 1
      %p80 = por %p78, %p79
      %p81 = scmp.ne.s32.totalorder %s73, %s76
      %p82 = scmp.eq.s32.totalorder %s16, 0
      %p83 = por %p81, %p82
      %p84 = scmp.ne.s32.totalorder %s73, %s76
      %p85 = scmp.eq.s32.totalorder %s21, 1
      %p86 = por %p84, %p85
      %p87 = scmp.ne.s32.totalorder %s76, %s77
      %p88 = scmp.eq.s32.totalorder %s21, 0
      %p89 = por %p87, %p88
      %p90 = scmp.ne.s32.totalorder %s76, %s77
      %p91 = scmp.eq.s32.totalorder %s22, 1
      %p92 = por %p90, %p91
      %p94 = scmp.ne.s32.totalorder %s77, %s93
      %p95 = scmp.eq.s32.totalorder %s22, 0
      %p96 = por %p94, %p95
      %s97 = ssub.s32 %s16, %s23
      %p98 = scmp.eq.s32.totalorder %s97, 0
      %s100 = sadd.s32 %s99, 1
      %s101 = scalar_select %p98, %s99, %s100
      %p104 = pneg %p98
      %p105 = scmp.eq.s32.totalorder %s16, 1
      %p106 = por %p104, %p105
      %p107 = scmp.ne.s32.totalorder %s99, %s102
      %p108 = scmp.eq.s32.totalorder %s16, 0
      %p109 = por %p107, %p108
      %p110 = scmp.ne.s32.totalorder %s99, %s102
      %p111 = scmp.eq.s32.totalorder %s21, 1
      %p112 = por %p110, %p111
      %p113 = scmp.ne.s32.totalorder %s102, %s103
      %p114 = scmp.eq.s32.totalorder %s21, 0
      %p115 = por %p113, %p114
      %p116 = scmp.ne.s32.totalorder %s102, %s103
      %p117 = scmp.eq.s32.totalorder %s22, 1
      %p118 = por %p116, %p117
      %p120 = scmp.ne.s32.totalorder %s103, %s119
      %p121 = scmp.eq.s32.totalorder %s22, 0
      %p122 = por %p120, %p121
      %p123 = scmp.le.s32.totalorder 1, %s16
      %p124 = scmp.lt.s32.totalorder %s16, 3
      %p125 = pnand %p123, %p124
      %p126 = pneg %p125
      // Predicated region
      $region9: #{tpu_custom_call.1} parent=5 // pred_check
        _
      $region10: #{tpu_custom_call.1} parent=5 // pred_check_branch
        %128 = sbr.rel (%p125) target = $region12
      $region11: #{tpu_custom_call.1} parent=5 // pred_region
        %s129 = ssub.s32 %s16, 1
        // Predicated region
        $region13: #{tpu_custom_call.1} parent=11 // pred_check
          %p130 = pneg %p37
        $region14: #{tpu_custom_call.1} parent=11 // pred_check_branch
          %132 = sbr.rel (%p130) target = $region16
        $region15: #{tpu_custom_call.1} parent=11 // pred_region
          %s134 = ssub.s32 96, 96
          %135 = vsyncadd [#allocation3], %s134
          %s137 = sshll.u32 [#allocation2], 4
          %s138 = int_to_ptr.vmem [resolvable:$true] %s137
          %140 = dma.hbm_to_vmem [thread:$0]  %s0, 96, %s138, [#allocation3]
        $region16: #{tpu_custom_call.1} parent=11 // pred_fallthru
          _
      $region12: #{tpu_custom_call.1} parent=5 // pred_fallthru
        _
      %p141 = scmp.lt.s32.totalorder %s16, 2
      // Predicated region
      $region17: #{tpu_custom_call.1} parent=5 // pred_check
        %p142 = pneg %p141
      $region18: #{tpu_custom_call.1} parent=5 // pred_check_branch
        %144 = sbr.rel (%p142) target = $region20
      $region19: #{tpu_custom_call.1} parent=5 // pred_region
        // Predicated region
        $region21: #{tpu_custom_call.1} parent=19 // pred_check
          %p145 = pneg %p57
        $region22: #{tpu_custom_call.1} parent=19 // pred_check_branch
          %147 = sbr.rel (%p145) target = $region24
        $region23: #{tpu_custom_call.1} parent=19 // pred_region
          %s148 = sand.u32 %s16, 1
          %s149 = scalar_lea.sflag [#allocation6], %s148
          %s150 = sand.u32 %s47, 1
          %s151 = smul.addr %s150, 10240
          %s152 = scalar_lea.vmem [#allocation5], %s151
          %s153 = smul.u32 32, %s16
          %s155 = ssub.s32 163840, 163840
          %156 = vsyncadd %s149, %s155
          %s157 = smul.addr %s153, 128
          %s158 = scalar_lea.hbm %s1, %s157
          %s159 = sshll.u32 %s152, 4
          %s160 = int_to_ptr.vmem [resolvable:$true] %s159
          %165 = dma.hbm_to_vmem [thread:$0]  %s158, 163840, %s160, %s149, 8192, 4096, 256
        $region24: #{tpu_custom_call.1} parent=19 // pred_fallthru
          _
        // Predicated region
        $region25: #{tpu_custom_call.1} parent=19 // pred_check
          %p166 = pneg %p83
        $region26: #{tpu_custom_call.1} parent=19 // pred_check_branch
          %168 = sbr.rel (%p166) target = $region28
        $region27: #{tpu_custom_call.1} parent=19 // pred_region
          %s169 = sand.u32 %s16, 1
          %s170 = scalar_lea.sflag [#allocation6], %s169
          %s171 = sand.u32 %s73, 1
          %s172 = smul.addr %s171, 32
          %s173 = scalar_lea.vmem [#allocation7], %s172
          %s174 = smul.u32 32, %s16
          %s176 = ssub.s32 512, 512
          %177 = vsyncadd %s170, %s176
          %s178 = smul.addr %s174, 16
          %s179 = scalar_lea.hbm %s2, %s178
          %s181 = sshll.u32 %s173, 4
          %s182 = int_to_ptr.vmem [resolvable:$true] %s181
          %184 = dma.hbm_to_vmem [thread:$0]  %s179, 512, %s182, %s170
        $region28: #{tpu_custom_call.1} parent=19 // pred_fallthru
          _
      $region20: #{tpu_custom_call.1} parent=5 // pred_fallthru
        _
      %p185 = scmp.le.s32.totalorder 1, %s16
      %p186 = scmp.lt.s32.totalorder %s16, 3
      %p187 = pnand %p185, %p186
      %p188 = pneg %p187
      // Predicated region
      $region29: #{tpu_custom_call.1} parent=5 // pred_check
        _
      $region30: #{tpu_custom_call.1} parent=5 // pred_check_branch
        %190 = sbr.rel (%p187) target = $region32
      $region31: #{tpu_custom_call.1} parent=5 // pred_region
        %s191 = ssub.s32 %s16, 1
        // Predicated region
        $region33: #{tpu_custom_call.1} parent=31 // pred_check
          %p192 = pneg %p37
        $region34: #{tpu_custom_call.1} parent=31 // pred_check_branch
          %194 = sbr.rel (%p192) target = $region36
        $region35: #{tpu_custom_call.1} parent=31 // pred_region
          %195 = dma.done [#allocation3], 96
        $region36: #{tpu_custom_call.1} parent=31 // pred_fallthru
          _
        %s196 = sand.u32 %s21, 1
        %s197 = scalar_lea.sflag [#allocation6], %s196
        %s198 = sand.u32 %s50, 1
        %s199 = smul.addr %s198, 10240
        %s200 = scalar_lea.vmem [#allocation5], %s199
        // Predicated region
        $region37: #{tpu_custom_call.1} parent=31 // pred_check
          %p201 = pneg %p63
        $region38: #{tpu_custom_call.1} parent=31 // pred_check_branch
          %203 = sbr.rel (%p201) target = $region40
        $region39: #{tpu_custom_call.1} parent=31 // pred_region
          %204 = dma.done %s197, 163840
        $region40: #{tpu_custom_call.1} parent=31 // pred_fallthru
          _
        %s205 = sand.u32 %s21, 1
        %s206 = scalar_lea.sflag [#allocation6], %s205
        %s207 = sand.u32 %s76, 1
        %s208 = smul.addr %s207, 32
        %s209 = scalar_lea.vmem [#allocation7], %s208
        // Predicated region
        $region41: #{tpu_custom_call.1} parent=31 // pred_check
          %p210 = pneg %p89
        $region42: #{tpu_custom_call.1} parent=31 // pred_check_branch
          %212 = sbr.rel (%p210) target = $region44
        $region43: #{tpu_custom_call.1} parent=31 // pred_region
          %213 = dma.done %s206, 512
        $region44: #{tpu_custom_call.1} parent=31 // pred_fallthru
          _
        %p214 = pneg %p37
        %p215 = pneg %p34
        %s216 = sand.u32 %s21, 1
        %s217 = scalar_lea.sflag [#allocation6], %s216
        %s218 = sand.u32 %s50, 1
        %s219 = smul.addr %s218, 10240
        %s220 = scalar_lea.vmem [#allocation5], %s219
        %p221 = pneg %p63
        %p222 = pneg %p60
        %s223 = sand.u32 %s21, 1
        %s224 = scalar_lea.sflag [#allocation6], %s223
        %s225 = sand.u32 %s76, 1
        %s226 = smul.addr %s225, 32
        %s227 = scalar_lea.vmem [#allocation7], %s226
        %p228 = pneg %p89
        %p229 = pneg %p86
        %p230 = pneg %p115
        %p231 = pneg %p112
        %s232 = sand.u32 %s102, 1
        %s233 = scalar_lea.sflag [#allocation4], %s232
        %s234 = sand.u32 %s102, 1
        %s235 = smul.addr %s234, 64
        %s236 = scalar_lea.vmem [#allocation8], %s235
        %s237 = smul.u32 32, %s21
        %s238 = smul.u32 32, %s21
        %s239 = smul.u32 32, %s21
        %v240 = vld [vmem:[#allocation2] sm:$0x3f]
        %v241 = vld [vmem:[%s200] sm:$0xff]
        %v242 = vld [vmem:[%s200 + $0x8] sm:$0xff]
        %v243 = vld [vmem:[%s200 + $0x10] sm:$0xff]
        %v244 = vld [vmem:[%s200 + $0x18] sm:$0xff]
        %v245 = vld [vmem:[%s200 + $0x20] sm:$0xff]
        %v246 = vld [vmem:[%s200 + $0x28] sm:$0xff]
        %v247 = vld [vmem:[%s200 + $0x30] sm:$0xff]
        %v248 = vld [vmem:[%s200 + $0x38] sm:$0xff]
        %v249 = vld [vmem:[%s200 + $0x40] sm:$0xff]
        %v250 = vld [vmem:[%s200 + $0x48] sm:$0xff]
        %v251 = vld [vmem:[%s200 + $0x50] sm:$0xff]
        %v252 = vld [vmem:[%s200 + $0x58] sm:$0xff]
        %v253 = vld [vmem:[%s200 + $0x60] sm:$0xff]
        %v254 = vld [vmem:[%s200 + $0x68] sm:$0xff]
        %v255 = vld [vmem:[%s200 + $0x70] sm:$0xff]
        %v256 = vld [vmem:[%s200 + $0x78] sm:$0xff]
        %v257 = vld [vmem:[%s200 + $0x80] sm:$0xff]
        %v258 = vld [vmem:[%s200 + $0x88] sm:$0xff]
        %v259 = vld [vmem:[%s200 + $0x90] sm:$0xff]
        %v260 = vld [vmem:[%s200 + $0x98] sm:$0xff]
        %v261 = vld [vmem:[%s200 + $0xa0] sm:$0xff]
        %v262 = vld [vmem:[%s200 + $0xa8] sm:$0xff]
        %v263 = vld [vmem:[%s200 + $0xb0] sm:$0xff]
        %v264 = vld [vmem:[%s200 + $0xb8] sm:$0xff]
        %v265 = vld [vmem:[%s200 + $0xc0] sm:$0xff]
        %v266 = vld [vmem:[%s200 + $0xc8] sm:$0xff]
        %v267 = vld [vmem:[%s200 + $0xd0] sm:$0xff]
        %v268 = vld [vmem:[%s200 + $0xd8] sm:$0xff]
        %v269 = vld [vmem:[%s200 + $0xe0] sm:$0xff]
        %v270 = vld [vmem:[%s200 + $0xe8] sm:$0xff]
        %v271 = vld [vmem:[%s200 + $0xf0] sm:$0xff]
        %v272 = vld [vmem:[%s200 + $0xf8] sm:$0xff]
        %v273 = vld [vmem:[%s200 + $0x100] sm:$0xff]
        %v274 = vld [vmem:[%s200 + $0x108] sm:$0xff]
        %v275 = vld [vmem:[%s200 + $0x110] sm:$0xff]
        %v276 = vld [vmem:[%s200 + $0x118] sm:$0xff]
        %v277 = vld [vmem:[%s200 + $0x120] sm:$0xff]
        %v278 = vld [vmem:[%s200 + $0x128] sm:$0xff]
        %v279 = vld [vmem:[%s200 + $0x130] sm:$0xff]
        %v280 = vld [vmem:[%s200 + $0x138] sm:$0xff]
        %v281 = vld [vmem:[%s200 + $0x140] sm:$0xff]
        %v282 = vld [vmem:[%s200 + $0x148] sm:$0xff]
        %v283 = vld [vmem:[%s200 + $0x150] sm:$0xff]
        %v284 = vld [vmem:[%s200 + $0x158] sm:$0xff]
        %v285 = vld [vmem:[%s200 + $0x160] sm:$0xff]
        %v286 = vld [vmem:[%s200 + $0x168] sm:$0xff]
        %v287 = vld [vmem:[%s200 + $0x170] sm:$0xff]
        %v288 = vld [vmem:[%s200 + $0x178] sm:$0xff]
        %v289 = vld [vmem:[%s200 + $0x180] sm:$0xff]
        %v290 = vld [vmem:[%s200 + $0x188] sm:$0xff]
        %v291 = vld [vmem:[%s200 + $0x190] sm:$0xff]
        %v292 = vld [vmem:[%s200 + $0x198] sm:$0xff]
        %v293 = vld [vmem:[%s200 + $0x1a0] sm:$0xff]
        %v294 = vld [vmem:[%s200 + $0x1a8] sm:$0xff]
        %v295 = vld [vmem:[%s200 + $0x1b0] sm:$0xff]
        %v296 = vld [vmem:[%s200 + $0x1b8] sm:$0xff]
        %v297 = vld [vmem:[%s200 + $0x1c0] sm:$0xff]
        %v298 = vld [vmem:[%s200 + $0x1c8] sm:$0xff]
        %v299 = vld [vmem:[%s200 + $0x1d0] sm:$0xff]
        %v300 = vld [vmem:[%s200 + $0x1d8] sm:$0xff]
        %v301 = vld [vmem:[%s200 + $0x1e0] sm:$0xff]
        %v302 = vld [vmem:[%s200 + $0x1e8] sm:$0xff]
        %v303 = vld [vmem:[%s200 + $0x1f0] sm:$0xff]
        %v304 = vld [vmem:[%s200 + $0x1f8] sm:$0xff]
        %v305 = vld [vmem:[%s200 + $0x200] sm:$0xff]
        %v306 = vld [vmem:[%s200 + $0x208] sm:$0xff]
        %v307 = vld [vmem:[%s200 + $0x210] sm:$0xff]
        %v308 = vld [vmem:[%s200 + $0x218] sm:$0xff]
        %v309 = vld [vmem:[%s200 + $0x220] sm:$0xff]
        %v310 = vld [vmem:[%s200 + $0x228] sm:$0xff]
        %v311 = vld [vmem:[%s200 + $0x230] sm:$0xff]
        %v312 = vld [vmem:[%s200 + $0x238] sm:$0xff]
        %v313 = vld [vmem:[%s200 + $0x240] sm:$0xff]
        %v314 = vld [vmem:[%s200 + $0x248] sm:$0xff]
        %v315 = vld [vmem:[%s200 + $0x250] sm:$0xff]
        %v316 = vld [vmem:[%s200 + $0x258] sm:$0xff]
        %v317 = vld [vmem:[%s200 + $0x260] sm:$0xff]
        %v318 = vld [vmem:[%s200 + $0x268] sm:$0xff]
        %v319 = vld [vmem:[%s200 + $0x270] sm:$0xff]
        %v320 = vld [vmem:[%s200 + $0x278] sm:$0xff]
        %v321 = vld [vmem:[%s200 + $0x280] sm:$0xff]
        %v322 = vld [vmem:[%s200 + $0x288] sm:$0xff]
        %v323 = vld [vmem:[%s200 + $0x290] sm:$0xff]
        %v324 = vld [vmem:[%s200 + $0x298] sm:$0xff]
        %v325 = vld [vmem:[%s200 + $0x2a0] sm:$0xff]
        %v326 = vld [vmem:[%s200 + $0x2a8] sm:$0xff]
        %v327 = vld [vmem:[%s200 + $0x2b0] sm:$0xff]
        %v328 = vld [vmem:[%s200 + $0x2b8] sm:$0xff]
        %v329 = vld [vmem:[%s200 + $0x2c0] sm:$0xff]
        %v330 = vld [vmem:[%s200 + $0x2c8] sm:$0xff]
        %v331 = vld [vmem:[%s200 + $0x2d0] sm:$0xff]
        %v332 = vld [vmem:[%s200 + $0x2d8] sm:$0xff]
        %v333 = vld [vmem:[%s200 + $0x2e0] sm:$0xff]
        %v334 = vld [vmem:[%s200 + $0x2e8] sm:$0xff]
        %v335 = vld [vmem:[%s200 + $0x2f0] sm:$0xff]
        %v336 = vld [vmem:[%s200 + $0x2f8] sm:$0xff]
        %v337 = vld [vmem:[%s200 + $0x300] sm:$0xff]
        %v338 = vld [vmem:[%s200 + $0x308] sm:$0xff]
        %v339 = vld [vmem:[%s200 + $0x310] sm:$0xff]
        %v340 = vld [vmem:[%s200 + $0x318] sm:$0xff]
        %v341 = vld [vmem:[%s200 + $0x320] sm:$0xff]
        %v342 = vld [vmem:[%s200 + $0x328] sm:$0xff]
        %v343 = vld [vmem:[%s200 + $0x330] sm:$0xff]
        %v344 = vld [vmem:[%s200 + $0x338] sm:$0xff]
        %v345 = vld [vmem:[%s200 + $0x340] sm:$0xff]
        %v346 = vld [vmem:[%s200 + $0x348] sm:$0xff]
        %v347 = vld [vmem:[%s200 + $0x350] sm:$0xff]
        %v348 = vld [vmem:[%s200 + $0x358] sm:$0xff]
        %v349 = vld [vmem:[%s200 + $0x360] sm:$0xff]
        %v350 = vld [vmem:[%s200 + $0x368] sm:$0xff]
        %v351 = vld [vmem:[%s200 + $0x370] sm:$0xff]
        %v352 = vld [vmem:[%s200 + $0x378] sm:$0xff]
        %v353 = vld [vmem:[%s200 + $0x380] sm:$0xff]
        %v354 = vld [vmem:[%s200 + $0x388] sm:$0xff]
        %v355 = vld [vmem:[%s200 + $0x390] sm:$0xff]
        %v356 = vld [vmem:[%s200 + $0x398] sm:$0xff]
        %v357 = vld [vmem:[%s200 + $0x3a0] sm:$0xff]
        %v358 = vld [vmem:[%s200 + $0x3a8] sm:$0xff]
        %v359 = vld [vmem:[%s200 + $0x3b0] sm:$0xff]
        %v360 = vld [vmem:[%s200 + $0x3b8] sm:$0xff]
        %v361 = vld [vmem:[%s200 + $0x3c0] sm:$0xff]
        %v362 = vld [vmem:[%s200 + $0x3c8] sm:$0xff]
        %v363 = vld [vmem:[%s200 + $0x3d0] sm:$0xff]
        %v364 = vld [vmem:[%s200 + $0x3d8] sm:$0xff]
        %v365 = vld [vmem:[%s200 + $0x3e0] sm:$0xff]
        %v366 = vld [vmem:[%s200 + $0x3e8] sm:$0xff]
        %v367 = vld [vmem:[%s200 + $0x3f0] sm:$0xff]
        %v368 = vld [vmem:[%s200 + $0x3f8] sm:$0xff]
        %v369 = vld [vmem:[%s200 + $0x400] sm:$0xff]
        %v370 = vld [vmem:[%s200 + $0x408] sm:$0xff]
        %v371 = vld [vmem:[%s200 + $0x410] sm:$0xff]
        %v372 = vld [vmem:[%s200 + $0x418] sm:$0xff]
        %v373 = vld [vmem:[%s200 + $0x420] sm:$0xff]
        %v374 = vld [vmem:[%s200 + $0x428] sm:$0xff]
        %v375 = vld [vmem:[%s200 + $0x430] sm:$0xff]
        %v376 = vld [vmem:[%s200 + $0x438] sm:$0xff]
        %v377 = vld [vmem:[%s200 + $0x440] sm:$0xff]
        %v378 = vld [vmem:[%s200 + $0x448] sm:$0xff]
        %v379 = vld [vmem:[%s200 + $0x450] sm:$0xff]
        %v380 = vld [vmem:[%s200 + $0x458] sm:$0xff]
        %v381 = vld [vmem:[%s200 + $0x460] sm:$0xff]
        %v382 = vld [vmem:[%s200 + $0x468] sm:$0xff]
        %v383 = vld [vmem:[%s200 + $0x470] sm:$0xff]
        %v384 = vld [vmem:[%s200 + $0x478] sm:$0xff]
        %v385 = vld [vmem:[%s200 + $0x480] sm:$0xff]
        %v386 = vld [vmem:[%s200 + $0x488] sm:$0xff]
        %v387 = vld [vmem:[%s200 + $0x490] sm:$0xff]
        %v388 = vld [vmem:[%s200 + $0x498] sm:$0xff]
        %v389 = vld [vmem:[%s200 + $0x4a0] sm:$0xff]
        %v390 = vld [vmem:[%s200 + $0x4a8] sm:$0xff]
        %v391 = vld [vmem:[%s200 + $0x4b0] sm:$0xff]
        %v392 = vld [vmem:[%s200 + $0x4b8] sm:$0xff]
        %v393 = vld [vmem:[%s200 + $0x4c0] sm:$0xff]
        %v394 = vld [vmem:[%s200 + $0x4c8] sm:$0xff]
        %v395 = vld [vmem:[%s200 + $0x4d0] sm:$0xff]
        %v396 = vld [vmem:[%s200 + $0x4d8] sm:$0xff]
        %v397 = vld [vmem:[%s200 + $0x4e0] sm:$0xff]
        %v398 = vld [vmem:[%s200 + $0x4e8] sm:$0xff]
        %v399 = vld [vmem:[%s200 + $0x4f0] sm:$0xff]
        %v400 = vld [vmem:[%s200 + $0x4f8] sm:$0xff]
        %v401 = vld [vmem:[%s200 + $0x500] sm:$0xff]
        %v402 = vld [vmem:[%s200 + $0x508] sm:$0xff]
        %v403 = vld [vmem:[%s200 + $0x510] sm:$0xff]
        %v404 = vld [vmem:[%s200 + $0x518] sm:$0xff]
        %v405 = vld [vmem:[%s200 + $0x520] sm:$0xff]
        %v406 = vld [vmem:[%s200 + $0x528] sm:$0xff]
        %v407 = vld [vmem:[%s200 + $0x530] sm:$0xff]
        %v408 = vld [vmem:[%s200 + $0x538] sm:$0xff]
        %v409 = vld [vmem:[%s200 + $0x540] sm:$0xff]
        %v410 = vld [vmem:[%s200 + $0x548] sm:$0xff]
        %v411 = vld [vmem:[%s200 + $0x550] sm:$0xff]
        %v412 = vld [vmem:[%s200 + $0x558] sm:$0xff]
        %v413 = vld [vmem:[%s200 + $0x560] sm:$0xff]
        %v414 = vld [vmem:[%s200 + $0x568] sm:$0xff]
        %v415 = vld [vmem:[%s200 + $0x570] sm:$0xff]
        %v416 = vld [vmem:[%s200 + $0x578] sm:$0xff]
        %v417 = vld [vmem:[%s200 + $0x580] sm:$0xff]
        %v418 = vld [vmem:[%s200 + $0x588] sm:$0xff]
        %v419 = vld [vmem:[%s200 + $0x590] sm:$0xff]
        %v420 = vld [vmem:[%s200 + $0x598] sm:$0xff]
        %v421 = vld [vmem:[%s200 + $0x5a0] sm:$0xff]
        %v422 = vld [vmem:[%s200 + $0x5a8] sm:$0xff]
        %v423 = vld [vmem:[%s200 + $0x5b0] sm:$0xff]
        %v424 = vld [vmem:[%s200 + $0x5b8] sm:$0xff]
        %v425 = vld [vmem:[%s200 + $0x5c0] sm:$0xff]
        %v426 = vld [vmem:[%s200 + $0x5c8] sm:$0xff]
        %v427 = vld [vmem:[%s200 + $0x5d0] sm:$0xff]
        %v428 = vld [vmem:[%s200 + $0x5d8] sm:$0xff]
        %v429 = vld [vmem:[%s200 + $0x5e0] sm:$0xff]
        %v430 = vld [vmem:[%s200 + $0x5e8] sm:$0xff]
        %v431 = vld [vmem:[%s200 + $0x5f0] sm:$0xff]
        %v432 = vld [vmem:[%s200 + $0x5f8] sm:$0xff]
        %v433 = vld [vmem:[%s200 + $0x600] sm:$0xff]
        %v434 = vld [vmem:[%s200 + $0x608] sm:$0xff]
        %v435 = vld [vmem:[%s200 + $0x610] sm:$0xff]
        %v436 = vld [vmem:[%s200 + $0x618] sm:$0xff]
        %v437 = vld [vmem:[%s200 + $0x620] sm:$0xff]
        %v438 = vld [vmem:[%s200 + $0x628] sm:$0xff]
        %v439 = vld [vmem:[%s200 + $0x630] sm:$0xff]
        %v440 = vld [vmem:[%s200 + $0x638] sm:$0xff]
        %v441 = vld [vmem:[%s200 + $0x640] sm:$0xff]
        %v442 = vld [vmem:[%s200 + $0x648] sm:$0xff]
        %v443 = vld [vmem:[%s200 + $0x650] sm:$0xff]
        %v444 = vld [vmem:[%s200 + $0x658] sm:$0xff]
        %v445 = vld [vmem:[%s200 + $0x660] sm:$0xff]
        %v446 = vld [vmem:[%s200 + $0x668] sm:$0xff]
        %v447 = vld [vmem:[%s200 + $0x670] sm:$0xff]
        %v448 = vld [vmem:[%s200 + $0x678] sm:$0xff]
        %v449 = vld [vmem:[%s200 + $0x680] sm:$0xff]
        %v450 = vld [vmem:[%s200 + $0x688] sm:$0xff]
        %v451 = vld [vmem:[%s200 + $0x690] sm:$0xff]
        %v452 = vld [vmem:[%s200 + $0x698] sm:$0xff]
        %v453 = vld [vmem:[%s200 + $0x6a0] sm:$0xff]
        %v454 = vld [vmem:[%s200 + $0x6a8] sm:$0xff]
        %v455 = vld [vmem:[%s200 + $0x6b0] sm:$0xff]
        %v456 = vld [vmem:[%s200 + $0x6b8] sm:$0xff]
        %v457 = vld [vmem:[%s200 + $0x6c0] sm:$0xff]
        %v458 = vld [vmem:[%s200 + $0x6c8] sm:$0xff]
        %v459 = vld [vmem:[%s200 + $0x6d0] sm:$0xff]
        %v460 = vld [vmem:[%s200 + $0x6d8] sm:$0xff]
        %v461 = vld [vmem:[%s200 + $0x6e0] sm:$0xff]
        %v462 = vld [vmem:[%s200 + $0x6e8] sm:$0xff]
        %v463 = vld [vmem:[%s200 + $0x6f0] sm:$0xff]
        %v464 = vld [vmem:[%s200 + $0x6f8] sm:$0xff]
        %v465 = vld [vmem:[%s200 + $0x700] sm:$0xff]
        %v466 = vld [vmem:[%s200 + $0x708] sm:$0xff]
        %v467 = vld [vmem:[%s200 + $0x710] sm:$0xff]
        %v468 = vld [vmem:[%s200 + $0x718] sm:$0xff]
        %v469 = vld [vmem:[%s200 + $0x720] sm:$0xff]
        %v470 = vld [vmem:[%s200 + $0x728] sm:$0xff]
        %v471 = vld [vmem:[%s200 + $0x730] sm:$0xff]
        %v472 = vld [vmem:[%s200 + $0x738] sm:$0xff]
        %v473 = vld [vmem:[%s200 + $0x740] sm:$0xff]
        %v474 = vld [vmem:[%s200 + $0x748] sm:$0xff]
        %v475 = vld [vmem:[%s200 + $0x750] sm:$0xff]
        %v476 = vld [vmem:[%s200 + $0x758] sm:$0xff]
        %v477 = vld [vmem:[%s200 + $0x760] sm:$0xff]
        %v478 = vld [vmem:[%s200 + $0x768] sm:$0xff]
        %v479 = vld [vmem:[%s200 + $0x770] sm:$0xff]
        %v480 = vld [vmem:[%s200 + $0x778] sm:$0xff]
        %v481 = vld [vmem:[%s200 + $0x780] sm:$0xff]
        %v482 = vld [vmem:[%s200 + $0x788] sm:$0xff]
        %v483 = vld [vmem:[%s200 + $0x790] sm:$0xff]
        %v484 = vld [vmem:[%s200 + $0x798] sm:$0xff]
        %v485 = vld [vmem:[%s200 + $0x7a0] sm:$0xff]
        %v486 = vld [vmem:[%s200 + $0x7a8] sm:$0xff]
        %v487 = vld [vmem:[%s200 + $0x7b0] sm:$0xff]
        %v488 = vld [vmem:[%s200 + $0x7b8] sm:$0xff]
        %v489 = vld [vmem:[%s200 + $0x7c0] sm:$0xff]
        %v490 = vld [vmem:[%s200 + $0x7c8] sm:$0xff]
        %v491 = vld [vmem:[%s200 + $0x7d0] sm:$0xff]
        %v492 = vld [vmem:[%s200 + $0x7d8] sm:$0xff]
        %v493 = vld [vmem:[%s200 + $0x7e0] sm:$0xff]
        %v494 = vld [vmem:[%s200 + $0x7e8] sm:$0xff]
        %v495 = vld [vmem:[%s200 + $0x7f0] sm:$0xff]
        %v496 = vld [vmem:[%s200 + $0x7f8] sm:$0xff]
        %v497 = vld [vmem:[%s200 + $0x800] sm:$0xff]
        %v498 = vld [vmem:[%s200 + $0x808] sm:$0xff]
        %v499 = vld [vmem:[%s200 + $0x810] sm:$0xff]
        %v500 = vld [vmem:[%s200 + $0x818] sm:$0xff]
        %v501 = vld [vmem:[%s200 + $0x820] sm:$0xff]
        %v502 = vld [vmem:[%s200 + $0x828] sm:$0xff]
        %v503 = vld [vmem:[%s200 + $0x830] sm:$0xff]
        %v504 = vld [vmem:[%s200 + $0x838] sm:$0xff]
        %v505 = vld [vmem:[%s200 + $0x840] sm:$0xff]
        %v506 = vld [vmem:[%s200 + $0x848] sm:$0xff]
        %v507 = vld [vmem:[%s200 + $0x850] sm:$0xff]
        %v508 = vld [vmem:[%s200 + $0x858] sm:$0xff]
        %v509 = vld [vmem:[%s200 + $0x860] sm:$0xff]
        %v510 = vld [vmem:[%s200 + $0x868] sm:$0xff]
        %v511 = vld [vmem:[%s200 + $0x870] sm:$0xff]
        %v512 = vld [vmem:[%s200 + $0x878] sm:$0xff]
        %v513 = vld [vmem:[%s200 + $0x880] sm:$0xff]
        %v514 = vld [vmem:[%s200 + $0x888] sm:$0xff]
        %v515 = vld [vmem:[%s200 + $0x890] sm:$0xff]
        %v516 = vld [vmem:[%s200 + $0x898] sm:$0xff]
        %v517 = vld [vmem:[%s200 + $0x8a0] sm:$0xff]
        %v518 = vld [vmem:[%s200 + $0x8a8] sm:$0xff]
        %v519 = vld [vmem:[%s200 + $0x8b0] sm:$0xff]
        %v520 = vld [vmem:[%s200 + $0x8b8] sm:$0xff]
        %v521 = vld [vmem:[%s200 + $0x8c0] sm:$0xff]
        %v522 = vld [vmem:[%s200 + $0x8c8] sm:$0xff]
        %v523 = vld [vmem:[%s200 + $0x8d0] sm:$0xff]
        %v524 = vld [vmem:[%s200 + $0x8d8] sm:$0xff]
        %v525 = vld [vmem:[%s200 + $0x8e0] sm:$0xff]
        %v526 = vld [vmem:[%s200 + $0x8e8] sm:$0xff]
        %v527 = vld [vmem:[%s200 + $0x8f0] sm:$0xff]
        %v528 = vld [vmem:[%s200 + $0x8f8] sm:$0xff]
        %v529 = vld [vmem:[%s200 + $0x900] sm:$0xff]
        %v530 = vld [vmem:[%s200 + $0x908] sm:$0xff]
        %v531 = vld [vmem:[%s200 + $0x910] sm:$0xff]
        %v532 = vld [vmem:[%s200 + $0x918] sm:$0xff]
        %v533 = vld [vmem:[%s200 + $0x920] sm:$0xff]
        %v534 = vld [vmem:[%s200 + $0x928] sm:$0xff]
        %v535 = vld [vmem:[%s200 + $0x930] sm:$0xff]
        %v536 = vld [vmem:[%s200 + $0x938] sm:$0xff]
        %v537 = vld [vmem:[%s200 + $0x940] sm:$0xff]
        %v538 = vld [vmem:[%s200 + $0x948] sm:$0xff]
        %v539 = vld [vmem:[%s200 + $0x950] sm:$0xff]
        %v540 = vld [vmem:[%s200 + $0x958] sm:$0xff]
        %v541 = vld [vmem:[%s200 + $0x960] sm:$0xff]
        %v542 = vld [vmem:[%s200 + $0x968] sm:$0xff]
        %v543 = vld [vmem:[%s200 + $0x970] sm:$0xff]
        %v544 = vld [vmem:[%s200 + $0x978] sm:$0xff]
        %v545 = vld [vmem:[%s200 + $0x980] sm:$0xff]
        %v546 = vld [vmem:[%s200 + $0x988] sm:$0xff]
        %v547 = vld [vmem:[%s200 + $0x990] sm:$0xff]
        %v548 = vld [vmem:[%s200 + $0x998] sm:$0xff]
        %v549 = vld [vmem:[%s200 + $0x9a0] sm:$0xff]
        %v550 = vld [vmem:[%s200 + $0x9a8] sm:$0xff]
        %v551 = vld [vmem:[%s200 + $0x9b0] sm:$0xff]
        %v552 = vld [vmem:[%s200 + $0x9b8] sm:$0xff]
        %v553 = vld [vmem:[%s200 + $0x9c0] sm:$0xff]
        %v554 = vld [vmem:[%s200 + $0x9c8] sm:$0xff]
        %v555 = vld [vmem:[%s200 + $0x9d0] sm:$0xff]
        %v556 = vld [vmem:[%s200 + $0x9d8] sm:$0xff]
        %v557 = vld [vmem:[%s200 + $0x9e0] sm:$0xff]
        %v558 = vld [vmem:[%s200 + $0x9e8] sm:$0xff]
        %v559 = vld [vmem:[%s200 + $0x9f0] sm:$0xff]
        %v560 = vld [vmem:[%s200 + $0x9f8] sm:$0xff]
        %v561 = vld [vmem:[%s200 + $0xa00] sm:$0xff]
        %v562 = vld [vmem:[%s200 + $0xa08] sm:$0xff]
        %v563 = vld [vmem:[%s200 + $0xa10] sm:$0xff]
        %v564 = vld [vmem:[%s200 + $0xa18] sm:$0xff]
        %v565 = vld [vmem:[%s200 + $0xa20] sm:$0xff]
        %v566 = vld [vmem:[%s200 + $0xa28] sm:$0xff]
        %v567 = vld [vmem:[%s200 + $0xa30] sm:$0xff]
        %v568 = vld [vmem:[%s200 + $0xa38] sm:$0xff]
        %v569 = vld [vmem:[%s200 + $0xa40] sm:$0xff]
        %v570 = vld [vmem:[%s200 + $0xa48] sm:$0xff]
        %v571 = vld [vmem:[%s200 + $0xa50] sm:$0xff]
        %v572 = vld [vmem:[%s200 + $0xa58] sm:$0xff]
        %v573 = vld [vmem:[%s200 + $0xa60] sm:$0xff]
        %v574 = vld [vmem:[%s200 + $0xa68] sm:$0xff]
        %v575 = vld [vmem:[%s200 + $0xa70] sm:$0xff]
        %v576 = vld [vmem:[%s200 + $0xa78] sm:$0xff]
        %v577 = vld [vmem:[%s200 + $0xa80] sm:$0xff]
        %v578 = vld [vmem:[%s200 + $0xa88] sm:$0xff]
        %v579 = vld [vmem:[%s200 + $0xa90] sm:$0xff]
        %v580 = vld [vmem:[%s200 + $0xa98] sm:$0xff]
        %v581 = vld [vmem:[%s200 + $0xaa0] sm:$0xff]
        %v582 = vld [vmem:[%s200 + $0xaa8] sm:$0xff]
        %v583 = vld [vmem:[%s200 + $0xab0] sm:$0xff]
        %v584 = vld [vmem:[%s200 + $0xab8] sm:$0xff]
        %v585 = vld [vmem:[%s200 + $0xac0] sm:$0xff]
        %v586 = vld [vmem:[%s200 + $0xac8] sm:$0xff]
        %v587 = vld [vmem:[%s200 + $0xad0] sm:$0xff]
        %v588 = vld [vmem:[%s200 + $0xad8] sm:$0xff]
        %v589 = vld [vmem:[%s200 + $0xae0] sm:$0xff]
        %v590 = vld [vmem:[%s200 + $0xae8] sm:$0xff]
        %v591 = vld [vmem:[%s200 + $0xaf0] sm:$0xff]
        %v592 = vld [vmem:[%s200 + $0xaf8] sm:$0xff]
        %v593 = vld [vmem:[%s200 + $0xb00] sm:$0xff]
        %v594 = vld [vmem:[%s200 + $0xb08] sm:$0xff]
        %v595 = vld [vmem:[%s200 + $0xb10] sm:$0xff]
        %v596 = vld [vmem:[%s200 + $0xb18] sm:$0xff]
        %v597 = vld [vmem:[%s200 + $0xb20] sm:$0xff]
        %v598 = vld [vmem:[%s200 + $0xb28] sm:$0xff]
        %v599 = vld [vmem:[%s200 + $0xb30] sm:$0xff]
        %v600 = vld [vmem:[%s200 + $0xb38] sm:$0xff]
        %v601 = vld [vmem:[%s200 + $0xb40] sm:$0xff]
        %v602 = vld [vmem:[%s200 + $0xb48] sm:$0xff]
        %v603 = vld [vmem:[%s200 + $0xb50] sm:$0xff]
        %v604 = vld [vmem:[%s200 + $0xb58] sm:$0xff]
        %v605 = vld [vmem:[%s200 + $0xb60] sm:$0xff]
        %v606 = vld [vmem:[%s200 + $0xb68] sm:$0xff]
        %v607 = vld [vmem:[%s200 + $0xb70] sm:$0xff]
        %v608 = vld [vmem:[%s200 + $0xb78] sm:$0xff]
        %v609 = vld [vmem:[%s200 + $0xb80] sm:$0xff]
        %v610 = vld [vmem:[%s200 + $0xb88] sm:$0xff]
        %v611 = vld [vmem:[%s200 + $0xb90] sm:$0xff]
        %v612 = vld [vmem:[%s200 + $0xb98] sm:$0xff]
        %v613 = vld [vmem:[%s200 + $0xba0] sm:$0xff]
        %v614 = vld [vmem:[%s200 + $0xba8] sm:$0xff]
        %v615 = vld [vmem:[%s200 + $0xbb0] sm:$0xff]
        %v616 = vld [vmem:[%s200 + $0xbb8] sm:$0xff]
        %v617 = vld [vmem:[%s200 + $0xbc0] sm:$0xff]
        %v618 = vld [vmem:[%s200 + $0xbc8] sm:$0xff]
        %v619 = vld [vmem:[%s200 + $0xbd0] sm:$0xff]
        %v620 = vld [vmem:[%s200 + $0xbd8] sm:$0xff]
        %v621 = vld [vmem:[%s200 + $0xbe0] sm:$0xff]
        %v622 = vld [vmem:[%s200 + $0xbe8] sm:$0xff]
        %v623 = vld [vmem:[%s200 + $0xbf0] sm:$0xff]
        %v624 = vld [vmem:[%s200 + $0xbf8] sm:$0xff]
        %v625 = vld [vmem:[%s200 + $0xc00] sm:$0xff]
        %v626 = vld [vmem:[%s200 + $0xc08] sm:$0xff]
        %v627 = vld [vmem:[%s200 + $0xc10] sm:$0xff]
        %v628 = vld [vmem:[%s200 + $0xc18] sm:$0xff]
        %v629 = vld [vmem:[%s200 + $0xc20] sm:$0xff]
        %v630 = vld [vmem:[%s200 + $0xc28] sm:$0xff]
        %v631 = vld [vmem:[%s200 + $0xc30] sm:$0xff]
        %v632 = vld [vmem:[%s200 + $0xc38] sm:$0xff]
        %v633 = vld [vmem:[%s200 + $0xc40] sm:$0xff]
        %v634 = vld [vmem:[%s200 + $0xc48] sm:$0xff]
        %v635 = vld [vmem:[%s200 + $0xc50] sm:$0xff]
        %v636 = vld [vmem:[%s200 + $0xc58] sm:$0xff]
        %v637 = vld [vmem:[%s200 + $0xc60] sm:$0xff]
        %v638 = vld [vmem:[%s200 + $0xc68] sm:$0xff]
        %v639 = vld [vmem:[%s200 + $0xc70] sm:$0xff]
        %v640 = vld [vmem:[%s200 + $0xc78] sm:$0xff]
        %v641 = vld [vmem:[%s200 + $0xc80] sm:$0xff]
        %v642 = vld [vmem:[%s200 + $0xc88] sm:$0xff]
        %v643 = vld [vmem:[%s200 + $0xc90] sm:$0xff]
        %v644 = vld [vmem:[%s200 + $0xc98] sm:$0xff]
        %v645 = vld [vmem:[%s200 + $0xca0] sm:$0xff]
        %v646 = vld [vmem:[%s200 + $0xca8] sm:$0xff]
        %v647 = vld [vmem:[%s200 + $0xcb0] sm:$0xff]
        %v648 = vld [vmem:[%s200 + $0xcb8] sm:$0xff]
        %v649 = vld [vmem:[%s200 + $0xcc0] sm:$0xff]
        %v650 = vld [vmem:[%s200 + $0xcc8] sm:$0xff]
        %v651 = vld [vmem:[%s200 + $0xcd0] sm:$0xff]
        %v652 = vld [vmem:[%s200 + $0xcd8] sm:$0xff]
        %v653 = vld [vmem:[%s200 + $0xce0] sm:$0xff]
        %v654 = vld [vmem:[%s200 + $0xce8] sm:$0xff]
        %v655 = vld [vmem:[%s200 + $0xcf0] sm:$0xff]
        %v656 = vld [vmem:[%s200 + $0xcf8] sm:$0xff]
        %v657 = vld [vmem:[%s200 + $0xd00] sm:$0xff]
        %v658 = vld [vmem:[%s200 + $0xd08] sm:$0xff]
        %v659 = vld [vmem:[%s200 + $0xd10] sm:$0xff]
        %v660 = vld [vmem:[%s200 + $0xd18] sm:$0xff]
        %v661 = vld [vmem:[%s200 + $0xd20] sm:$0xff]
        %v662 = vld [vmem:[%s200 + $0xd28] sm:$0xff]
        %v663 = vld [vmem:[%s200 + $0xd30] sm:$0xff]
        %v664 = vld [vmem:[%s200 + $0xd38] sm:$0xff]
        %v665 = vld [vmem:[%s200 + $0xd40] sm:$0xff]
        %v666 = vld [vmem:[%s200 + $0xd48] sm:$0xff]
        %v667 = vld [vmem:[%s200 + $0xd50] sm:$0xff]
        %v668 = vld [vmem:[%s200 + $0xd58] sm:$0xff]
        %v669 = vld [vmem:[%s200 + $0xd60] sm:$0xff]
        %v670 = vld [vmem:[%s200 + $0xd68] sm:$0xff]
        %v671 = vld [vmem:[%s200 + $0xd70] sm:$0xff]
        %v672 = vld [vmem:[%s200 + $0xd78] sm:$0xff]
        %v673 = vld [vmem:[%s200 + $0xd80] sm:$0xff]
        %v674 = vld [vmem:[%s200 + $0xd88] sm:$0xff]
        %v675 = vld [vmem:[%s200 + $0xd90] sm:$0xff]
        %v676 = vld [vmem:[%s200 + $0xd98] sm:$0xff]
        %v677 = vld [vmem:[%s200 + $0xda0] sm:$0xff]
        %v678 = vld [vmem:[%s200 + $0xda8] sm:$0xff]
        %v679 = vld [vmem:[%s200 + $0xdb0] sm:$0xff]
        %v680 = vld [vmem:[%s200 + $0xdb8] sm:$0xff]
        %v681 = vld [vmem:[%s200 + $0xdc0] sm:$0xff]
        %v682 = vld [vmem:[%s200 + $0xdc8] sm:$0xff]
        %v683 = vld [vmem:[%s200 + $0xdd0] sm:$0xff]
        %v684 = vld [vmem:[%s200 + $0xdd8] sm:$0xff]
        %v685 = vld [vmem:[%s200 + $0xde0] sm:$0xff]
        %v686 = vld [vmem:[%s200 + $0xde8] sm:$0xff]
        %v687 = vld [vmem:[%s200 + $0xdf0] sm:$0xff]
        %v688 = vld [vmem:[%s200 + $0xdf8] sm:$0xff]
        %v689 = vld [vmem:[%s200 + $0xe00] sm:$0xff]
        %v690 = vld [vmem:[%s200 + $0xe08] sm:$0xff]
        %v691 = vld [vmem:[%s200 + $0xe10] sm:$0xff]
        %v692 = vld [vmem:[%s200 + $0xe18] sm:$0xff]
        %v693 = vld [vmem:[%s200 + $0xe20] sm:$0xff]
        %v694 = vld [vmem:[%s200 + $0xe28] sm:$0xff]
        %v695 = vld [vmem:[%s200 + $0xe30] sm:$0xff]
        %v696 = vld [vmem:[%s200 + $0xe38] sm:$0xff]
        %v697 = vld [vmem:[%s200 + $0xe40] sm:$0xff]
        %v698 = vld [vmem:[%s200 + $0xe48] sm:$0xff]
        %v699 = vld [vmem:[%s200 + $0xe50] sm:$0xff]
        %v700 = vld [vmem:[%s200 + $0xe58] sm:$0xff]
        %v701 = vld [vmem:[%s200 + $0xe60] sm:$0xff]
        %v702 = vld [vmem:[%s200 + $0xe68] sm:$0xff]
        %v703 = vld [vmem:[%s200 + $0xe70] sm:$0xff]
        %v704 = vld [vmem:[%s200 + $0xe78] sm:$0xff]
        %v705 = vld [vmem:[%s200 + $0xe80] sm:$0xff]
        %v706 = vld [vmem:[%s200 + $0xe88] sm:$0xff]
        %v707 = vld [vmem:[%s200 + $0xe90] sm:$0xff]
        %v708 = vld [vmem:[%s200 + $0xe98] sm:$0xff]
        %v709 = vld [vmem:[%s200 + $0xea0] sm:$0xff]
        %v710 = vld [vmem:[%s200 + $0xea8] sm:$0xff]
        %v711 = vld [vmem:[%s200 + $0xeb0] sm:$0xff]
        %v712 = vld [vmem:[%s200 + $0xeb8] sm:$0xff]
        %v713 = vld [vmem:[%s200 + $0xec0] sm:$0xff]
        %v714 = vld [vmem:[%s200 + $0xec8] sm:$0xff]
        %v715 = vld [vmem:[%s200 + $0xed0] sm:$0xff]
        %v716 = vld [vmem:[%s200 + $0xed8] sm:$0xff]
        %v717 = vld [vmem:[%s200 + $0xee0] sm:$0xff]
        %v718 = vld [vmem:[%s200 + $0xee8] sm:$0xff]
        %v719 = vld [vmem:[%s200 + $0xef0] sm:$0xff]
        %v720 = vld [vmem:[%s200 + $0xef8] sm:$0xff]
        %v721 = vld [vmem:[%s200 + $0xf00] sm:$0xff]
        %v722 = vld [vmem:[%s200 + $0xf08] sm:$0xff]
        %v723 = vld [vmem:[%s200 + $0xf10] sm:$0xff]
        %v724 = vld [vmem:[%s200 + $0xf18] sm:$0xff]
        %v725 = vld [vmem:[%s200 + $0xf20] sm:$0xff]
        %v726 = vld [vmem:[%s200 + $0xf28] sm:$0xff]
        %v727 = vld [vmem:[%s200 + $0xf30] sm:$0xff]
        %v728 = vld [vmem:[%s200 + $0xf38] sm:$0xff]
        %v729 = vld [vmem:[%s200 + $0xf40] sm:$0xff]
        %v730 = vld [vmem:[%s200 + $0xf48] sm:$0xff]
        %v731 = vld [vmem:[%s200 + $0xf50] sm:$0xff]
        %v732 = vld [vmem:[%s200 + $0xf58] sm:$0xff]
        %v733 = vld [vmem:[%s200 + $0xf60] sm:$0xff]
        %v734 = vld [vmem:[%s200 + $0xf68] sm:$0xff]
        %v735 = vld [vmem:[%s200 + $0xf70] sm:$0xff]
        %v736 = vld [vmem:[%s200 + $0xf78] sm:$0xff]
        %v737 = vld [vmem:[%s200 + $0xf80] sm:$0xff]
        %v738 = vld [vmem:[%s200 + $0xf88] sm:$0xff]
        %v739 = vld [vmem:[%s200 + $0xf90] sm:$0xff]
        %v740 = vld [vmem:[%s200 + $0xf98] sm:$0xff]
        %v741 = vld [vmem:[%s200 + $0xfa0] sm:$0xff]
        %v742 = vld [vmem:[%s200 + $0xfa8] sm:$0xff]
        %v743 = vld [vmem:[%s200 + $0xfb0] sm:$0xff]
        %v744 = vld [vmem:[%s200 + $0xfb8] sm:$0xff]
        %v745 = vld [vmem:[%s200 + $0xfc0] sm:$0xff]
        %v746 = vld [vmem:[%s200 + $0xfc8] sm:$0xff]
        %v747 = vld [vmem:[%s200 + $0xfd0] sm:$0xff]
        %v748 = vld [vmem:[%s200 + $0xfd8] sm:$0xff]
        %v749 = vld [vmem:[%s200 + $0xfe0] sm:$0xff]
        %v750 = vld [vmem:[%s200 + $0xfe8] sm:$0xff]
        %v751 = vld [vmem:[%s200 + $0xff0] sm:$0xff]
        %v752 = vld [vmem:[%s200 + $0xff8] sm:$0xff]
        %v753 = vld [vmem:[%s200 + $0x1000] sm:$0xff]
        %v754 = vld [vmem:[%s200 + $0x1008] sm:$0xff]
        %v755 = vld [vmem:[%s200 + $0x1010] sm:$0xff]
        %v756 = vld [vmem:[%s200 + $0x1018] sm:$0xff]
        %v757 = vld [vmem:[%s200 + $0x1020] sm:$0xff]
        %v758 = vld [vmem:[%s200 + $0x1028] sm:$0xff]
        %v759 = vld [vmem:[%s200 + $0x1030] sm:$0xff]
        %v760 = vld [vmem:[%s200 + $0x1038] sm:$0xff]
        %v761 = vld [vmem:[%s200 + $0x1040] sm:$0xff]
        %v762 = vld [vmem:[%s200 + $0x1048] sm:$0xff]
        %v763 = vld [vmem:[%s200 + $0x1050] sm:$0xff]
        %v764 = vld [vmem:[%s200 + $0x1058] sm:$0xff]
        %v765 = vld [vmem:[%s200 + $0x1060] sm:$0xff]
        %v766 = vld [vmem:[%s200 + $0x1068] sm:$0xff]
        %v767 = vld [vmem:[%s200 + $0x1070] sm:$0xff]
        %v768 = vld [vmem:[%s200 + $0x1078] sm:$0xff]
        %v769 = vld [vmem:[%s200 + $0x1080] sm:$0xff]
        %v770 = vld [vmem:[%s200 + $0x1088] sm:$0xff]
        %v771 = vld [vmem:[%s200 + $0x1090] sm:$0xff]
        %v772 = vld [vmem:[%s200 + $0x1098] sm:$0xff]
        %v773 = vld [vmem:[%s200 + $0x10a0] sm:$0xff]
        %v774 = vld [vmem:[%s200 + $0x10a8] sm:$0xff]
        %v775 = vld [vmem:[%s200 + $0x10b0] sm:$0xff]
        %v776 = vld [vmem:[%s200 + $0x10b8] sm:$0xff]
        %v777 = vld [vmem:[%s200 + $0x10c0] sm:$0xff]
        %v778 = vld [vmem:[%s200 + $0x10c8] sm:$0xff]
        %v779 = vld [vmem:[%s200 + $0x10d0] sm:$0xff]
        %v780 = vld [vmem:[%s200 + $0x10d8] sm:$0xff]
        %v781 = vld [vmem:[%s200 + $0x10e0] sm:$0xff]
        %v782 = vld [vmem:[%s200 + $0x10e8] sm:$0xff]
        %v783 = vld [vmem:[%s200 + $0x10f0] sm:$0xff]
        %v784 = vld [vmem:[%s200 + $0x10f8] sm:$0xff]
        %v785 = vld [vmem:[%s200 + $0x1100] sm:$0xff]
        %v786 = vld [vmem:[%s200 + $0x1108] sm:$0xff]
        %v787 = vld [vmem:[%s200 + $0x1110] sm:$0xff]
        %v788 = vld [vmem:[%s200 + $0x1118] sm:$0xff]
        %v789 = vld [vmem:[%s200 + $0x1120] sm:$0xff]
        %v790 = vld [vmem:[%s200 + $0x1128] sm:$0xff]
        %v791 = vld [vmem:[%s200 + $0x1130] sm:$0xff]
        %v792 = vld [vmem:[%s200 + $0x1138] sm:$0xff]
        %v793 = vld [vmem:[%s200 + $0x1140] sm:$0xff]
        %v794 = vld [vmem:[%s200 + $0x1148] sm:$0xff]
        %v795 = vld [vmem:[%s200 + $0x1150] sm:$0xff]
        %v796 = vld [vmem:[%s200 + $0x1158] sm:$0xff]
        %v797 = vld [vmem:[%s200 + $0x1160] sm:$0xff]
        %v798 = vld [vmem:[%s200 + $0x1168] sm:$0xff]
        %v799 = vld [vmem:[%s200 + $0x1170] sm:$0xff]
        %v800 = vld [vmem:[%s200 + $0x1178] sm:$0xff]
        %v801 = vld [vmem:[%s200 + $0x1180] sm:$0xff]
        %v802 = vld [vmem:[%s200 + $0x1188] sm:$0xff]
        %v803 = vld [vmem:[%s200 + $0x1190] sm:$0xff]
        %v804 = vld [vmem:[%s200 + $0x1198] sm:$0xff]
        %v805 = vld [vmem:[%s200 + $0x11a0] sm:$0xff]
        %v806 = vld [vmem:[%s200 + $0x11a8] sm:$0xff]
        %v807 = vld [vmem:[%s200 + $0x11b0] sm:$0xff]
        %v808 = vld [vmem:[%s200 + $0x11b8] sm:$0xff]
        %v809 = vld [vmem:[%s200 + $0x11c0] sm:$0xff]
        %v810 = vld [vmem:[%s200 + $0x11c8] sm:$0xff]
        %v811 = vld [vmem:[%s200 + $0x11d0] sm:$0xff]
        %v812 = vld [vmem:[%s200 + $0x11d8] sm:$0xff]
        %v813 = vld [vmem:[%s200 + $0x11e0] sm:$0xff]
        %v814 = vld [vmem:[%s200 + $0x11e8] sm:$0xff]
        %v815 = vld [vmem:[%s200 + $0x11f0] sm:$0xff]
        %v816 = vld [vmem:[%s200 + $0x11f8] sm:$0xff]
        %v817 = vld [vmem:[%s200 + $0x1200] sm:$0xff]
        %v818 = vld [vmem:[%s200 + $0x1208] sm:$0xff]
        %v819 = vld [vmem:[%s200 + $0x1210] sm:$0xff]
        %v820 = vld [vmem:[%s200 + $0x1218] sm:$0xff]
        %v821 = vld [vmem:[%s200 + $0x1220] sm:$0xff]
        %v822 = vld [vmem:[%s200 + $0x1228] sm:$0xff]
        %v823 = vld [vmem:[%s200 + $0x1230] sm:$0xff]
        %v824 = vld [vmem:[%s200 + $0x1238] sm:$0xff]
        %v825 = vld [vmem:[%s200 + $0x1240] sm:$0xff]
        %v826 = vld [vmem:[%s200 + $0x1248] sm:$0xff]
        %v827 = vld [vmem:[%s200 + $0x1250] sm:$0xff]
        %v828 = vld [vmem:[%s200 + $0x1258] sm:$0xff]
        %v829 = vld [vmem:[%s200 + $0x1260] sm:$0xff]
        %v830 = vld [vmem:[%s200 + $0x1268] sm:$0xff]
        %v831 = vld [vmem:[%s200 + $0x1270] sm:$0xff]
        %v832 = vld [vmem:[%s200 + $0x1278] sm:$0xff]
        %v833 = vld [vmem:[%s200 + $0x1280] sm:$0xff]
        %v834 = vld [vmem:[%s200 + $0x1288] sm:$0xff]
        %v835 = vld [vmem:[%s200 + $0x1290] sm:$0xff]
        %v836 = vld [vmem:[%s200 + $0x1298] sm:$0xff]
        %v837 = vld [vmem:[%s200 + $0x12a0] sm:$0xff]
        %v838 = vld [vmem:[%s200 + $0x12a8] sm:$0xff]
        %v839 = vld [vmem:[%s200 + $0x12b0] sm:$0xff]
        %v840 = vld [vmem:[%s200 + $0x12b8] sm:$0xff]
        %v841 = vld [vmem:[%s200 + $0x12c0] sm:$0xff]
        %v842 = vld [vmem:[%s200 + $0x12c8] sm:$0xff]
        %v843 = vld [vmem:[%s200 + $0x12d0] sm:$0xff]
        %v844 = vld [vmem:[%s200 + $0x12d8] sm:$0xff]
        %v845 = vld [vmem:[%s200 + $0x12e0] sm:$0xff]
        %v846 = vld [vmem:[%s200 + $0x12e8] sm:$0xff]
        %v847 = vld [vmem:[%s200 + $0x12f0] sm:$0xff]
        %v848 = vld [vmem:[%s200 + $0x12f8] sm:$0xff]
        %v849 = vld [vmem:[%s200 + $0x1300] sm:$0xff]
        %v850 = vld [vmem:[%s200 + $0x1308] sm:$0xff]
        %v851 = vld [vmem:[%s200 + $0x1310] sm:$0xff]
        %v852 = vld [vmem:[%s200 + $0x1318] sm:$0xff]
        %v853 = vld [vmem:[%s200 + $0x1320] sm:$0xff]
        %v854 = vld [vmem:[%s200 + $0x1328] sm:$0xff]
        %v855 = vld [vmem:[%s200 + $0x1330] sm:$0xff]
        %v856 = vld [vmem:[%s200 + $0x1338] sm:$0xff]
        %v857 = vld [vmem:[%s200 + $0x1340] sm:$0xff]
        %v858 = vld [vmem:[%s200 + $0x1348] sm:$0xff]
        %v859 = vld [vmem:[%s200 + $0x1350] sm:$0xff]
        %v860 = vld [vmem:[%s200 + $0x1358] sm:$0xff]
        %v861 = vld [vmem:[%s200 + $0x1360] sm:$0xff]
        %v862 = vld [vmem:[%s200 + $0x1368] sm:$0xff]
        %v863 = vld [vmem:[%s200 + $0x1370] sm:$0xff]
        %v864 = vld [vmem:[%s200 + $0x1378] sm:$0xff]
        %v865 = vld [vmem:[%s200 + $0x1380] sm:$0xff]
        %v866 = vld [vmem:[%s200 + $0x1388] sm:$0xff]
        %v867 = vld [vmem:[%s200 + $0x1390] sm:$0xff]
        %v868 = vld [vmem:[%s200 + $0x1398] sm:$0xff]
        %v869 = vld [vmem:[%s200 + $0x13a0] sm:$0xff]
        %v870 = vld [vmem:[%s200 + $0x13a8] sm:$0xff]
        %v871 = vld [vmem:[%s200 + $0x13b0] sm:$0xff]
        %v872 = vld [vmem:[%s200 + $0x13b8] sm:$0xff]
        %v873 = vld [vmem:[%s200 + $0x13c0] sm:$0xff]
        %v874 = vld [vmem:[%s200 + $0x13c8] sm:$0xff]
        %v875 = vld [vmem:[%s200 + $0x13d0] sm:$0xff]
        %v876 = vld [vmem:[%s200 + $0x13d8] sm:$0xff]
        %v877 = vld [vmem:[%s200 + $0x13e0] sm:$0xff]
        %v878 = vld [vmem:[%s200 + $0x13e8] sm:$0xff]
        %v879 = vld [vmem:[%s200 + $0x13f0] sm:$0xff]
        %v880 = vld [vmem:[%s200 + $0x13f8] sm:$0xff]
        %v881 = vld [vmem:[%s200 + $0x1400] sm:$0xff]
        %v882 = vld [vmem:[%s200 + $0x1408] sm:$0xff]
        %v883 = vld [vmem:[%s200 + $0x1410] sm:$0xff]
        %v884 = vld [vmem:[%s200 + $0x1418] sm:$0xff]
        %v885 = vld [vmem:[%s200 + $0x1420] sm:$0xff]
        %v886 = vld [vmem:[%s200 + $0x1428] sm:$0xff]
        %v887 = vld [vmem:[%s200 + $0x1430] sm:$0xff]
        %v888 = vld [vmem:[%s200 + $0x1438] sm:$0xff]
        %v889 = vld [vmem:[%s200 + $0x1440] sm:$0xff]
        %v890 = vld [vmem:[%s200 + $0x1448] sm:$0xff]
        %v891 = vld [vmem:[%s200 + $0x1450] sm:$0xff]
        %v892 = vld [vmem:[%s200 + $0x1458] sm:$0xff]
        %v893 = vld [vmem:[%s200 + $0x1460] sm:$0xff]
        %v894 = vld [vmem:[%s200 + $0x1468] sm:$0xff]
        %v895 = vld [vmem:[%s200 + $0x1470] sm:$0xff]
        %v896 = vld [vmem:[%s200 + $0x1478] sm:$0xff]
        %v897 = vld [vmem:[%s200 + $0x1480] sm:$0xff]
        %v898 = vld [vmem:[%s200 + $0x1488] sm:$0xff]
        %v899 = vld [vmem:[%s200 + $0x1490] sm:$0xff]
        %v900 = vld [vmem:[%s200 + $0x1498] sm:$0xff]
        %v901 = vld [vmem:[%s200 + $0x14a0] sm:$0xff]
        %v902 = vld [vmem:[%s200 + $0x14a8] sm:$0xff]
        %v903 = vld [vmem:[%s200 + $0x14b0] sm:$0xff]
        %v904 = vld [vmem:[%s200 + $0x14b8] sm:$0xff]
        %v905 = vld [vmem:[%s200 + $0x14c0] sm:$0xff]
        %v906 = vld [vmem:[%s200 + $0x14c8] sm:$0xff]
        %v907 = vld [vmem:[%s200 + $0x14d0] sm:$0xff]
        %v908 = vld [vmem:[%s200 + $0x14d8] sm:$0xff]
        %v909 = vld [vmem:[%s200 + $0x14e0] sm:$0xff]
        %v910 = vld [vmem:[%s200 + $0x14e8] sm:$0xff]
        %v911 = vld [vmem:[%s200 + $0x14f0] sm:$0xff]
        %v912 = vld [vmem:[%s200 + $0x14f8] sm:$0xff]
        %v913 = vld [vmem:[%s200 + $0x1500] sm:$0xff]
        %v914 = vld [vmem:[%s200 + $0x1508] sm:$0xff]
        %v915 = vld [vmem:[%s200 + $0x1510] sm:$0xff]
        %v916 = vld [vmem:[%s200 + $0x1518] sm:$0xff]
        %v917 = vld [vmem:[%s200 + $0x1520] sm:$0xff]
        %v918 = vld [vmem:[%s200 + $0x1528] sm:$0xff]
        %v919 = vld [vmem:[%s200 + $0x1530] sm:$0xff]
        %v920 = vld [vmem:[%s200 + $0x1538] sm:$0xff]
        %v921 = vld [vmem:[%s200 + $0x1540] sm:$0xff]
        %v922 = vld [vmem:[%s200 + $0x1548] sm:$0xff]
        %v923 = vld [vmem:[%s200 + $0x1550] sm:$0xff]
        %v924 = vld [vmem:[%s200 + $0x1558] sm:$0xff]
        %v925 = vld [vmem:[%s200 + $0x1560] sm:$0xff]
        %v926 = vld [vmem:[%s200 + $0x1568] sm:$0xff]
        %v927 = vld [vmem:[%s200 + $0x1570] sm:$0xff]
        %v928 = vld [vmem:[%s200 + $0x1578] sm:$0xff]
        %v929 = vld [vmem:[%s200 + $0x1580] sm:$0xff]
        %v930 = vld [vmem:[%s200 + $0x1588] sm:$0xff]
        %v931 = vld [vmem:[%s200 + $0x1590] sm:$0xff]
        %v932 = vld [vmem:[%s200 + $0x1598] sm:$0xff]
        %v933 = vld [vmem:[%s200 + $0x15a0] sm:$0xff]
        %v934 = vld [vmem:[%s200 + $0x15a8] sm:$0xff]
        %v935 = vld [vmem:[%s200 + $0x15b0] sm:$0xff]
        %v936 = vld [vmem:[%s200 + $0x15b8] sm:$0xff]
        %v937 = vld [vmem:[%s200 + $0x15c0] sm:$0xff]
        %v938 = vld [vmem:[%s200 + $0x15c8] sm:$0xff]
        %v939 = vld [vmem:[%s200 + $0x15d0] sm:$0xff]
        %v940 = vld [vmem:[%s200 + $0x15d8] sm:$0xff]
        %v941 = vld [vmem:[%s200 + $0x15e0] sm:$0xff]
        %v942 = vld [vmem:[%s200 + $0x15e8] sm:$0xff]
        %v943 = vld [vmem:[%s200 + $0x15f0] sm:$0xff]
        %v944 = vld [vmem:[%s200 + $0x15f8] sm:$0xff]
        %v945 = vld [vmem:[%s200 + $0x1600] sm:$0xff]
        %v946 = vld [vmem:[%s200 + $0x1608] sm:$0xff]
        %v947 = vld [vmem:[%s200 + $0x1610] sm:$0xff]
        %v948 = vld [vmem:[%s200 + $0x1618] sm:$0xff]
        %v949 = vld [vmem:[%s200 + $0x1620] sm:$0xff]
        %v950 = vld [vmem:[%s200 + $0x1628] sm:$0xff]
        %v951 = vld [vmem:[%s200 + $0x1630] sm:$0xff]
        %v952 = vld [vmem:[%s200 + $0x1638] sm:$0xff]
        %v953 = vld [vmem:[%s200 + $0x1640] sm:$0xff]
        %v954 = vld [vmem:[%s200 + $0x1648] sm:$0xff]
        %v955 = vld [vmem:[%s200 + $0x1650] sm:$0xff]
        %v956 = vld [vmem:[%s200 + $0x1658] sm:$0xff]
        %v957 = vld [vmem:[%s200 + $0x1660] sm:$0xff]
        %v958 = vld [vmem:[%s200 + $0x1668] sm:$0xff]
        %v959 = vld [vmem:[%s200 + $0x1670] sm:$0xff]
        %v960 = vld [vmem:[%s200 + $0x1678] sm:$0xff]
        %v961 = vld [vmem:[%s200 + $0x1680] sm:$0xff]
        %v962 = vld [vmem:[%s200 + $0x1688] sm:$0xff]
        %v963 = vld [vmem:[%s200 + $0x1690] sm:$0xff]
        %v964 = vld [vmem:[%s200 + $0x1698] sm:$0xff]
        %v965 = vld [vmem:[%s200 + $0x16a0] sm:$0xff]
        %v966 = vld [vmem:[%s200 + $0x16a8] sm:$0xff]
        %v967 = vld [vmem:[%s200 + $0x16b0] sm:$0xff]
        %v968 = vld [vmem:[%s200 + $0x16b8] sm:$0xff]
        %v969 = vld [vmem:[%s200 + $0x16c0] sm:$0xff]
        %v970 = vld [vmem:[%s200 + $0x16c8] sm:$0xff]
        %v971 = vld [vmem:[%s200 + $0x16d0] sm:$0xff]
        %v972 = vld [vmem:[%s200 + $0x16d8] sm:$0xff]
        %v973 = vld [vmem:[%s200 + $0x16e0] sm:$0xff]
        %v974 = vld [vmem:[%s200 + $0x16e8] sm:$0xff]
        %v975 = vld [vmem:[%s200 + $0x16f0] sm:$0xff]
        %v976 = vld [vmem:[%s200 + $0x16f8] sm:$0xff]
        %v977 = vld [vmem:[%s200 + $0x1700] sm:$0xff]
        %v978 = vld [vmem:[%s200 + $0x1708] sm:$0xff]
        %v979 = vld [vmem:[%s200 + $0x1710] sm:$0xff]
        %v980 = vld [vmem:[%s200 + $0x1718] sm:$0xff]
        %v981 = vld [vmem:[%s200 + $0x1720] sm:$0xff]
        %v982 = vld [vmem:[%s200 + $0x1728] sm:$0xff]
        %v983 = vld [vmem:[%s200 + $0x1730] sm:$0xff]
        %v984 = vld [vmem:[%s200 + $0x1738] sm:$0xff]
        %v985 = vld [vmem:[%s200 + $0x1740] sm:$0xff]
        %v986 = vld [vmem:[%s200 + $0x1748] sm:$0xff]
        %v987 = vld [vmem:[%s200 + $0x1750] sm:$0xff]
        %v988 = vld [vmem:[%s200 + $0x1758] sm:$0xff]
        %v989 = vld [vmem:[%s200 + $0x1760] sm:$0xff]
        %v990 = vld [vmem:[%s200 + $0x1768] sm:$0xff]
        %v991 = vld [vmem:[%s200 + $0x1770] sm:$0xff]
        %v992 = vld [vmem:[%s200 + $0x1778] sm:$0xff]
        %v993 = vld [vmem:[%s200 + $0x1780] sm:$0xff]
        %v994 = vld [vmem:[%s200 + $0x1788] sm:$0xff]
        %v995 = vld [vmem:[%s200 + $0x1790] sm:$0xff]
        %v996 = vld [vmem:[%s200 + $0x1798] sm:$0xff]
        %v997 = vld [vmem:[%s200 + $0x17a0] sm:$0xff]
        %v998 = vld [vmem:[%s200 + $0x17a8] sm:$0xff]
        %v999 = vld [vmem:[%s200 + $0x17b0] sm:$0xff]
        %v1000 = vld [vmem:[%s200 + $0x17b8] sm:$0xff]
        %v1001 = vld [vmem:[%s200 + $0x17c0] sm:$0xff]
        %v1002 = vld [vmem:[%s200 + $0x17c8] sm:$0xff]
        %v1003 = vld [vmem:[%s200 + $0x17d0] sm:$0xff]
        %v1004 = vld [vmem:[%s200 + $0x17d8] sm:$0xff]
        %v1005 = vld [vmem:[%s200 + $0x17e0] sm:$0xff]
        %v1006 = vld [vmem:[%s200 + $0x17e8] sm:$0xff]
        %v1007 = vld [vmem:[%s200 + $0x17f0] sm:$0xff]
        %v1008 = vld [vmem:[%s200 + $0x17f8] sm:$0xff]
        %v1009 = vld [vmem:[%s200 + $0x1800] sm:$0xff]
        %v1010 = vld [vmem:[%s200 + $0x1808] sm:$0xff]
        %v1011 = vld [vmem:[%s200 + $0x1810] sm:$0xff]
        %v1012 = vld [vmem:[%s200 + $0x1818] sm:$0xff]
        %v1013 = vld [vmem:[%s200 + $0x1820] sm:$0xff]
        %v1014 = vld [vmem:[%s200 + $0x1828] sm:$0xff]
        %v1015 = vld [vmem:[%s200 + $0x1830] sm:$0xff]
        %v1016 = vld [vmem:[%s200 + $0x1838] sm:$0xff]
        %v1017 = vld [vmem:[%s200 + $0x1840] sm:$0xff]
        %v1018 = vld [vmem:[%s200 + $0x1848] sm:$0xff]
        %v1019 = vld [vmem:[%s200 + $0x1850] sm:$0xff]
        %v1020 = vld [vmem:[%s200 + $0x1858] sm:$0xff]
        %v1021 = vld [vmem:[%s200 + $0x1860] sm:$0xff]
        %v1022 = vld [vmem:[%s200 + $0x1868] sm:$0xff]
        %v1023 = vld [vmem:[%s200 + $0x1870] sm:$0xff]
        %v1024 = vld [vmem:[%s200 + $0x1878] sm:$0xff]
        %v1025 = vld [vmem:[%s200 + $0x1880] sm:$0xff]
        %v1026 = vld [vmem:[%s200 + $0x1888] sm:$0xff]
        %v1027 = vld [vmem:[%s200 + $0x1890] sm:$0xff]
        %v1028 = vld [vmem:[%s200 + $0x1898] sm:$0xff]
        %v1029 = vld [vmem:[%s200 + $0x18a0] sm:$0xff]
        %v1030 = vld [vmem:[%s200 + $0x18a8] sm:$0xff]
        %v1031 = vld [vmem:[%s200 + $0x18b0] sm:$0xff]
        %v1032 = vld [vmem:[%s200 + $0x18b8] sm:$0xff]
        %v1033 = vld [vmem:[%s200 + $0x18c0] sm:$0xff]
        %v1034 = vld [vmem:[%s200 + $0x18c8] sm:$0xff]
        %v1035 = vld [vmem:[%s200 + $0x18d0] sm:$0xff]
        %v1036 = vld [vmem:[%s200 + $0x18d8] sm:$0xff]
        %v1037 = vld [vmem:[%s200 + $0x18e0] sm:$0xff]
        %v1038 = vld [vmem:[%s200 + $0x18e8] sm:$0xff]
        %v1039 = vld [vmem:[%s200 + $0x18f0] sm:$0xff]
        %v1040 = vld [vmem:[%s200 + $0x18f8] sm:$0xff]
        %v1041 = vld [vmem:[%s200 + $0x1900] sm:$0xff]
        %v1042 = vld [vmem:[%s200 + $0x1908] sm:$0xff]
        %v1043 = vld [vmem:[%s200 + $0x1910] sm:$0xff]
        %v1044 = vld [vmem:[%s200 + $0x1918] sm:$0xff]
        %v1045 = vld [vmem:[%s200 + $0x1920] sm:$0xff]
        %v1046 = vld [vmem:[%s200 + $0x1928] sm:$0xff]
        %v1047 = vld [vmem:[%s200 + $0x1930] sm:$0xff]
        %v1048 = vld [vmem:[%s200 + $0x1938] sm:$0xff]
        %v1049 = vld [vmem:[%s200 + $0x1940] sm:$0xff]
        %v1050 = vld [vmem:[%s200 + $0x1948] sm:$0xff]
        %v1051 = vld [vmem:[%s200 + $0x1950] sm:$0xff]
        %v1052 = vld [vmem:[%s200 + $0x1958] sm:$0xff]
        %v1053 = vld [vmem:[%s200 + $0x1960] sm:$0xff]
        %v1054 = vld [vmem:[%s200 + $0x1968] sm:$0xff]
        %v1055 = vld [vmem:[%s200 + $0x1970] sm:$0xff]
        %v1056 = vld [vmem:[%s200 + $0x1978] sm:$0xff]
        %v1057 = vld [vmem:[%s200 + $0x1980] sm:$0xff]
        %v1058 = vld [vmem:[%s200 + $0x1988] sm:$0xff]
        %v1059 = vld [vmem:[%s200 + $0x1990] sm:$0xff]
        %v1060 = vld [vmem:[%s200 + $0x1998] sm:$0xff]
        %v1061 = vld [vmem:[%s200 + $0x19a0] sm:$0xff]
        %v1062 = vld [vmem:[%s200 + $0x19a8] sm:$0xff]
        %v1063 = vld [vmem:[%s200 + $0x19b0] sm:$0xff]
        %v1064 = vld [vmem:[%s200 + $0x19b8] sm:$0xff]
        %v1065 = vld [vmem:[%s200 + $0x19c0] sm:$0xff]
        %v1066 = vld [vmem:[%s200 + $0x19c8] sm:$0xff]
        %v1067 = vld [vmem:[%s200 + $0x19d0] sm:$0xff]
        %v1068 = vld [vmem:[%s200 + $0x19d8] sm:$0xff]
        %v1069 = vld [vmem:[%s200 + $0x19e0] sm:$0xff]
        %v1070 = vld [vmem:[%s200 + $0x19e8] sm:$0xff]
        %v1071 = vld [vmem:[%s200 + $0x19f0] sm:$0xff]
        %v1072 = vld [vmem:[%s200 + $0x19f8] sm:$0xff]
        %v1073 = vld [vmem:[%s200 + $0x1a00] sm:$0xff]
        %v1074 = vld [vmem:[%s200 + $0x1a08] sm:$0xff]
        %v1075 = vld [vmem:[%s200 + $0x1a10] sm:$0xff]
        %v1076 = vld [vmem:[%s200 + $0x1a18] sm:$0xff]
        %v1077 = vld [vmem:[%s200 + $0x1a20] sm:$0xff]
        %v1078 = vld [vmem:[%s200 + $0x1a28] sm:$0xff]
        %v1079 = vld [vmem:[%s200 + $0x1a30] sm:$0xff]
        %v1080 = vld [vmem:[%s200 + $0x1a38] sm:$0xff]
        %v1081 = vld [vmem:[%s200 + $0x1a40] sm:$0xff]
        %v1082 = vld [vmem:[%s200 + $0x1a48] sm:$0xff]
        %v1083 = vld [vmem:[%s200 + $0x1a50] sm:$0xff]
        %v1084 = vld [vmem:[%s200 + $0x1a58] sm:$0xff]
        %v1085 = vld [vmem:[%s200 + $0x1a60] sm:$0xff]
        %v1086 = vld [vmem:[%s200 + $0x1a68] sm:$0xff]
        %v1087 = vld [vmem:[%s200 + $0x1a70] sm:$0xff]
        %v1088 = vld [vmem:[%s200 + $0x1a78] sm:$0xff]
        %v1089 = vld [vmem:[%s200 + $0x1a80] sm:$0xff]
        %v1090 = vld [vmem:[%s200 + $0x1a88] sm:$0xff]
        %v1091 = vld [vmem:[%s200 + $0x1a90] sm:$0xff]
        %v1092 = vld [vmem:[%s200 + $0x1a98] sm:$0xff]
        %v1093 = vld [vmem:[%s200 + $0x1aa0] sm:$0xff]
        %v1094 = vld [vmem:[%s200 + $0x1aa8] sm:$0xff]
        %v1095 = vld [vmem:[%s200 + $0x1ab0] sm:$0xff]
        %v1096 = vld [vmem:[%s200 + $0x1ab8] sm:$0xff]
        %v1097 = vld [vmem:[%s200 + $0x1ac0] sm:$0xff]
        %v1098 = vld [vmem:[%s200 + $0x1ac8] sm:$0xff]
        %v1099 = vld [vmem:[%s200 + $0x1ad0] sm:$0xff]
        %v1100 = vld [vmem:[%s200 + $0x1ad8] sm:$0xff]
        %v1101 = vld [vmem:[%s200 + $0x1ae0] sm:$0xff]
        %v1102 = vld [vmem:[%s200 + $0x1ae8] sm:$0xff]
        %v1103 = vld [vmem:[%s200 + $0x1af0] sm:$0xff]
        %v1104 = vld [vmem:[%s200 + $0x1af8] sm:$0xff]
        %v1105 = vld [vmem:[%s200 + $0x1b00] sm:$0xff]
        %v1106 = vld [vmem:[%s200 + $0x1b08] sm:$0xff]
        %v1107 = vld [vmem:[%s200 + $0x1b10] sm:$0xff]
        %v1108 = vld [vmem:[%s200 + $0x1b18] sm:$0xff]
        %v1109 = vld [vmem:[%s200 + $0x1b20] sm:$0xff]
        %v1110 = vld [vmem:[%s200 + $0x1b28] sm:$0xff]
        %v1111 = vld [vmem:[%s200 + $0x1b30] sm:$0xff]
        %v1112 = vld [vmem:[%s200 + $0x1b38] sm:$0xff]
        %v1113 = vld [vmem:[%s200 + $0x1b40] sm:$0xff]
        %v1114 = vld [vmem:[%s200 + $0x1b48] sm:$0xff]
        %v1115 = vld [vmem:[%s200 + $0x1b50] sm:$0xff]
        %v1116 = vld [vmem:[%s200 + $0x1b58] sm:$0xff]
        %v1117 = vld [vmem:[%s200 + $0x1b60] sm:$0xff]
        %v1118 = vld [vmem:[%s200 + $0x1b68] sm:$0xff]
        %v1119 = vld [vmem:[%s200 + $0x1b70] sm:$0xff]
        %v1120 = vld [vmem:[%s200 + $0x1b78] sm:$0xff]
        %v1121 = vld [vmem:[%s200 + $0x1b80] sm:$0xff]
        %v1122 = vld [vmem:[%s200 + $0x1b88] sm:$0xff]
        %v1123 = vld [vmem:[%s200 + $0x1b90] sm:$0xff]
        %v1124 = vld [vmem:[%s200 + $0x1b98] sm:$0xff]
        %v1125 = vld [vmem:[%s200 + $0x1ba0] sm:$0xff]
        %v1126 = vld [vmem:[%s200 + $0x1ba8] sm:$0xff]
        %v1127 = vld [vmem:[%s200 + $0x1bb0] sm:$0xff]
        %v1128 = vld [vmem:[%s200 + $0x1bb8] sm:$0xff]
        %v1129 = vld [vmem:[%s200 + $0x1bc0] sm:$0xff]
        %v1130 = vld [vmem:[%s200 + $0x1bc8] sm:$0xff]
        %v1131 = vld [vmem:[%s200 + $0x1bd0] sm:$0xff]
        %v1132 = vld [vmem:[%s200 + $0x1bd8] sm:$0xff]
        %v1133 = vld [vmem:[%s200 + $0x1be0] sm:$0xff]
        %v1134 = vld [vmem:[%s200 + $0x1be8] sm:$0xff]
        %v1135 = vld [vmem:[%s200 + $0x1bf0] sm:$0xff]
        %v1136 = vld [vmem:[%s200 + $0x1bf8] sm:$0xff]
        %v1137 = vld [vmem:[%s200 + $0x1c00] sm:$0xff]
        %v1138 = vld [vmem:[%s200 + $0x1c08] sm:$0xff]
        %v1139 = vld [vmem:[%s200 + $0x1c10] sm:$0xff]
        %v1140 = vld [vmem:[%s200 + $0x1c18] sm:$0xff]
        %v1141 = vld [vmem:[%s200 + $0x1c20] sm:$0xff]
        %v1142 = vld [vmem:[%s200 + $0x1c28] sm:$0xff]
        %v1143 = vld [vmem:[%s200 + $0x1c30] sm:$0xff]
        %v1144 = vld [vmem:[%s200 + $0x1c38] sm:$0xff]
        %v1145 = vld [vmem:[%s200 + $0x1c40] sm:$0xff]
        %v1146 = vld [vmem:[%s200 + $0x1c48] sm:$0xff]
        %v1147 = vld [vmem:[%s200 + $0x1c50] sm:$0xff]
        %v1148 = vld [vmem:[%s200 + $0x1c58] sm:$0xff]
        %v1149 = vld [vmem:[%s200 + $0x1c60] sm:$0xff]
        %v1150 = vld [vmem:[%s200 + $0x1c68] sm:$0xff]
        %v1151 = vld [vmem:[%s200 + $0x1c70] sm:$0xff]
        %v1152 = vld [vmem:[%s200 + $0x1c78] sm:$0xff]
        %v1153 = vld [vmem:[%s200 + $0x1c80] sm:$0xff]
        %v1154 = vld [vmem:[%s200 + $0x1c88] sm:$0xff]
        %v1155 = vld [vmem:[%s200 + $0x1c90] sm:$0xff]
        %v1156 = vld [vmem:[%s200 + $0x1c98] sm:$0xff]
        %v1157 = vld [vmem:[%s200 + $0x1ca0] sm:$0xff]
        %v1158 = vld [vmem:[%s200 + $0x1ca8] sm:$0xff]
        %v1159 = vld [vmem:[%s200 + $0x1cb0] sm:$0xff]
        %v1160 = vld [vmem:[%s200 + $0x1cb8] sm:$0xff]
        %v1161 = vld [vmem:[%s200 + $0x1cc0] sm:$0xff]
        %v1162 = vld [vmem:[%s200 + $0x1cc8] sm:$0xff]
        %v1163 = vld [vmem:[%s200 + $0x1cd0] sm:$0xff]
        %v1164 = vld [vmem:[%s200 + $0x1cd8] sm:$0xff]
        %v1165 = vld [vmem:[%s200 + $0x1ce0] sm:$0xff]
        %v1166 = vld [vmem:[%s200 + $0x1ce8] sm:$0xff]
        %v1167 = vld [vmem:[%s200 + $0x1cf0] sm:$0xff]
        %v1168 = vld [vmem:[%s200 + $0x1cf8] sm:$0xff]
        %v1169 = vld [vmem:[%s200 + $0x1d00] sm:$0xff]
        %v1170 = vld [vmem:[%s200 + $0x1d08] sm:$0xff]
        %v1171 = vld [vmem:[%s200 + $0x1d10] sm:$0xff]
        %v1172 = vld [vmem:[%s200 + $0x1d18] sm:$0xff]
        %v1173 = vld [vmem:[%s200 + $0x1d20] sm:$0xff]
        %v1174 = vld [vmem:[%s200 + $0x1d28] sm:$0xff]
        %v1175 = vld [vmem:[%s200 + $0x1d30] sm:$0xff]
        %v1176 = vld [vmem:[%s200 + $0x1d38] sm:$0xff]
        %v1177 = vld [vmem:[%s200 + $0x1d40] sm:$0xff]
        %v1178 = vld [vmem:[%s200 + $0x1d48] sm:$0xff]
        %v1179 = vld [vmem:[%s200 + $0x1d50] sm:$0xff]
        %v1180 = vld [vmem:[%s200 + $0x1d58] sm:$0xff]
        %v1181 = vld [vmem:[%s200 + $0x1d60] sm:$0xff]
        %v1182 = vld [vmem:[%s200 + $0x1d68] sm:$0xff]
        %v1183 = vld [vmem:[%s200 + $0x1d70] sm:$0xff]
        %v1184 = vld [vmem:[%s200 + $0x1d78] sm:$0xff]
        %v1185 = vld [vmem:[%s200 + $0x1d80] sm:$0xff]
        %v1186 = vld [vmem:[%s200 + $0x1d88] sm:$0xff]
        %v1187 = vld [vmem:[%s200 + $0x1d90] sm:$0xff]
        %v1188 = vld [vmem:[%s200 + $0x1d98] sm:$0xff]
        %v1189 = vld [vmem:[%s200 + $0x1da0] sm:$0xff]
        %v1190 = vld [vmem:[%s200 + $0x1da8] sm:$0xff]
        %v1191 = vld [vmem:[%s200 + $0x1db0] sm:$0xff]
        %v1192 = vld [vmem:[%s200 + $0x1db8] sm:$0xff]
        %v1193 = vld [vmem:[%s200 + $0x1dc0] sm:$0xff]
        %v1194 = vld [vmem:[%s200 + $0x1dc8] sm:$0xff]
        %v1195 = vld [vmem:[%s200 + $0x1dd0] sm:$0xff]
        %v1196 = vld [vmem:[%s200 + $0x1dd8] sm:$0xff]
        %v1197 = vld [vmem:[%s200 + $0x1de0] sm:$0xff]
        %v1198 = vld [vmem:[%s200 + $0x1de8] sm:$0xff]
        %v1199 = vld [vmem:[%s200 + $0x1df0] sm:$0xff]
        %v1200 = vld [vmem:[%s200 + $0x1df8] sm:$0xff]
        %v1201 = vld [vmem:[%s200 + $0x1e00] sm:$0xff]
        %v1202 = vld [vmem:[%s200 + $0x1e08] sm:$0xff]
        %v1203 = vld [vmem:[%s200 + $0x1e10] sm:$0xff]
        %v1204 = vld [vmem:[%s200 + $0x1e18] sm:$0xff]
        %v1205 = vld [vmem:[%s200 + $0x1e20] sm:$0xff]
        %v1206 = vld [vmem:[%s200 + $0x1e28] sm:$0xff]
        %v1207 = vld [vmem:[%s200 + $0x1e30] sm:$0xff]
        %v1208 = vld [vmem:[%s200 + $0x1e38] sm:$0xff]
        %v1209 = vld [vmem:[%s200 + $0x1e40] sm:$0xff]
        %v1210 = vld [vmem:[%s200 + $0x1e48] sm:$0xff]
        %v1211 = vld [vmem:[%s200 + $0x1e50] sm:$0xff]
        %v1212 = vld [vmem:[%s200 + $0x1e58] sm:$0xff]
        %v1213 = vld [vmem:[%s200 + $0x1e60] sm:$0xff]
        %v1214 = vld [vmem:[%s200 + $0x1e68] sm:$0xff]
        %v1215 = vld [vmem:[%s200 + $0x1e70] sm:$0xff]
        %v1216 = vld [vmem:[%s200 + $0x1e78] sm:$0xff]
        %v1217 = vld [vmem:[%s200 + $0x1e80] sm:$0xff]
        %v1218 = vld [vmem:[%s200 + $0x1e88] sm:$0xff]
        %v1219 = vld [vmem:[%s200 + $0x1e90] sm:$0xff]
        %v1220 = vld [vmem:[%s200 + $0x1e98] sm:$0xff]
        %v1221 = vld [vmem:[%s200 + $0x1ea0] sm:$0xff]
        %v1222 = vld [vmem:[%s200 + $0x1ea8] sm:$0xff]
        %v1223 = vld [vmem:[%s200 + $0x1eb0] sm:$0xff]
        %v1224 = vld [vmem:[%s200 + $0x1eb8] sm:$0xff]
        %v1225 = vld [vmem:[%s200 + $0x1ec0] sm:$0xff]
        %v1226 = vld [vmem:[%s200 + $0x1ec8] sm:$0xff]
        %v1227 = vld [vmem:[%s200 + $0x1ed0] sm:$0xff]
        %v1228 = vld [vmem:[%s200 + $0x1ed8] sm:$0xff]
        %v1229 = vld [vmem:[%s200 + $0x1ee0] sm:$0xff]
        %v1230 = vld [vmem:[%s200 + $0x1ee8] sm:$0xff]
        %v1231 = vld [vmem:[%s200 + $0x1ef0] sm:$0xff]
        %v1232 = vld [vmem:[%s200 + $0x1ef8] sm:$0xff]
        %v1233 = vld [vmem:[%s200 + $0x1f00] sm:$0xff]
        %v1234 = vld [vmem:[%s200 + $0x1f08] sm:$0xff]
        %v1235 = vld [vmem:[%s200 + $0x1f10] sm:$0xff]
        %v1236 = vld [vmem:[%s200 + $0x1f18] sm:$0xff]
        %v1237 = vld [vmem:[%s200 + $0x1f20] sm:$0xff]
        %v1238 = vld [vmem:[%s200 + $0x1f28] sm:$0xff]
        %v1239 = vld [vmem:[%s200 + $0x1f30] sm:$0xff]
        %v1240 = vld [vmem:[%s200 + $0x1f38] sm:$0xff]
        %v1241 = vld [vmem:[%s200 + $0x1f40] sm:$0xff]
        %v1242 = vld [vmem:[%s200 + $0x1f48] sm:$0xff]
        %v1243 = vld [vmem:[%s200 + $0x1f50] sm:$0xff]
        %v1244 = vld [vmem:[%s200 + $0x1f58] sm:$0xff]
        %v1245 = vld [vmem:[%s200 + $0x1f60] sm:$0xff]
        %v1246 = vld [vmem:[%s200 + $0x1f68] sm:$0xff]
        %v1247 = vld [vmem:[%s200 + $0x1f70] sm:$0xff]
        %v1248 = vld [vmem:[%s200 + $0x1f78] sm:$0xff]
        %v1249 = vld [vmem:[%s200 + $0x1f80] sm:$0xff]
        %v1250 = vld [vmem:[%s200 + $0x1f88] sm:$0xff]
        %v1251 = vld [vmem:[%s200 + $0x1f90] sm:$0xff]
        %v1252 = vld [vmem:[%s200 + $0x1f98] sm:$0xff]
        %v1253 = vld [vmem:[%s200 + $0x1fa0] sm:$0xff]
        %v1254 = vld [vmem:[%s200 + $0x1fa8] sm:$0xff]
        %v1255 = vld [vmem:[%s200 + $0x1fb0] sm:$0xff]
        %v1256 = vld [vmem:[%s200 + $0x1fb8] sm:$0xff]
        %v1257 = vld [vmem:[%s200 + $0x1fc0] sm:$0xff]
        %v1258 = vld [vmem:[%s200 + $0x1fc8] sm:$0xff]
        %v1259 = vld [vmem:[%s200 + $0x1fd0] sm:$0xff]
        %v1260 = vld [vmem:[%s200 + $0x1fd8] sm:$0xff]
        %v1261 = vld [vmem:[%s200 + $0x1fe0] sm:$0xff]
        %v1262 = vld [vmem:[%s200 + $0x1fe8] sm:$0xff]
        %v1263 = vld [vmem:[%s200 + $0x1ff0] sm:$0xff]
        %v1264 = vld [vmem:[%s200 + $0x1ff8] sm:$0xff]
        %v1265 = vld [vmem:[%s200 + $0x2000] sm:$0xff]
        %v1266 = vld [vmem:[%s200 + $0x2008] sm:$0xff]
        %v1267 = vld [vmem:[%s200 + $0x2010] sm:$0xff]
        %v1268 = vld [vmem:[%s200 + $0x2018] sm:$0xff]
        %v1269 = vld [vmem:[%s200 + $0x2020] sm:$0xff]
        %v1270 = vld [vmem:[%s200 + $0x2028] sm:$0xff]
        %v1271 = vld [vmem:[%s200 + $0x2030] sm:$0xff]
        %v1272 = vld [vmem:[%s200 + $0x2038] sm:$0xff]
        %v1273 = vld [vmem:[%s200 + $0x2040] sm:$0xff]
        %v1274 = vld [vmem:[%s200 + $0x2048] sm:$0xff]
        %v1275 = vld [vmem:[%s200 + $0x2050] sm:$0xff]
        %v1276 = vld [vmem:[%s200 + $0x2058] sm:$0xff]
        %v1277 = vld [vmem:[%s200 + $0x2060] sm:$0xff]
        %v1278 = vld [vmem:[%s200 + $0x2068] sm:$0xff]
        %v1279 = vld [vmem:[%s200 + $0x2070] sm:$0xff]
        %v1280 = vld [vmem:[%s200 + $0x2078] sm:$0xff]
        %v1281 = vld [vmem:[%s200 + $0x2080] sm:$0xff]
        %v1282 = vld [vmem:[%s200 + $0x2088] sm:$0xff]
        %v1283 = vld [vmem:[%s200 + $0x2090] sm:$0xff]
        %v1284 = vld [vmem:[%s200 + $0x2098] sm:$0xff]
        %v1285 = vld [vmem:[%s200 + $0x20a0] sm:$0xff]
        %v1286 = vld [vmem:[%s200 + $0x20a8] sm:$0xff]
        %v1287 = vld [vmem:[%s200 + $0x20b0] sm:$0xff]
        %v1288 = vld [vmem:[%s200 + $0x20b8] sm:$0xff]
        %v1289 = vld [vmem:[%s200 + $0x20c0] sm:$0xff]
        %v1290 = vld [vmem:[%s200 + $0x20c8] sm:$0xff]
        %v1291 = vld [vmem:[%s200 + $0x20d0] sm:$0xff]
        %v1292 = vld [vmem:[%s200 + $0x20d8] sm:$0xff]
        %v1293 = vld [vmem:[%s200 + $0x20e0] sm:$0xff]
        %v1294 = vld [vmem:[%s200 + $0x20e8] sm:$0xff]
        %v1295 = vld [vmem:[%s200 + $0x20f0] sm:$0xff]
        %v1296 = vld [vmem:[%s200 + $0x20f8] sm:$0xff]
        %v1297 = vld [vmem:[%s200 + $0x2100] sm:$0xff]
        %v1298 = vld [vmem:[%s200 + $0x2108] sm:$0xff]
        %v1299 = vld [vmem:[%s200 + $0x2110] sm:$0xff]
        %v1300 = vld [vmem:[%s200 + $0x2118] sm:$0xff]
        %v1301 = vld [vmem:[%s200 + $0x2120] sm:$0xff]
        %v1302 = vld [vmem:[%s200 + $0x2128] sm:$0xff]
        %v1303 = vld [vmem:[%s200 + $0x2130] sm:$0xff]
        %v1304 = vld [vmem:[%s200 + $0x2138] sm:$0xff]
        %v1305 = vld [vmem:[%s200 + $0x2140] sm:$0xff]
        %v1306 = vld [vmem:[%s200 + $0x2148] sm:$0xff]
        %v1307 = vld [vmem:[%s200 + $0x2150] sm:$0xff]
        %v1308 = vld [vmem:[%s200 + $0x2158] sm:$0xff]
        %v1309 = vld [vmem:[%s200 + $0x2160] sm:$0xff]
        %v1310 = vld [vmem:[%s200 + $0x2168] sm:$0xff]
        %v1311 = vld [vmem:[%s200 + $0x2170] sm:$0xff]
        %v1312 = vld [vmem:[%s200 + $0x2178] sm:$0xff]
        %v1313 = vld [vmem:[%s200 + $0x2180] sm:$0xff]
        %v1314 = vld [vmem:[%s200 + $0x2188] sm:$0xff]
        %v1315 = vld [vmem:[%s200 + $0x2190] sm:$0xff]
        %v1316 = vld [vmem:[%s200 + $0x2198] sm:$0xff]
        %v1317 = vld [vmem:[%s200 + $0x21a0] sm:$0xff]
        %v1318 = vld [vmem:[%s200 + $0x21a8] sm:$0xff]
        %v1319 = vld [vmem:[%s200 + $0x21b0] sm:$0xff]
        %v1320 = vld [vmem:[%s200 + $0x21b8] sm:$0xff]
        %v1321 = vld [vmem:[%s200 + $0x21c0] sm:$0xff]
        %v1322 = vld [vmem:[%s200 + $0x21c8] sm:$0xff]
        %v1323 = vld [vmem:[%s200 + $0x21d0] sm:$0xff]
        %v1324 = vld [vmem:[%s200 + $0x21d8] sm:$0xff]
        %v1325 = vld [vmem:[%s200 + $0x21e0] sm:$0xff]
        %v1326 = vld [vmem:[%s200 + $0x21e8] sm:$0xff]
        %v1327 = vld [vmem:[%s200 + $0x21f0] sm:$0xff]
        %v1328 = vld [vmem:[%s200 + $0x21f8] sm:$0xff]
        %v1329 = vld [vmem:[%s200 + $0x2200] sm:$0xff]
        %v1330 = vld [vmem:[%s200 + $0x2208] sm:$0xff]
        %v1331 = vld [vmem:[%s200 + $0x2210] sm:$0xff]
        %v1332 = vld [vmem:[%s200 + $0x2218] sm:$0xff]
        %v1333 = vld [vmem:[%s200 + $0x2220] sm:$0xff]
        %v1334 = vld [vmem:[%s200 + $0x2228] sm:$0xff]
        %v1335 = vld [vmem:[%s200 + $0x2230] sm:$0xff]
        %v1336 = vld [vmem:[%s200 + $0x2238] sm:$0xff]
        %v1337 = vld [vmem:[%s200 + $0x2240] sm:$0xff]
        %v1338 = vld [vmem:[%s200 + $0x2248] sm:$0xff]
        %v1339 = vld [vmem:[%s200 + $0x2250] sm:$0xff]
        %v1340 = vld [vmem:[%s200 + $0x2258] sm:$0xff]
        %v1341 = vld [vmem:[%s200 + $0x2260] sm:$0xff]
        %v1342 = vld [vmem:[%s200 + $0x2268] sm:$0xff]
        %v1343 = vld [vmem:[%s200 + $0x2270] sm:$0xff]
        %v1344 = vld [vmem:[%s200 + $0x2278] sm:$0xff]
        %v1345 = vld [vmem:[%s200 + $0x2280] sm:$0xff]
        %v1346 = vld [vmem:[%s200 + $0x2288] sm:$0xff]
        %v1347 = vld [vmem:[%s200 + $0x2290] sm:$0xff]
        %v1348 = vld [vmem:[%s200 + $0x2298] sm:$0xff]
        %v1349 = vld [vmem:[%s200 + $0x22a0] sm:$0xff]
        %v1350 = vld [vmem:[%s200 + $0x22a8] sm:$0xff]
        %v1351 = vld [vmem:[%s200 + $0x22b0] sm:$0xff]
        %v1352 = vld [vmem:[%s200 + $0x22b8] sm:$0xff]
        %v1353 = vld [vmem:[%s200 + $0x22c0] sm:$0xff]
        %v1354 = vld [vmem:[%s200 + $0x22c8] sm:$0xff]
        %v1355 = vld [vmem:[%s200 + $0x22d0] sm:$0xff]
        %v1356 = vld [vmem:[%s200 + $0x22d8] sm:$0xff]
        %v1357 = vld [vmem:[%s200 + $0x22e0] sm:$0xff]
        %v1358 = vld [vmem:[%s200 + $0x22e8] sm:$0xff]
        %v1359 = vld [vmem:[%s200 + $0x22f0] sm:$0xff]
        %v1360 = vld [vmem:[%s200 + $0x22f8] sm:$0xff]
        %v1361 = vld [vmem:[%s200 + $0x2300] sm:$0xff]
        %v1362 = vld [vmem:[%s200 + $0x2308] sm:$0xff]
        %v1363 = vld [vmem:[%s200 + $0x2310] sm:$0xff]
        %v1364 = vld [vmem:[%s200 + $0x2318] sm:$0xff]
        %v1365 = vld [vmem:[%s200 + $0x2320] sm:$0xff]
        %v1366 = vld [vmem:[%s200 + $0x2328] sm:$0xff]
        %v1367 = vld [vmem:[%s200 + $0x2330] sm:$0xff]
        %v1368 = vld [vmem:[%s200 + $0x2338] sm:$0xff]
        %v1369 = vld [vmem:[%s200 + $0x2340] sm:$0xff]
        %v1370 = vld [vmem:[%s200 + $0x2348] sm:$0xff]
        %v1371 = vld [vmem:[%s200 + $0x2350] sm:$0xff]
        %v1372 = vld [vmem:[%s200 + $0x2358] sm:$0xff]
        %v1373 = vld [vmem:[%s200 + $0x2360] sm:$0xff]
        %v1374 = vld [vmem:[%s200 + $0x2368] sm:$0xff]
        %v1375 = vld [vmem:[%s200 + $0x2370] sm:$0xff]
        %v1376 = vld [vmem:[%s200 + $0x2378] sm:$0xff]
        %v1377 = vld [vmem:[%s200 + $0x2380] sm:$0xff]
        %v1378 = vld [vmem:[%s200 + $0x2388] sm:$0xff]
        %v1379 = vld [vmem:[%s200 + $0x2390] sm:$0xff]
        %v1380 = vld [vmem:[%s200 + $0x2398] sm:$0xff]
        %v1381 = vld [vmem:[%s200 + $0x23a0] sm:$0xff]
        %v1382 = vld [vmem:[%s200 + $0x23a8] sm:$0xff]
        %v1383 = vld [vmem:[%s200 + $0x23b0] sm:$0xff]
        %v1384 = vld [vmem:[%s200 + $0x23b8] sm:$0xff]
        %v1385 = vld [vmem:[%s200 + $0x23c0] sm:$0xff]
        %v1386 = vld [vmem:[%s200 + $0x23c8] sm:$0xff]
        %v1387 = vld [vmem:[%s200 + $0x23d0] sm:$0xff]
        %v1388 = vld [vmem:[%s200 + $0x23d8] sm:$0xff]
        %v1389 = vld [vmem:[%s200 + $0x23e0] sm:$0xff]
        %v1390 = vld [vmem:[%s200 + $0x23e8] sm:$0xff]
        %v1391 = vld [vmem:[%s200 + $0x23f0] sm:$0xff]
        %v1392 = vld [vmem:[%s200 + $0x23f8] sm:$0xff]
        %v1393 = vld [vmem:[%s200 + $0x2400] sm:$0xff]
        %v1394 = vld [vmem:[%s200 + $0x2408] sm:$0xff]
        %v1395 = vld [vmem:[%s200 + $0x2410] sm:$0xff]
        %v1396 = vld [vmem:[%s200 + $0x2418] sm:$0xff]
        %v1397 = vld [vmem:[%s200 + $0x2420] sm:$0xff]
        %v1398 = vld [vmem:[%s200 + $0x2428] sm:$0xff]
        %v1399 = vld [vmem:[%s200 + $0x2430] sm:$0xff]
        %v1400 = vld [vmem:[%s200 + $0x2438] sm:$0xff]
        %v1401 = vld [vmem:[%s200 + $0x2440] sm:$0xff]
        %v1402 = vld [vmem:[%s200 + $0x2448] sm:$0xff]
        %v1403 = vld [vmem:[%s200 + $0x2450] sm:$0xff]
        %v1404 = vld [vmem:[%s200 + $0x2458] sm:$0xff]
        %v1405 = vld [vmem:[%s200 + $0x2460] sm:$0xff]
        %v1406 = vld [vmem:[%s200 + $0x2468] sm:$0xff]
        %v1407 = vld [vmem:[%s200 + $0x2470] sm:$0xff]
        %v1408 = vld [vmem:[%s200 + $0x2478] sm:$0xff]
        %v1409 = vld [vmem:[%s200 + $0x2480] sm:$0xff]
        %v1410 = vld [vmem:[%s200 + $0x2488] sm:$0xff]
        %v1411 = vld [vmem:[%s200 + $0x2490] sm:$0xff]
        %v1412 = vld [vmem:[%s200 + $0x2498] sm:$0xff]
        %v1413 = vld [vmem:[%s200 + $0x24a0] sm:$0xff]
        %v1414 = vld [vmem:[%s200 + $0x24a8] sm:$0xff]
        %v1415 = vld [vmem:[%s200 + $0x24b0] sm:$0xff]
        %v1416 = vld [vmem:[%s200 + $0x24b8] sm:$0xff]
        %v1417 = vld [vmem:[%s200 + $0x24c0] sm:$0xff]
        %v1418 = vld [vmem:[%s200 + $0x24c8] sm:$0xff]
        %v1419 = vld [vmem:[%s200 + $0x24d0] sm:$0xff]
        %v1420 = vld [vmem:[%s200 + $0x24d8] sm:$0xff]
        %v1421 = vld [vmem:[%s200 + $0x24e0] sm:$0xff]
        %v1422 = vld [vmem:[%s200 + $0x24e8] sm:$0xff]
        %v1423 = vld [vmem:[%s200 + $0x24f0] sm:$0xff]
        %v1424 = vld [vmem:[%s200 + $0x24f8] sm:$0xff]
        %v1425 = vld [vmem:[%s200 + $0x2500] sm:$0xff]
        %v1426 = vld [vmem:[%s200 + $0x2508] sm:$0xff]
        %v1427 = vld [vmem:[%s200 + $0x2510] sm:$0xff]
        %v1428 = vld [vmem:[%s200 + $0x2518] sm:$0xff]
        %v1429 = vld [vmem:[%s200 + $0x2520] sm:$0xff]
        %v1430 = vld [vmem:[%s200 + $0x2528] sm:$0xff]
        %v1431 = vld [vmem:[%s200 + $0x2530] sm:$0xff]
        %v1432 = vld [vmem:[%s200 + $0x2538] sm:$0xff]
        %v1433 = vld [vmem:[%s200 + $0x2540] sm:$0xff]
        %v1434 = vld [vmem:[%s200 + $0x2548] sm:$0xff]
        %v1435 = vld [vmem:[%s200 + $0x2550] sm:$0xff]
        %v1436 = vld [vmem:[%s200 + $0x2558] sm:$0xff]
        %v1437 = vld [vmem:[%s200 + $0x2560] sm:$0xff]
        %v1438 = vld [vmem:[%s200 + $0x2568] sm:$0xff]
        %v1439 = vld [vmem:[%s200 + $0x2570] sm:$0xff]
        %v1440 = vld [vmem:[%s200 + $0x2578] sm:$0xff]
        %v1441 = vld [vmem:[%s200 + $0x2580] sm:$0xff]
        %v1442 = vld [vmem:[%s200 + $0x2588] sm:$0xff]
        %v1443 = vld [vmem:[%s200 + $0x2590] sm:$0xff]
        %v1444 = vld [vmem:[%s200 + $0x2598] sm:$0xff]
        %v1445 = vld [vmem:[%s200 + $0x25a0] sm:$0xff]
        %v1446 = vld [vmem:[%s200 + $0x25a8] sm:$0xff]
        %v1447 = vld [vmem:[%s200 + $0x25b0] sm:$0xff]
        %v1448 = vld [vmem:[%s200 + $0x25b8] sm:$0xff]
        %v1449 = vld [vmem:[%s200 + $0x25c0] sm:$0xff]
        %v1450 = vld [vmem:[%s200 + $0x25c8] sm:$0xff]
        %v1451 = vld [vmem:[%s200 + $0x25d0] sm:$0xff]
        %v1452 = vld [vmem:[%s200 + $0x25d8] sm:$0xff]
        %v1453 = vld [vmem:[%s200 + $0x25e0] sm:$0xff]
        %v1454 = vld [vmem:[%s200 + $0x25e8] sm:$0xff]
        %v1455 = vld [vmem:[%s200 + $0x25f0] sm:$0xff]
        %v1456 = vld [vmem:[%s200 + $0x25f8] sm:$0xff]
        %v1457 = vld [vmem:[%s200 + $0x2600] sm:$0xff]
        %v1458 = vld [vmem:[%s200 + $0x2608] sm:$0xff]
        %v1459 = vld [vmem:[%s200 + $0x2610] sm:$0xff]
        %v1460 = vld [vmem:[%s200 + $0x2618] sm:$0xff]
        %v1461 = vld [vmem:[%s200 + $0x2620] sm:$0xff]
        %v1462 = vld [vmem:[%s200 + $0x2628] sm:$0xff]
        %v1463 = vld [vmem:[%s200 + $0x2630] sm:$0xff]
        %v1464 = vld [vmem:[%s200 + $0x2638] sm:$0xff]
        %v1465 = vld [vmem:[%s200 + $0x2640] sm:$0xff]
        %v1466 = vld [vmem:[%s200 + $0x2648] sm:$0xff]
        %v1467 = vld [vmem:[%s200 + $0x2650] sm:$0xff]
        %v1468 = vld [vmem:[%s200 + $0x2658] sm:$0xff]
        %v1469 = vld [vmem:[%s200 + $0x2660] sm:$0xff]
        %v1470 = vld [vmem:[%s200 + $0x2668] sm:$0xff]
        %v1471 = vld [vmem:[%s200 + $0x2670] sm:$0xff]
        %v1472 = vld [vmem:[%s200 + $0x2678] sm:$0xff]
        %v1473 = vld [vmem:[%s200 + $0x2680] sm:$0xff]
        %v1474 = vld [vmem:[%s200 + $0x2688] sm:$0xff]
        %v1475 = vld [vmem:[%s200 + $0x2690] sm:$0xff]
        %v1476 = vld [vmem:[%s200 + $0x2698] sm:$0xff]
        %v1477 = vld [vmem:[%s200 + $0x26a0] sm:$0xff]
        %v1478 = vld [vmem:[%s200 + $0x26a8] sm:$0xff]
        %v1479 = vld [vmem:[%s200 + $0x26b0] sm:$0xff]
        %v1480 = vld [vmem:[%s200 + $0x26b8] sm:$0xff]
        %v1481 = vld [vmem:[%s200 + $0x26c0] sm:$0xff]
        %v1482 = vld [vmem:[%s200 + $0x26c8] sm:$0xff]
        %v1483 = vld [vmem:[%s200 + $0x26d0] sm:$0xff]
        %v1484 = vld [vmem:[%s200 + $0x26d8] sm:$0xff]
        %v1485 = vld [vmem:[%s200 + $0x26e0] sm:$0xff]
        %v1486 = vld [vmem:[%s200 + $0x26e8] sm:$0xff]
        %v1487 = vld [vmem:[%s200 + $0x26f0] sm:$0xff]
        %v1488 = vld [vmem:[%s200 + $0x26f8] sm:$0xff]
        %v1489 = vld [vmem:[%s200 + $0x2700] sm:$0x1]
        %v1490 = vld [vmem:[%s200 + $0x2708] sm:$0x1]
        %v1491 = vld [vmem:[%s200 + $0x2710] sm:$0x1]
        %v1492 = vld [vmem:[%s200 + $0x2718] sm:$0x1]
        %v1493 = vld [vmem:[%s200 + $0x2720] sm:$0x1]
        %v1494 = vld [vmem:[%s200 + $0x2728] sm:$0x1]
        %v1495 = vld [vmem:[%s200 + $0x2730] sm:$0x1]
        %v1496 = vld [vmem:[%s200 + $0x2738] sm:$0x1]
        %v1497 = vld [vmem:[%s200 + $0x2740] sm:$0x1]
        %v1498 = vld [vmem:[%s200 + $0x2748] sm:$0x1]
        %v1499 = vld [vmem:[%s200 + $0x2750] sm:$0x1]
        %v1500 = vld [vmem:[%s200 + $0x2758] sm:$0x1]
        %v1501 = vld [vmem:[%s200 + $0x2760] sm:$0x1]
        %v1502 = vld [vmem:[%s200 + $0x2768] sm:$0x1]
        %v1503 = vld [vmem:[%s200 + $0x2770] sm:$0x1]
        %v1504 = vld [vmem:[%s200 + $0x2778] sm:$0x1]
        %v1505 = vld [vmem:[%s200 + $0x2780] sm:$0x1]
        %v1506 = vld [vmem:[%s200 + $0x2788] sm:$0x1]
        %v1507 = vld [vmem:[%s200 + $0x2790] sm:$0x1]
        %v1508 = vld [vmem:[%s200 + $0x2798] sm:$0x1]
        %v1509 = vld [vmem:[%s200 + $0x27a0] sm:$0x1]
        %v1510 = vld [vmem:[%s200 + $0x27a8] sm:$0x1]
        %v1511 = vld [vmem:[%s200 + $0x27b0] sm:$0x1]
        %v1512 = vld [vmem:[%s200 + $0x27b8] sm:$0x1]
        %v1513 = vld [vmem:[%s200 + $0x27c0] sm:$0x1]
        %v1514 = vld [vmem:[%s200 + $0x27c8] sm:$0x1]
        %v1515 = vld [vmem:[%s200 + $0x27d0] sm:$0x1]
        %v1516 = vld [vmem:[%s200 + $0x27d8] sm:$0x1]
        %v1517 = vld [vmem:[%s200 + $0x27e0] sm:$0x1]
        %v1518 = vld [vmem:[%s200 + $0x27e8] sm:$0x1]
        %v1519 = vld [vmem:[%s200 + $0x27f0] sm:$0x1]
        %v1520 = vld [vmem:[%s200 + $0x27f8] sm:$0x1]
        %v1521 = vld [vmem:[%s209] sm:$0xff]
        %v1522 = vld [vmem:[%s209 + $0x8] sm:$0xff]
        %v1523 = vld [vmem:[%s209 + $0x10] sm:$0xff]
        %v1524 = vld [vmem:[%s209 + $0x18] sm:$0xff]
        %v1529 = vlaneseq
        %v1530 = vshrl.u32 %v1529, 7
        %v1531 = vsub.s32 0, %v1530
        %v1532 = vrot.slane %v1521, %v1531
        %v1533 = vlaneseq
        %v1534 = vshrl.u32 %v1533, 7
        %v1535 = vsub.s32 1, %v1534
        %v1536 = vrot.slane %v1521, %v1535
        %v1537 = vlaneseq
        %v1538 = vshrl.u32 %v1537, 7
        %v1539 = vsub.s32 2, %v1538
        %v1540 = vrot.slane %v1521, %v1539
        %v1541 = vlaneseq
        %v1542 = vshrl.u32 %v1541, 7
        %v1543 = vsub.s32 3, %v1542
        %v1544 = vrot.slane %v1521, %v1543
        %v1545 = vlaneseq
        %v1546 = vshrl.u32 %v1545, 7
        %v1547 = vsub.s32 4, %v1546
        %v1548 = vrot.slane %v1521, %v1547
        %v1549 = vlaneseq
        %v1550 = vshrl.u32 %v1549, 7
        %v1551 = vsub.s32 5, %v1550
        %v1552 = vrot.slane %v1521, %v1551
        %v1553 = vlaneseq
        %v1554 = vshrl.u32 %v1553, 7
        %v1555 = vsub.s32 6, %v1554
        %v1556 = vrot.slane %v1521, %v1555
        %v1557 = vlaneseq
        %v1558 = vshrl.u32 %v1557, 7
        %v1559 = vsub.s32 7, %v1558
        %v1560 = vrot.slane %v1521, %v1559
        %v1561 = vlaneseq
        %v1562 = vshrl.u32 %v1561, 7
        %v1563 = vsub.s32 0, %v1562
        %v1564 = vrot.slane %v1522, %v1563
        %v1565 = vlaneseq
        %v1566 = vshrl.u32 %v1565, 7
        %v1567 = vsub.s32 1, %v1566
        %v1568 = vrot.slane %v1522, %v1567
        %v1569 = vlaneseq
        %v1570 = vshrl.u32 %v1569, 7
        %v1571 = vsub.s32 2, %v1570
        %v1572 = vrot.slane %v1522, %v1571
        %v1573 = vlaneseq
        %v1574 = vshrl.u32 %v1573, 7
        %v1575 = vsub.s32 3, %v1574
        %v1576 = vrot.slane %v1522, %v1575
        %v1577 = vlaneseq
        %v1578 = vshrl.u32 %v1577, 7
        %v1579 = vsub.s32 4, %v1578
        %v1580 = vrot.slane %v1522, %v1579
        %v1581 = vlaneseq
        %v1582 = vshrl.u32 %v1581, 7
        %v1583 = vsub.s32 5, %v1582
        %v1584 = vrot.slane %v1522, %v1583
        %v1585 = vlaneseq
        %v1586 = vshrl.u32 %v1585, 7
        %v1587 = vsub.s32 6, %v1586
        %v1588 = vrot.slane %v1522, %v1587
        %v1589 = vlaneseq
        %v1590 = vshrl.u32 %v1589, 7
        %v1591 = vsub.s32 7, %v1590
        %v1592 = vrot.slane %v1522, %v1591
        %v1593 = vlaneseq
        %v1594 = vshrl.u32 %v1593, 7
        %v1595 = vsub.s32 0, %v1594
        %v1596 = vrot.slane %v1523, %v1595
        %v1597 = vlaneseq
        %v1598 = vshrl.u32 %v1597, 7
        %v1599 = vsub.s32 1, %v1598
        %v1600 = vrot.slane %v1523, %v1599
        %v1601 = vlaneseq
        %v1602 = vshrl.u32 %v1601, 7
        %v1603 = vsub.s32 2, %v1602
        %v1604 = vrot.slane %v1523, %v1603
        %v1605 = vlaneseq
        %v1606 = vshrl.u32 %v1605, 7
        %v1607 = vsub.s32 3, %v1606
        %v1608 = vrot.slane %v1523, %v1607
        %v1609 = vlaneseq
        %v1610 = vshrl.u32 %v1609, 7
        %v1611 = vsub.s32 4, %v1610
        %v1612 = vrot.slane %v1523, %v1611
        %v1613 = vlaneseq
        %v1614 = vshrl.u32 %v1613, 7
        %v1615 = vsub.s32 5, %v1614
        %v1616 = vrot.slane %v1523, %v1615
        %v1617 = vlaneseq
        %v1618 = vshrl.u32 %v1617, 7
        %v1619 = vsub.s32 6, %v1618
        %v1620 = vrot.slane %v1523, %v1619
        %v1621 = vlaneseq
        %v1622 = vshrl.u32 %v1621, 7
        %v1623 = vsub.s32 7, %v1622
        %v1624 = vrot.slane %v1523, %v1623
        %v1625 = vlaneseq
        %v1626 = vshrl.u32 %v1625, 7
        %v1627 = vsub.s32 0, %v1626
        %v1628 = vrot.slane %v1524, %v1627
        %v1629 = vlaneseq
        %v1630 = vshrl.u32 %v1629, 7
        %v1631 = vsub.s32 1, %v1630
        %v1632 = vrot.slane %v1524, %v1631
        %v1633 = vlaneseq
        %v1634 = vshrl.u32 %v1633, 7
        %v1635 = vsub.s32 2, %v1634
        %v1636 = vrot.slane %v1524, %v1635
        %v1637 = vlaneseq
        %v1638 = vshrl.u32 %v1637, 7
        %v1639 = vsub.s32 3, %v1638
        %v1640 = vrot.slane %v1524, %v1639
        %v1641 = vlaneseq
        %v1642 = vshrl.u32 %v1641, 7
        %v1643 = vsub.s32 4, %v1642
        %v1644 = vrot.slane %v1524, %v1643
        %v1645 = vlaneseq
        %v1646 = vshrl.u32 %v1645, 7
        %v1647 = vsub.s32 5, %v1646
        %v1648 = vrot.slane %v1524, %v1647
        %v1649 = vlaneseq
        %v1650 = vshrl.u32 %v1649, 7
        %v1651 = vsub.s32 6, %v1650
        %v1652 = vrot.slane %v1524, %v1651
        %v1653 = vlaneseq
        %v1654 = vshrl.u32 %v1653, 7
        %v1655 = vsub.s32 7, %v1654
        %v1656 = vrot.slane %v1524, %v1655
        %v1690 = vcombine.high %v240, %v240
        %v1692 = vunpack.c.l.s4 1983009808
        %v1693 = vunpack.c.0.s8 %v1692
        %v1694 = vlaneseq
        %v1695 = vshrl.u32 %v1694, 7
        %v1696 = vsub.s32 %v1693, %v1695
        %v1697 = vrot.slane %v240, %v1696
        %v1699 = vunpack.c.l.s4 1983009808
        %v1700 = vunpack.c.0.s8 %v1699
        %v1701 = vlaneseq
        %v1702 = vshrl.u32 %v1701, 7
        %v1703 = vsub.s32 %v1700, %v1702
        %v1704 = vrot.slane %v1690, %v1703
        %v1705 = vcombine.high %v1697, %v1697
        %vm1708 = vcmask 465920
        %v1709 = vsel %vm1708, %v1704, 0
        %vm1711 = vcmask 1040384
        %v1713 = vsel %vm1711, %v1489, 0
        %v1716 = vsel %vm1711, %v1490, 0
        %v1719 = vsel %vm1711, %v1491, 0
        %v1722 = vsel %vm1711, %v1492, 0
        %v1725 = vsel %vm1711, %v1493, 0
        %v1728 = vsel %vm1711, %v1494, 0
        %v1731 = vsel %vm1711, %v1495, 0
        %v1734 = vsel %vm1711, %v1496, 0
        %v1737 = vsel %vm1711, %v1497, 0
        %v1740 = vsel %vm1711, %v1498, 0
        %v1743 = vsel %vm1711, %v1499, 0
        %v1746 = vsel %vm1711, %v1500, 0
        %v1749 = vsel %vm1711, %v1501, 0
        %v1752 = vsel %vm1711, %v1502, 0
        %v1755 = vsel %vm1711, %v1503, 0
        %v1758 = vsel %vm1711, %v1504, 0
        %v1761 = vsel %vm1711, %v1505, 0
        %v1764 = vsel %vm1711, %v1506, 0
        %v1767 = vsel %vm1711, %v1507, 0
        %v1770 = vsel %vm1711, %v1508, 0
        %v1773 = vsel %vm1711, %v1509, 0
        %v1776 = vsel %vm1711, %v1510, 0
        %v1779 = vsel %vm1711, %v1511, 0
        %v1782 = vsel %vm1711, %v1512, 0
        %v1785 = vsel %vm1711, %v1513, 0
        %v1788 = vsel %vm1711, %v1514, 0
        %v1791 = vsel %vm1711, %v1515, 0
        %v1794 = vsel %vm1711, %v1516, 0
        %v1797 = vsel %vm1711, %v1517, 0
        %v1800 = vsel %vm1711, %v1518, 0
        %v1803 = vsel %vm1711, %v1519, 0
        %v1806 = vsel %vm1711, %v1520, 0
        %1808 = vmatprep.subr.mxu0 %v242
        %1809 = vmatpush1.msra.mxu0 %v241
        %1810 = vmatprep.subr.mxu0 %v274
        %1811 = vmatpush1.msra.mxu0 %v273
        %1812 = vmatprep.subr.mxu0 %v306
        %1813 = vmatpush1.msra.mxu0 %v305
        %1814 = vmatprep.subr.mxu0 %v338
        %1815 = vmatpush1.msra.mxu0 %v337
        %1816 = vmatprep.subr.mxu0 %v370
        %1817 = vmatpush1.msra.mxu0 %v369
        %1818 = vmatprep.subr.mxu0 %v402
        %1819 = vmatpush1.msra.mxu0 %v401
        %1820 = vmatprep.subr.mxu0 %v434
        %1821 = vmatpush1.msra.mxu0 %v433
        %1822 = vmatprep.subr.mxu0 %v466
        %1823 = vmatpush1.msra.mxu0 %v465
        %1824 = vmatprep.subr.mxu0 %v498
        %1825 = vmatpush1.msra.mxu0 %v497
        %1826 = vmatprep.subr.mxu0 %v530
        %1827 = vmatpush1.msra.mxu0 %v529
        %1828 = vmatprep.subr.mxu0 %v562
        %1829 = vmatpush1.msra.mxu0 %v561
        %1830 = vmatprep.subr.mxu0 %v594
        %1831 = vmatpush1.msra.mxu0 %v593
        %1832 = vmatprep.subr.mxu0 %v626
        %1833 = vmatpush1.msra.mxu0 %v625
        %1834 = vmatprep.subr.mxu0 %v658
        %1835 = vmatpush1.msra.mxu0 %v657
        %1836 = vmatprep.subr.mxu0 %v690
        %1837 = vmatpush1.msra.mxu0 %v689
        %1838 = vmatprep.subr.mxu0 %v722
        %1839 = vmatpush1.msra.mxu0 %v721
        %1840 = vmatprep.subr.mxu0 %v754
        %1841 = vmatpush1.msra.mxu0 %v753
        %1842 = vmatprep.subr.mxu0 %v786
        %1843 = vmatpush1.msra.mxu0 %v785
        %1844 = vmatprep.subr.mxu0 %v818
        %1845 = vmatpush1.msra.mxu0 %v817
        %1846 = vmatprep.subr.mxu0 %v850
        %1847 = vmatpush1.msra.mxu0 %v849
        %1848 = vmatprep.subr.mxu0 %v882
        %1849 = vmatpush1.msra.mxu0 %v881
        %1850 = vmatprep.subr.mxu0 %v914
        %1851 = vmatpush1.msra.mxu0 %v913
        %1852 = vmatprep.subr.mxu0 %v946
        %1853 = vmatpush1.msra.mxu0 %v945
        %1854 = vmatprep.subr.mxu0 %v978
        %1855 = vmatpush1.msra.mxu0 %v977
        %1856 = vmatprep.subr.mxu0 %v1010
        %1857 = vmatpush1.msra.mxu0 %v1009
        %1858 = vmatprep.subr.mxu0 %v1042
        %1859 = vmatpush1.msra.mxu0 %v1041
        %1860 = vmatprep.subr.mxu0 %v1074
        %1861 = vmatpush1.msra.mxu0 %v1073
        %1862 = vmatprep.subr.mxu0 %v1106
        %1863 = vmatpush1.msra.mxu0 %v1105
        %1864 = vmatprep.subr.mxu0 %v1138
        %1865 = vmatpush1.msra.mxu0 %v1137
        %1866 = vmatprep.subr.mxu0 %v1170
        %1867 = vmatpush1.msra.mxu0 %v1169
        %1868 = vmatprep.subr.mxu0 %v1202
        %1869 = vmatpush1.msra.mxu0 %v1201
        %1870 = vmatprep.subr.mxu0 %v1234
        %1871 = vmatpush1.msra.mxu0 %v1233
        %1872 = vmatprep.mubr.f32.mxu0 %v1705
        %1873 = vmatmul.mubr.f32.gmra.mrb[0].mxu0 %v1697
        %v1874 = vpop.f32.mrb[0].mxu0
        %v1875 = vadd.f32 %v1532, %v1874
        %v1876 = vpop.f32.mrb[0].mxu0
        %v1877 = vadd.f32 %v1536, %v1876
        %1878 = vdwg.mxu0
        %1879 = vmatprep.subr.mxu0 %v1266
        %1880 = vmatpush1.msra.mxu0 %v1265
        %1881 = vmatprep.subr.mxu0 %v1298
        %1882 = vmatpush1.msra.mxu0 %v1297
        %1883 = vmatprep.subr.mxu0 %v1330
        %1884 = vmatpush1.msra.mxu0 %v1329
        %1885 = vmatprep.subr.mxu0 %v1362
        %1886 = vmatpush1.msra.mxu0 %v1361
        %1887 = vmatprep.subr.mxu0 %v1394
        %1888 = vmatpush1.msra.mxu0 %v1393
        %1889 = vmatprep.subr.mxu0 %v1426
        %1890 = vmatpush1.msra.mxu0 %v1425
        %1891 = vmatprep.subr.mxu0 %v1458
        %1892 = vmatpush1.msra.mxu0 %v1457
        %1893 = vmatprep.subr.mxu0 %v1716
        %1894 = vmatpush1.msra.mxu0 %v1713
        %1895 = vmatprep.subr.mxu0 0.0
        %1896 = vmatpush1.msra.mxu0 0.0
        %1897 = vmatprep.subr.mxu0 0.0
        %1898 = vmatpush1.msra.mxu0 0.0
        %1899 = vmatprep.subr.mxu0 0.0
        %1900 = vmatpush1.msra.mxu0 0.0
        %1901 = vmatprep.subr.mxu0 0.0
        %1902 = vmatpush1.msra.mxu0 0.0
        %1903 = vmatprep.subr.mxu0 0.0
        %1904 = vmatpush1.msra.mxu0 0.0
        %1905 = vmatprep.subr.mxu0 0.0
        %1906 = vmatpush1.msra.mxu0 0.0
        %1907 = vmatprep.subr.mxu0 0.0
        %1908 = vmatpush1.msra.mxu0 0.0
        %1909 = vmatprep.subr.mxu0 0.0
        %1910 = vmatpush1.msra.mxu0 0.0
        %1911 = vmatprep.subr.mxu0 0.0
        %1912 = vmatpush1.msra.mxu0 0.0
        %1913 = vmatprep.subr.mxu0 0.0
        %1914 = vmatpush1.msra.mxu0 0.0
        %1915 = vmatprep.subr.mxu0 0.0
        %1916 = vmatpush1.msra.mxu0 0.0
        %1917 = vmatprep.subr.mxu0 0.0
        %1918 = vmatpush1.msra.mxu0 0.0
        %1919 = vmatprep.subr.mxu0 0.0
        %1920 = vmatpush1.msra.mxu0 0.0
        %1921 = vmatprep.subr.mxu0 0.0
        %1922 = vmatpush1.msra.mxu0 0.0
        %1923 = vmatprep.subr.mxu0 0.0
        %1924 = vmatpush1.msra.mxu0 0.0
        %1925 = vmatprep.subr.mxu0 0.0
        %1926 = vmatpush1.msra.mxu0 0.0
        %1927 = vmatprep.subr.mxu0 0.0
        %1928 = vmatpush1.msra.mxu0 0.0
        %1929 = vmatprep.subr.mxu0 0.0
        %1930 = vmatpush1.msra.mxu0 0.0
        %1931 = vmatprep.subr.mxu0 0.0
        %1932 = vmatpush1.msra.mxu0 0.0
        %1933 = vmatprep.subr.mxu0 0.0
        %1934 = vmatpush1.msra.mxu0 0.0
        %1935 = vmatprep.subr.mxu0 0.0
        %1936 = vmatpush1.msra.mxu0 0.0
        %1937 = vmatprep.subr.mxu0 0.0
        %1938 = vmatpush1.msra.mxu0 0.0
        %1939 = vmatprep.subr.mxu0 0.0
        %1940 = vmatpush1.msra.mxu0 0.0
        %1941 = vmatprep.subr.mxu0 0.0
        %1942 = vmatpush1.msra.mxu0 0.0
        %1943 = vmatprep.mubr.f32.mxu0 0.0
        %1944 = vmatmul.mubr.f32.gmra.mrb[0].mxu0 %v1709
        %v1945 = vpop.f32.mrb[0].mxu0
        %v1946 = vadd.f32 %v1875, %v1945
        %v1947 = vpop.f32.mrb[0].mxu0
        %v1948 = vadd.f32 %v1877, %v1947
        %1949 = vdwg.mxu0
        %1950 = vmatprep.subr.mxu0 %v244
        %1951 = vmatpush1.msra.mxu0 %v243
        %1952 = vmatprep.subr.mxu0 %v276
        %1953 = vmatpush1.msra.mxu0 %v275
        %1954 = vmatprep.subr.mxu0 %v308
        %1955 = vmatpush1.msra.mxu0 %v307
        %1956 = vmatprep.subr.mxu0 %v340
        %1957 = vmatpush1.msra.mxu0 %v339
        %1958 = vmatprep.subr.mxu0 %v372
        %1959 = vmatpush1.msra.mxu0 %v371
        %1960 = vmatprep.subr.mxu0 %v404
        %1961 = vmatpush1.msra.mxu0 %v403
        %1962 = vmatprep.subr.mxu0 %v436
        %1963 = vmatpush1.msra.mxu0 %v435
        %1964 = vmatprep.subr.mxu0 %v468
        %1965 = vmatpush1.msra.mxu0 %v467
        %1966 = vmatprep.subr.mxu0 %v500
        %1967 = vmatpush1.msra.mxu0 %v499
        %1968 = vmatprep.subr.mxu0 %v532
        %1969 = vmatpush1.msra.mxu0 %v531
        %1970 = vmatprep.subr.mxu0 %v564
        %1971 = vmatpush1.msra.mxu0 %v563
        %1972 = vmatprep.subr.mxu0 %v596
        %1973 = vmatpush1.msra.mxu0 %v595
        %1974 = vmatprep.subr.mxu0 %v628
        %1975 = vmatpush1.msra.mxu0 %v627
        %1976 = vmatprep.subr.mxu0 %v660
        %1977 = vmatpush1.msra.mxu0 %v659
        %1978 = vmatprep.subr.mxu0 %v692
        %1979 = vmatpush1.msra.mxu0 %v691
        %1980 = vmatprep.subr.mxu0 %v724
        %1981 = vmatpush1.msra.mxu0 %v723
        %1982 = vmatprep.subr.mxu0 %v756
        %1983 = vmatpush1.msra.mxu0 %v755
        %1984 = vmatprep.subr.mxu0 %v788
        %1985 = vmatpush1.msra.mxu0 %v787
        %1986 = vmatprep.subr.mxu0 %v820
        %1987 = vmatpush1.msra.mxu0 %v819
        %1988 = vmatprep.subr.mxu0 %v852
        %1989 = vmatpush1.msra.mxu0 %v851
        %1990 = vmatprep.subr.mxu0 %v884
        %1991 = vmatpush1.msra.mxu0 %v883
        %1992 = vmatprep.subr.mxu0 %v916
        %1993 = vmatpush1.msra.mxu0 %v915
        %1994 = vmatprep.subr.mxu0 %v948
        %1995 = vmatpush1.msra.mxu0 %v947
        %1996 = vmatprep.subr.mxu0 %v980
        %1997 = vmatpush1.msra.mxu0 %v979
        %1998 = vmatprep.subr.mxu0 %v1012
        %1999 = vmatpush1.msra.mxu0 %v1011
        %2000 = vmatprep.subr.mxu0 %v1044
        %2001 = vmatpush1.msra.mxu0 %v1043
        %2002 = vmatprep.subr.mxu0 %v1076
        %2003 = vmatpush1.msra.mxu0 %v1075
        %2004 = vmatprep.subr.mxu0 %v1108
        %2005 = vmatpush1.msra.mxu0 %v1107
        %2006 = vmatprep.subr.mxu0 %v1140
        %2007 = vmatpush1.msra.mxu0 %v1139
        %2008 = vmatprep.subr.mxu0 %v1172
        %2009 = vmatpush1.msra.mxu0 %v1171
        %2010 = vmatprep.subr.mxu0 %v1204
        %2011 = vmatpush1.msra.mxu0 %v1203
        %2012 = vmatprep.subr.mxu0 %v1236
        %2013 = vmatpush1.msra.mxu0 %v1235
        %2014 = vmatprep.mubr.f32.mxu0 %v1705
        %2015 = vmatmul.mubr.f32.gmra.mrb[0].mxu0 %v1697
        %v2016 = vpop.f32.mrb[0].mxu0
        %v2017 = vadd.f32 %v1540, %v2016
        %v2018 = vpop.f32.mrb[0].mxu0
        %v2019 = vadd.f32 %v1544, %v2018
        %2020 = vdwg.mxu0
        %2021 = vmatprep.subr.mxu0 %v1268
        %2022 = vmatpush1.msra.mxu0 %v1267
        %2023 = vmatprep.subr.mxu0 %v1300
        %2024 = vmatpush1.msra.mxu0 %v1299
        %2025 = vmatprep.subr.mxu0 %v1332
        %2026 = vmatpush1.msra.mxu0 %v1331
        %2027 = vmatprep.subr.mxu0 %v1364
        %2028 = vmatpush1.msra.mxu0 %v1363
        %2029 = vmatprep.subr.mxu0 %v1396
        %2030 = vmatpush1.msra.mxu0 %v1395
        %2031 = vmatprep.subr.mxu0 %v1428
        %2032 = vmatpush1.msra.mxu0 %v1427
        %2033 = vmatprep.subr.mxu0 %v1460
        %2034 = vmatpush1.msra.mxu0 %v1459
        %2035 = vmatprep.subr.mxu0 %v1722
        %2036 = vmatpush1.msra.mxu0 %v1719
        %2037 = vmatprep.subr.mxu0 0.0
        %2038 = vmatpush1.msra.mxu0 0.0
        %2039 = vmatprep.subr.mxu0 0.0
        %2040 = vmatpush1.msra.mxu0 0.0
        %2041 = vmatprep.subr.mxu0 0.0
        %2042 = vmatpush1.msra.mxu0 0.0
        %2043 = vmatprep.subr.mxu0 0.0
        %2044 = vmatpush1.msra.mxu0 0.0
        %2045 = vmatprep.subr.mxu0 0.0
        %2046 = vmatpush1.msra.mxu0 0.0
        %2047 = vmatprep.subr.mxu0 0.0
        %2048 = vmatpush1.msra.mxu0 0.0
        %2049 = vmatprep.subr.mxu0 0.0
        %2050 = vmatpush1.msra.mxu0 0.0
        %2051 = vmatprep.subr.mxu0 0.0
        %2052 = vmatpush1.msra.mxu0 0.0
        %2053 = vmatprep.subr.mxu0 0.0
        %2054 = vmatpush1.msra.mxu0 0.0
        %2055 = vmatprep.subr.mxu0 0.0
        %2056 = vmatpush1.msra.mxu0 0.0
        %2057 = vmatprep.subr.mxu0 0.0
        %2058 = vmatpush1.msra.mxu0 0.0
        %2059 = vmatprep.subr.mxu0 0.0
        %2060 = vmatpush1.msra.mxu0 0.0
        %2061 = vmatprep.subr.mxu0 0.0
        %2062 = vmatpush1.msra.mxu0 0.0
        %2063 = vmatprep.subr.mxu0 0.0
        %2064 = vmatpush1.msra.mxu0 0.0
        %2065 = vmatprep.subr.mxu0 0.0
        %2066 = vmatpush1.msra.mxu0 0.0
        %2067 = vmatprep.subr.mxu0 0.0
        %2068 = vmatpush1.msra.mxu0 0.0
        %2069 = vmatprep.subr.mxu0 0.0
        %2070 = vmatpush1.msra.mxu0 0.0
        %2071 = vmatprep.subr.mxu0 0.0
        %2072 = vmatpush1.msra.mxu0 0.0
        %2073 = vmatprep.subr.mxu0 0.0
        %2074 = vmatpush1.msra.mxu0 0.0
        %2075 = vmatprep.subr.mxu0 0.0
        %2076 = vmatpush1.msra.mxu0 0.0
        %2077 = vmatprep.subr.mxu0 0.0
        %2078 = vmatpush1.msra.mxu0 0.0
        %2079 = vmatprep.subr.mxu0 0.0
        %2080 = vmatpush1.msra.mxu0 0.0
        %2081 = vmatprep.subr.mxu0 0.0
        %2082 = vmatpush1.msra.mxu0 0.0
        %2083 = vmatprep.subr.mxu0 0.0
        %2084 = vmatpush1.msra.mxu0 0.0
        %2085 = vmatprep.mubr.f32.mxu0 0.0
        %2086 = vmatmul.mubr.f32.gmra.mrb[0].mxu0 %v1709
        %v2087 = vpop.f32.mrb[0].mxu0
        %v2088 = vadd.f32 %v2017, %v2087
        %v2089 = vpop.f32.mrb[0].mxu0
        %v2090 = vadd.f32 %v2019, %v2089
        %2091 = vdwg.mxu0
        %2092 = vmatprep.subr.mxu0 %v246
        %2093 = vmatpush1.msra.mxu0 %v245
        %2094 = vmatprep.subr.mxu0 %v278
        %2095 = vmatpush1.msra.mxu0 %v277
        %2096 = vmatprep.subr.mxu0 %v310
        %2097 = vmatpush1.msra.mxu0 %v309
        %2098 = vmatprep.subr.mxu0 %v342
        %2099 = vmatpush1.msra.mxu0 %v341
        %2100 = vmatprep.subr.mxu0 %v374
        %2101 = vmatpush1.msra.mxu0 %v373
        %2102 = vmatprep.subr.mxu0 %v406
        %2103 = vmatpush1.msra.mxu0 %v405
        %2104 = vmatprep.subr.mxu0 %v438
        %2105 = vmatpush1.msra.mxu0 %v437
        %2106 = vmatprep.subr.mxu0 %v470
        %2107 = vmatpush1.msra.mxu0 %v469
        %2108 = vmatprep.subr.mxu0 %v502
        %2109 = vmatpush1.msra.mxu0 %v501
        %2110 = vmatprep.subr.mxu0 %v534
        %2111 = vmatpush1.msra.mxu0 %v533
        %2112 = vmatprep.subr.mxu0 %v566
        %2113 = vmatpush1.msra.mxu0 %v565
        %2114 = vmatprep.subr.mxu0 %v598
        %2115 = vmatpush1.msra.mxu0 %v597
        %2116 = vmatprep.subr.mxu0 %v630
        %2117 = vmatpush1.msra.mxu0 %v629
        %2118 = vmatprep.subr.mxu0 %v662
        %2119 = vmatpush1.msra.mxu0 %v661
        %2120 = vmatprep.subr.mxu0 %v694
        %2121 = vmatpush1.msra.mxu0 %v693
        %2122 = vmatprep.subr.mxu0 %v726
        %2123 = vmatpush1.msra.mxu0 %v725
        %2124 = vmatprep.subr.mxu0 %v758
        %2125 = vmatpush1.msra.mxu0 %v757
        %2126 = vmatprep.subr.mxu0 %v790
        %2127 = vmatpush1.msra.mxu0 %v789
        %2128 = vmatprep.subr.mxu0 %v822
        %2129 = vmatpush1.msra.mxu0 %v821
        %2130 = vmatprep.subr.mxu0 %v854
        %2131 = vmatpush1.msra.mxu0 %v853
        %2132 = vmatprep.subr.mxu0 %v886
        %2133 = vmatpush1.msra.mxu0 %v885
        %2134 = vmatprep.subr.mxu0 %v918
        %2135 = vmatpush1.msra.mxu0 %v917
        %2136 = vmatprep.subr.mxu0 %v950
        %2137 = vmatpush1.msra.mxu0 %v949
        %2138 = vmatprep.subr.mxu0 %v982
        %2139 = vmatpush1.msra.mxu0 %v981
        %2140 = vmatprep.subr.mxu0 %v1014
        %2141 = vmatpush1.msra.mxu0 %v1013
        %2142 = vmatprep.subr.mxu0 %v1046
        %2143 = vmatpush1.msra.mxu0 %v1045
        %2144 = vmatprep.subr.mxu0 %v1078
        %2145 = vmatpush1.msra.mxu0 %v1077
        %2146 = vmatprep.subr.mxu0 %v1110
        %2147 = vmatpush1.msra.mxu0 %v1109
        %2148 = vmatprep.subr.mxu0 %v1142
        %2149 = vmatpush1.msra.mxu0 %v1141
        %2150 = vmatprep.subr.mxu0 %v1174
        %2151 = vmatpush1.msra.mxu0 %v1173
        %2152 = vmatprep.subr.mxu0 %v1206
        %2153 = vmatpush1.msra.mxu0 %v1205
        %2154 = vmatprep.subr.mxu0 %v1238
        %2155 = vmatpush1.msra.mxu0 %v1237
        %2156 = vmatprep.mubr.f32.mxu0 %v1705
        %2157 = vmatmul.mubr.f32.gmra.mrb[0].mxu0 %v1697
        %v2158 = vpop.f32.mrb[0].mxu0
        %v2159 = vadd.f32 %v1548, %v2158
        %v2160 = vpop.f32.mrb[0].mxu0
        %v2161 = vadd.f32 %v1552, %v2160
        %2162 = vdwg.mxu0
        %2163 = vmatprep.subr.mxu0 %v1270
        %2164 = vmatpush1.msra.mxu0 %v1269
        %2165 = vmatprep.subr.mxu0 %v1302
        %2166 = vmatpush1.msra.mxu0 %v1301
        %2167 = vmatprep.subr.mxu0 %v1334
        %2168 = vmatpush1.msra.mxu0 %v1333
        %2169 = vmatprep.subr.mxu0 %v1366
        %2170 = vmatpush1.msra.mxu0 %v1365
        %2171 = vmatprep.subr.mxu0 %v1398
        %2172 = vmatpush1.msra.mxu0 %v1397
        %2173 = vmatprep.subr.mxu0 %v1430
        %2174 = vmatpush1.msra.mxu0 %v1429
        %2175 = vmatprep.subr.mxu0 %v1462
        %2176 = vmatpush1.msra.mxu0 %v1461
        %2177 = vmatprep.subr.mxu0 %v1728
        %2178 = vmatpush1.msra.mxu0 %v1725
        %2179 = vmatprep.subr.mxu0 0.0
        %2180 = vmatpush1.msra.mxu0 0.0
        %2181 = vmatprep.subr.mxu0 0.0
        %2182 = vmatpush1.msra.mxu0 0.0
        %2183 = vmatprep.subr.mxu0 0.0
        %2184 = vmatpush1.msra.mxu0 0.0
        %2185 = vmatprep.subr.mxu0 0.0
        %2186 = vmatpush1.msra.mxu0 0.0
        %2187 = vmatprep.subr.mxu0 0.0
        %2188 = vmatpush1.msra.mxu0 0.0
        %2189 = vmatprep.subr.mxu0 0.0
        %2190 = vmatpush1.msra.mxu0 0.0
        %2191 = vmatprep.subr.mxu0 0.0
        %2192 = vmatpush1.msra.mxu0 0.0
        %2193 = vmatprep.subr.mxu0 0.0
        %2194 = vmatpush1.msra.mxu0 0.0
        %2195 = vmatprep.subr.mxu0 0.0
        %2196 = vmatpush1.msra.mxu0 0.0
        %2197 = vmatprep.subr.mxu0 0.0
        %2198 = vmatpush1.msra.mxu0 0.0
        %2199 = vmatprep.subr.mxu0 0.0
        %2200 = vmatpush1.msra.mxu0 0.0
        %2201 = vmatprep.subr.mxu0 0.0
        %2202 = vmatpush1.msra.mxu0 0.0
        %2203 = vmatprep.subr.mxu0 0.0
        %2204 = vmatpush1.msra.mxu0 0.0
        %2205 = vmatprep.subr.mxu0 0.0
        %2206 = vmatpush1.msra.mxu0 0.0
        %2207 = vmatprep.subr.mxu0 0.0
        %2208 = vmatpush1.msra.mxu0 0.0
        %2209 = vmatprep.subr.mxu0 0.0
        %2210 = vmatpush1.msra.mxu0 0.0
        %2211 = vmatprep.subr.mxu0 0.0
        %2212 = vmatpush1.msra.mxu0 0.0
        %2213 = vmatprep.subr.mxu0 0.0
        %2214 = vmatpush1.msra.mxu0 0.0
        %2215 = vmatprep.subr.mxu0 0.0
        %2216 = vmatpush1.msra.mxu0 0.0
        %2217 = vmatprep.subr.mxu0 0.0
        %2218 = vmatpush1.msra.mxu0 0.0
        %2219 = vmatprep.subr.mxu0 0.0
        %2220 = vmatpush1.msra.mxu0 0.0
        %2221 = vmatprep.subr.mxu0 0.0
        %2222 = vmatpush1.msra.mxu0 0.0
        %2223 = vmatprep.subr.mxu0 0.0
        %2224 = vmatpush1.msra.mxu0 0.0
        %2225 = vmatprep.subr.mxu0 0.0
        %2226 = vmatpush1.msra.mxu0 0.0
        %2227 = vmatprep.mubr.f32.mxu0 0.0
        %2228 = vmatmul.mubr.f32.gmra.mrb[0].mxu0 %v1709
        %v2229 = vpop.f32.mrb[0].mxu0
        %v2230 = vadd.f32 %v2159, %v2229
        %v2231 = vpop.f32.mrb[0].mxu0
        %v2232 = vadd.f32 %v2161, %v2231
        %2233 = vdwg.mxu0
        %2234 = vmatprep.subr.mxu0 %v248
        %2235 = vmatpush1.msra.mxu0 %v247
        %2236 = vmatprep.subr.mxu0 %v280
        %2237 = vmatpush1.msra.mxu0 %v279
        %2238 = vmatprep.subr.mxu0 %v312
        %2239 = vmatpush1.msra.mxu0 %v311
        %2240 = vmatprep.subr.mxu0 %v344
        %2241 = vmatpush1.msra.mxu0 %v343
        %2242 = vmatprep.subr.mxu0 %v376
        %2243 = vmatpush1.msra.mxu0 %v375
        %2244 = vmatprep.subr.mxu0 %v408
        %2245 = vmatpush1.msra.mxu0 %v407
        %2246 = vmatprep.subr.mxu0 %v440
        %2247 = vmatpush1.msra.mxu0 %v439
        %2248 = vmatprep.subr.mxu0 %v472
        %2249 = vmatpush1.msra.mxu0 %v471
        %2250 = vmatprep.subr.mxu0 %v504
        %2251 = vmatpush1.msra.mxu0 %v503
        %2252 = vmatprep.subr.mxu0 %v536
        %2253 = vmatpush1.msra.mxu0 %v535
        %2254 = vmatprep.subr.mxu0 %v568
        %2255 = vmatpush1.msra.mxu0 %v567
        %2256 = vmatprep.subr.mxu0 %v600
        %2257 = vmatpush1.msra.mxu0 %v599
        %2258 = vmatprep.subr.mxu0 %v632
        %2259 = vmatpush1.msra.mxu0 %v631
        %2260 = vmatprep.subr.mxu0 %v664
        %2261 = vmatpush1.msra.mxu0 %v663
        %2262 = vmatprep.subr.mxu0 %v696
        %2263 = vmatpush1.msra.mxu0 %v695
        %2264 = vmatprep.subr.mxu0 %v728
        %2265 = vmatpush1.msra.mxu0 %v727
        %2266 = vmatprep.subr.mxu0 %v760
        %2267 = vmatpush1.msra.mxu0 %v759
        %2268 = vmatprep.subr.mxu0 %v792
        %2269 = vmatpush1.msra.mxu0 %v791
        %2270 = vmatprep.subr.mxu0 %v824
        %2271 = vmatpush1.msra.mxu0 %v823
        %2272 = vmatprep.subr.mxu0 %v856
        %2273 = vmatpush1.msra.mxu0 %v855
        %2274 = vmatprep.subr.mxu0 %v888
        %2275 = vmatpush1.msra.mxu0 %v887
        %2276 = vmatprep.subr.mxu0 %v920
        %2277 = vmatpush1.msra.mxu0 %v919
        %2278 = vmatprep.subr.mxu0 %v952
        %2279 = vmatpush1.msra.mxu0 %v951
        %2280 = vmatprep.subr.mxu0 %v984
        %2281 = vmatpush1.msra.mxu0 %v983
        %2282 = vmatprep.subr.mxu0 %v1016
        %2283 = vmatpush1.msra.mxu0 %v1015
        %2284 = vmatprep.subr.mxu0 %v1048
        %2285 = vmatpush1.msra.mxu0 %v1047
        %2286 = vmatprep.subr.mxu0 %v1080
        %2287 = vmatpush1.msra.mxu0 %v1079
        %2288 = vmatprep.subr.mxu0 %v1112
        %2289 = vmatpush1.msra.mxu0 %v1111
        %2290 = vmatprep.subr.mxu0 %v1144
        %2291 = vmatpush1.msra.mxu0 %v1143
        %2292 = vmatprep.subr.mxu0 %v1176
        %2293 = vmatpush1.msra.mxu0 %v1175
        %2294 = vmatprep.subr.mxu0 %v1208
        %2295 = vmatpush1.msra.mxu0 %v1207
        %2296 = vmatprep.subr.mxu0 %v1240
        %2297 = vmatpush1.msra.mxu0 %v1239
        %2298 = vmatprep.mubr.f32.mxu0 %v1705
        %2299 = vmatmul.mubr.f32.gmra.mrb[0].mxu0 %v1697
        %v2300 = vpop.f32.mrb[0].mxu0
        %v2301 = vadd.f32 %v1556, %v2300
        %v2302 = vpop.f32.mrb[0].mxu0
        %v2303 = vadd.f32 %v1560, %v2302
        %2304 = vdwg.mxu0
        %2305 = vmatprep.subr.mxu0 %v1272
        %2306 = vmatpush1.msra.mxu0 %v1271
        %2307 = vmatprep.subr.mxu0 %v1304
        %2308 = vmatpush1.msra.mxu0 %v1303
        %2309 = vmatprep.subr.mxu0 %v1336
        %2310 = vmatpush1.msra.mxu0 %v1335
        %2311 = vmatprep.subr.mxu0 %v1368
        %2312 = vmatpush1.msra.mxu0 %v1367
        %2313 = vmatprep.subr.mxu0 %v1400
        %2314 = vmatpush1.msra.mxu0 %v1399
        %2315 = vmatprep.subr.mxu0 %v1432
        %2316 = vmatpush1.msra.mxu0 %v1431
        %2317 = vmatprep.subr.mxu0 %v1464
        %2318 = vmatpush1.msra.mxu0 %v1463
        %2319 = vmatprep.subr.mxu0 %v1734
        %2320 = vmatpush1.msra.mxu0 %v1731
        %2321 = vmatprep.subr.mxu0 0.0
        %2322 = vmatpush1.msra.mxu0 0.0
        %2323 = vmatprep.subr.mxu0 0.0
        %2324 = vmatpush1.msra.mxu0 0.0
        %2325 = vmatprep.subr.mxu0 0.0
        %2326 = vmatpush1.msra.mxu0 0.0
        %2327 = vmatprep.subr.mxu0 0.0
        %2328 = vmatpush1.msra.mxu0 0.0
        %2329 = vmatprep.subr.mxu0 0.0
        %2330 = vmatpush1.msra.mxu0 0.0
        %2331 = vmatprep.subr.mxu0 0.0
        %2332 = vmatpush1.msra.mxu0 0.0
        %2333 = vmatprep.subr.mxu0 0.0
        %2334 = vmatpush1.msra.mxu0 0.0
        %2335 = vmatprep.subr.mxu0 0.0
        %2336 = vmatpush1.msra.mxu0 0.0
        %2337 = vmatprep.subr.mxu0 0.0
        %2338 = vmatpush1.msra.mxu0 0.0
        %2339 = vmatprep.subr.mxu0 0.0
        %2340 = vmatpush1.msra.mxu0 0.0
        %2341 = vmatprep.subr.mxu0 0.0
        %2342 = vmatpush1.msra.mxu0 0.0
        %2343 = vmatprep.subr.mxu0 0.0
        %2344 = vmatpush1.msra.mxu0 0.0
        %2345 = vmatprep.subr.mxu0 0.0
        %2346 = vmatpush1.msra.mxu0 0.0
        %2347 = vmatprep.subr.mxu0 0.0
        %2348 = vmatpush1.msra.mxu0 0.0
        %2349 = vmatprep.subr.mxu0 0.0
        %2350 = vmatpush1.msra.mxu0 0.0
        %2351 = vmatprep.subr.mxu0 0.0
        %2352 = vmatpush1.msra.mxu0 0.0
        %2353 = vmatprep.subr.mxu0 0.0
        %2354 = vmatpush1.msra.mxu0 0.0
        %2355 = vmatprep.subr.mxu0 0.0
        %2356 = vmatpush1.msra.mxu0 0.0
        %2357 = vmatprep.subr.mxu0 0.0
        %2358 = vmatpush1.msra.mxu0 0.0
        %2359 = vmatprep.subr.mxu0 0.0
        %2360 = vmatpush1.msra.mxu0 0.0
        %2361 = vmatprep.subr.mxu0 0.0
        %2362 = vmatpush1.msra.mxu0 0.0
        %2363 = vmatprep.subr.mxu0 0.0
        %2364 = vmatpush1.msra.mxu0 0.0
        %2365 = vmatprep.subr.mxu0 0.0
        %2366 = vmatpush1.msra.mxu0 0.0
        %2367 = vmatprep.subr.mxu0 0.0
        %2368 = vmatpush1.msra.mxu0 0.0
        %2369 = vmatprep.mubr.f32.mxu0 0.0
        %2370 = vmatmul.mubr.f32.gmra.mrb[0].mxu0 %v1709
        %v2371 = vpop.f32.mrb[0].mxu0
        %v2372 = vadd.f32 %v2301, %v2371
        %v2373 = vpop.f32.mrb[0].mxu0
        %v2374 = vadd.f32 %v2303, %v2373
        %2375 = vdwg.mxu0
        %2376 = vmatprep.subr.mxu0 %v250
        %2377 = vmatpush1.msra.mxu0 %v249
        %2378 = vmatprep.subr.mxu0 %v282
        %2379 = vmatpush1.msra.mxu0 %v281
        %2380 = vmatprep.subr.mxu0 %v314
        %2381 = vmatpush1.msra.mxu0 %v313
        %2382 = vmatprep.subr.mxu0 %v346
        %2383 = vmatpush1.msra.mxu0 %v345
        %2384 = vmatprep.subr.mxu0 %v378
        %2385 = vmatpush1.msra.mxu0 %v377
        %2386 = vmatprep.subr.mxu0 %v410
        %2387 = vmatpush1.msra.mxu0 %v409
        %2388 = vmatprep.subr.mxu0 %v442
        %2389 = vmatpush1.msra.mxu0 %v441
        %2390 = vmatprep.subr.mxu0 %v474
        %2391 = vmatpush1.msra.mxu0 %v473
        %2392 = vmatprep.subr.mxu0 %v506
        %2393 = vmatpush1.msra.mxu0 %v505
        %2394 = vmatprep.subr.mxu0 %v538
        %2395 = vmatpush1.msra.mxu0 %v537
        %2396 = vmatprep.subr.mxu0 %v570
        %2397 = vmatpush1.msra.mxu0 %v569
        %2398 = vmatprep.subr.mxu0 %v602
        %2399 = vmatpush1.msra.mxu0 %v601
        %2400 = vmatprep.subr.mxu0 %v634
        %2401 = vmatpush1.msra.mxu0 %v633
        %2402 = vmatprep.subr.mxu0 %v666
        %2403 = vmatpush1.msra.mxu0 %v665
        %2404 = vmatprep.subr.mxu0 %v698
        %2405 = vmatpush1.msra.mxu0 %v697
        %2406 = vmatprep.subr.mxu0 %v730
        %2407 = vmatpush1.msra.mxu0 %v729
        %2408 = vmatprep.subr.mxu0 %v762
        %2409 = vmatpush1.msra.mxu0 %v761
        %2410 = vmatprep.subr.mxu0 %v794
        %2411 = vmatpush1.msra.mxu0 %v793
        %2412 = vmatprep.subr.mxu0 %v826
        %2413 = vmatpush1.msra.mxu0 %v825
        %2414 = vmatprep.subr.mxu0 %v858
        %2415 = vmatpush1.msra.mxu0 %v857
        %2416 = vmatprep.subr.mxu0 %v890
        %2417 = vmatpush1.msra.mxu0 %v889
        %2418 = vmatprep.subr.mxu0 %v922
        %2419 = vmatpush1.msra.mxu0 %v921
        %2420 = vmatprep.subr.mxu0 %v954
        %2421 = vmatpush1.msra.mxu0 %v953
        %2422 = vmatprep.subr.mxu0 %v986
        %2423 = vmatpush1.msra.mxu0 %v985
        %2424 = vmatprep.subr.mxu0 %v1018
        %2425 = vmatpush1.msra.mxu0 %v1017
        %2426 = vmatprep.subr.mxu0 %v1050
        %2427 = vmatpush1.msra.mxu0 %v1049
        %2428 = vmatprep.subr.mxu0 %v1082
        %2429 = vmatpush1.msra.mxu0 %v1081
        %2430 = vmatprep.subr.mxu0 %v1114
        %2431 = vmatpush1.msra.mxu0 %v1113
        %2432 = vmatprep.subr.mxu0 %v1146
        %2433 = vmatpush1.msra.mxu0 %v1145
        %2434 = vmatprep.subr.mxu0 %v1178
        %2435 = vmatpush1.msra.mxu0 %v1177
        %2436 = vmatprep.subr.mxu0 %v1210
        %2437 = vmatpush1.msra.mxu0 %v1209
        %2438 = vmatprep.subr.mxu0 %v1242
        %2439 = vmatpush1.msra.mxu0 %v1241
        %2440 = vmatprep.mubr.f32.mxu0 %v1705
        %2441 = vmatmul.mubr.f32.gmra.mrb[0].mxu0 %v1697
        %v2442 = vpop.f32.mrb[0].mxu0
        %v2443 = vadd.f32 %v1564, %v2442
        %v2444 = vpop.f32.mrb[0].mxu0
        %v2445 = vadd.f32 %v1568, %v2444
        %2446 = vdwg.mxu0
        %2447 = vmatprep.subr.mxu0 %v1274
        %2448 = vmatpush1.msra.mxu0 %v1273
        %2449 = vmatprep.subr.mxu0 %v1306
        %2450 = vmatpush1.msra.mxu0 %v1305
        %2451 = vmatprep.subr.mxu0 %v1338
        %2452 = vmatpush1.msra.mxu0 %v1337
        %2453 = vmatprep.subr.mxu0 %v1370
        %2454 = vmatpush1.msra.mxu0 %v1369
        %2455 = vmatprep.subr.mxu0 %v1402
        %2456 = vmatpush1.msra.mxu0 %v1401
        %2457 = vmatprep.subr.mxu0 %v1434
        %2458 = vmatpush1.msra.mxu0 %v1433
        %2459 = vmatprep.subr.mxu0 %v1466
        %2460 = vmatpush1.msra.mxu0 %v1465
        %2461 = vmatprep.subr.mxu0 %v1740
        %2462 = vmatpush1.msra.mxu0 %v1737
        %2463 = vmatprep.subr.mxu0 0.0
        %2464 = vmatpush1.msra.mxu0 0.0
        %2465 = vmatprep.subr.mxu0 0.0
        %2466 = vmatpush1.msra.mxu0 0.0
        %2467 = vmatprep.subr.mxu0 0.0
        %2468 = vmatpush1.msra.mxu0 0.0
        %2469 = vmatprep.subr.mxu0 0.0
        %2470 = vmatpush1.msra.mxu0 0.0
        %2471 = vmatprep.subr.mxu0 0.0
        %2472 = vmatpush1.msra.mxu0 0.0
        %2473 = vmatprep.subr.mxu0 0.0
        %2474 = vmatpush1.msra.mxu0 0.0
        %2475 = vmatprep.subr.mxu0 0.0
        %2476 = vmatpush1.msra.mxu0 0.0
        %2477 = vmatprep.subr.mxu0 0.0
        %2478 = vmatpush1.msra.mxu0 0.0
        %2479 = vmatprep.subr.mxu0 0.0
        %2480 = vmatpush1.msra.mxu0 0.0
        %2481 = vmatprep.subr.mxu0 0.0
        %2482 = vmatpush1.msra.mxu0 0.0
        %2483 = vmatprep.subr.mxu0 0.0
        %2484 = vmatpush1.msra.mxu0 0.0
        %2485 = vmatprep.subr.mxu0 0.0
        %2486 = vmatpush1.msra.mxu0 0.0
        %2487 = vmatprep.subr.mxu0 0.0
        %2488 = vmatpush1.msra.mxu0 0.0
        %2489 = vmatprep.subr.mxu0 0.0
        %2490 = vmatpush1.msra.mxu0 0.0
        %2491 = vmatprep.subr.mxu0 0.0
        %2492 = vmatpush1.msra.mxu0 0.0
        %2493 = vmatprep.subr.mxu0 0.0
        %2494 = vmatpush1.msra.mxu0 0.0
        %2495 = vmatprep.subr.mxu0 0.0
        %2496 = vmatpush1.msra.mxu0 0.0
        %2497 = vmatprep.subr.mxu0 0.0
        %2498 = vmatpush1.msra.mxu0 0.0
        %2499 = vmatprep.subr.mxu0 0.0
        %2500 = vmatpush1.msra.mxu0 0.0
        %2501 = vmatprep.subr.mxu0 0.0
        %2502 = vmatpush1.msra.mxu0 0.0
        %2503 = vmatprep.subr.mxu0 0.0
        %2504 = vmatpush1.msra.mxu0 0.0
        %2505 = vmatprep.subr.mxu0 0.0
        %2506 = vmatpush1.msra.mxu0 0.0
        %2507 = vmatprep.subr.mxu0 0.0
        %2508 = vmatpush1.msra.mxu0 0.0
        %2509 = vmatprep.subr.mxu0 0.0
        %2510 = vmatpush1.msra.mxu0 0.0
        %2511 = vmatprep.mubr.f32.mxu0 0.0
        %2512 = vmatmul.mubr.f32.gmra.mrb[0].mxu0 %v1709
        %v2513 = vpop.f32.mrb[0].mxu0
        %v2514 = vadd.f32 %v2443, %v2513
        %v2515 = vpop.f32.mrb[0].mxu0
        %v2516 = vadd.f32 %v2445, %v2515
        %2517 = vdwg.mxu0
        %2518 = vmatprep.subr.mxu0 %v252
        %2519 = vmatpush1.msra.mxu0 %v251
        %2520 = vmatprep.subr.mxu0 %v284
        %2521 = vmatpush1.msra.mxu0 %v283
        %2522 = vmatprep.subr.mxu0 %v316
        %2523 = vmatpush1.msra.mxu0 %v315
        %2524 = vmatprep.subr.mxu0 %v348
        %2525 = vmatpush1.msra.mxu0 %v347
        %2526 = vmatprep.subr.mxu0 %v380
        %2527 = vmatpush1.msra.mxu0 %v379
        %2528 = vmatprep.subr.mxu0 %v412
        %2529 = vmatpush1.msra.mxu0 %v411
        %2530 = vmatprep.subr.mxu0 %v444
        %2531 = vmatpush1.msra.mxu0 %v443
        %2532 = vmatprep.subr.mxu0 %v476
        %2533 = vmatpush1.msra.mxu0 %v475
        %2534 = vmatprep.subr.mxu0 %v508
        %2535 = vmatpush1.msra.mxu0 %v507
        %2536 = vmatprep.subr.mxu0 %v540
        %2537 = vmatpush1.msra.mxu0 %v539
        %2538 = vmatprep.subr.mxu0 %v572
        %2539 = vmatpush1.msra.mxu0 %v571
        %2540 = vmatprep.subr.mxu0 %v604
        %2541 = vmatpush1.msra.mxu0 %v603
        %2542 = vmatprep.subr.mxu0 %v636
        %2543 = vmatpush1.msra.mxu0 %v635
        %2544 = vmatprep.subr.mxu0 %v668
        %2545 = vmatpush1.msra.mxu0 %v667
        %2546 = vmatprep.subr.mxu0 %v700
        %2547 = vmatpush1.msra.mxu0 %v699
        %2548 = vmatprep.subr.mxu0 %v732
        %2549 = vmatpush1.msra.mxu0 %v731
        %2550 = vmatprep.subr.mxu0 %v764
        %2551 = vmatpush1.msra.mxu0 %v763
        %2552 = vmatprep.subr.mxu0 %v796
        %2553 = vmatpush1.msra.mxu0 %v795
        %2554 = vmatprep.subr.mxu0 %v828
        %2555 = vmatpush1.msra.mxu0 %v827
        %2556 = vmatprep.subr.mxu0 %v860
        %2557 = vmatpush1.msra.mxu0 %v859
        %2558 = vmatprep.subr.mxu0 %v892
        %2559 = vmatpush1.msra.mxu0 %v891
        %2560 = vmatprep.subr.mxu0 %v924
        %2561 = vmatpush1.msra.mxu0 %v923
        %2562 = vmatprep.subr.mxu0 %v956
        %2563 = vmatpush1.msra.mxu0 %v955
        %2564 = vmatprep.subr.mxu0 %v988
        %2565 = vmatpush1.msra.mxu0 %v987
        %2566 = vmatprep.subr.mxu0 %v1020
        %2567 = vmatpush1.msra.mxu0 %v1019
        %2568 = vmatprep.subr.mxu0 %v1052
        %2569 = vmatpush1.msra.mxu0 %v1051
        %2570 = vmatprep.subr.mxu0 %v1084
        %2571 = vmatpush1.msra.mxu0 %v1083
        %2572 = vmatprep.subr.mxu0 %v1116
        %2573 = vmatpush1.msra.mxu0 %v1115
        %2574 = vmatprep.subr.mxu0 %v1148
        %2575 = vmatpush1.msra.mxu0 %v1147
        %2576 = vmatprep.subr.mxu0 %v1180
        %2577 = vmatpush1.msra.mxu0 %v1179
        %2578 = vmatprep.subr.mxu0 %v1212
        %2579 = vmatpush1.msra.mxu0 %v1211
        %2580 = vmatprep.subr.mxu0 %v1244
        %2581 = vmatpush1.msra.mxu0 %v1243
        %2582 = vmatprep.mubr.f32.mxu0 %v1705
        %2583 = vmatmul.mubr.f32.gmra.mrb[0].mxu0 %v1697
        %v2584 = vpop.f32.mrb[0].mxu0
        %v2585 = vadd.f32 %v1572, %v2584
        %v2586 = vpop.f32.mrb[0].mxu0
        %v2587 = vadd.f32 %v1576, %v2586
        %2588 = vdwg.mxu0
        %2589 = vmatprep.subr.mxu0 %v1276
        %2590 = vmatpush1.msra.mxu0 %v1275
        %2591 = vmatprep.subr.mxu0 %v1308
        %2592 = vmatpush1.msra.mxu0 %v1307
        %2593 = vmatprep.subr.mxu0 %v1340
        %2594 = vmatpush1.msra.mxu0 %v1339
        %2595 = vmatprep.subr.mxu0 %v1372
        %2596 = vmatpush1.msra.mxu0 %v1371
        %2597 = vmatprep.subr.mxu0 %v1404
        %2598 = vmatpush1.msra.mxu0 %v1403
        %2599 = vmatprep.subr.mxu0 %v1436
        %2600 = vmatpush1.msra.mxu0 %v1435
        %2601 = vmatprep.subr.mxu0 %v1468
        %2602 = vmatpush1.msra.mxu0 %v1467
        %2603 = vmatprep.subr.mxu0 %v1746
        %2604 = vmatpush1.msra.mxu0 %v1743
        %2605 = vmatprep.subr.mxu0 0.0
        %2606 = vmatpush1.msra.mxu0 0.0
        %2607 = vmatprep.subr.mxu0 0.0
        %2608 = vmatpush1.msra.mxu0 0.0
        %2609 = vmatprep.subr.mxu0 0.0
        %2610 = vmatpush1.msra.mxu0 0.0
        %2611 = vmatprep.subr.mxu0 0.0
        %2612 = vmatpush1.msra.mxu0 0.0
        %2613 = vmatprep.subr.mxu0 0.0
        %2614 = vmatpush1.msra.mxu0 0.0
        %2615 = vmatprep.subr.mxu0 0.0
        %2616 = vmatpush1.msra.mxu0 0.0
        %2617 = vmatprep.subr.mxu0 0.0
        %2618 = vmatpush1.msra.mxu0 0.0
        %2619 = vmatprep.subr.mxu0 0.0
        %2620 = vmatpush1.msra.mxu0 0.0
        %2621 = vmatprep.subr.mxu0 0.0
        %2622 = vmatpush1.msra.mxu0 0.0
        %2623 = vmatprep.subr.mxu0 0.0
        %2624 = vmatpush1.msra.mxu0 0.0
        %2625 = vmatprep.subr.mxu0 0.0
        %2626 = vmatpush1.msra.mxu0 0.0
        %2627 = vmatprep.subr.mxu0 0.0
        %2628 = vmatpush1.msra.mxu0 0.0
        %2629 = vmatprep.subr.mxu0 0.0
        %2630 = vmatpush1.msra.mxu0 0.0
        %2631 = vmatprep.subr.mxu0 0.0
        %2632 = vmatpush1.msra.mxu0 0.0
        %2633 = vmatprep.subr.mxu0 0.0
        %2634 = vmatpush1.msra.mxu0 0.0
        %2635 = vmatprep.subr.mxu0 0.0
        %2636 = vmatpush1.msra.mxu0 0.0
        %2637 = vmatprep.subr.mxu0 0.0
        %2638 = vmatpush1.msra.mxu0 0.0
        %2639 = vmatprep.subr.mxu0 0.0
        %2640 = vmatpush1.msra.mxu0 0.0
        %2641 = vmatprep.subr.mxu0 0.0
        %2642 = vmatpush1.msra.mxu0 0.0
        %2643 = vmatprep.subr.mxu0 0.0
        %2644 = vmatpush1.msra.mxu0 0.0
        %2645 = vmatprep.subr.mxu0 0.0
        %2646 = vmatpush1.msra.mxu0 0.0
        %2647 = vmatprep.subr.mxu0 0.0
        %2648 = vmatpush1.msra.mxu0 0.0
        %2649 = vmatprep.subr.mxu0 0.0
        %2650 = vmatpush1.msra.mxu0 0.0
        %2651 = vmatprep.subr.mxu0 0.0
        %2652 = vmatpush1.msra.mxu0 0.0
        %2653 = vmatprep.mubr.f32.mxu0 0.0
        %2654 = vmatmul.mubr.f32.gmra.mrb[0].mxu0 %v1709
        %v2655 = vpop.f32.mrb[0].mxu0
        %v2656 = vadd.f32 %v2585, %v2655
        %v2657 = vpop.f32.mrb[0].mxu0
        %v2658 = vadd.f32 %v2587, %v2657
        %2659 = vdwg.mxu0
        %2660 = vmatprep.subr.mxu0 %v254
        %2661 = vmatpush1.msra.mxu0 %v253
        %2662 = vmatprep.subr.mxu0 %v286
        %2663 = vmatpush1.msra.mxu0 %v285
        %2664 = vmatprep.subr.mxu0 %v318
        %2665 = vmatpush1.msra.mxu0 %v317
        %2666 = vmatprep.subr.mxu0 %v350
        %2667 = vmatpush1.msra.mxu0 %v349
        %2668 = vmatprep.subr.mxu0 %v382
        %2669 = vmatpush1.msra.mxu0 %v381
        %2670 = vmatprep.subr.mxu0 %v414
        %2671 = vmatpush1.msra.mxu0 %v413
        %2672 = vmatprep.subr.mxu0 %v446
        %2673 = vmatpush1.msra.mxu0 %v445
        %2674 = vmatprep.subr.mxu0 %v478
        %2675 = vmatpush1.msra.mxu0 %v477
        %2676 = vmatprep.subr.mxu0 %v510
        %2677 = vmatpush1.msra.mxu0 %v509
        %2678 = vmatprep.subr.mxu0 %v542
        %2679 = vmatpush1.msra.mxu0 %v541
        %2680 = vmatprep.subr.mxu0 %v574
        %2681 = vmatpush1.msra.mxu0 %v573
        %2682 = vmatprep.subr.mxu0 %v606
        %2683 = vmatpush1.msra.mxu0 %v605
        %2684 = vmatprep.subr.mxu0 %v638
        %2685 = vmatpush1.msra.mxu0 %v637
        %2686 = vmatprep.subr.mxu0 %v670
        %2687 = vmatpush1.msra.mxu0 %v669
        %2688 = vmatprep.subr.mxu0 %v702
        %2689 = vmatpush1.msra.mxu0 %v701
        %2690 = vmatprep.subr.mxu0 %v734
        %2691 = vmatpush1.msra.mxu0 %v733
        %2692 = vmatprep.subr.mxu0 %v766
        %2693 = vmatpush1.msra.mxu0 %v765
        %2694 = vmatprep.subr.mxu0 %v798
        %2695 = vmatpush1.msra.mxu0 %v797
        %2696 = vmatprep.subr.mxu0 %v830
        %2697 = vmatpush1.msra.mxu0 %v829
        %2698 = vmatprep.subr.mxu0 %v862
        %2699 = vmatpush1.msra.mxu0 %v861
        %2700 = vmatprep.subr.mxu0 %v894
        %2701 = vmatpush1.msra.mxu0 %v893
        %2702 = vmatprep.subr.mxu0 %v926
        %2703 = vmatpush1.msra.mxu0 %v925
        %2704 = vmatprep.subr.mxu0 %v958
        %2705 = vmatpush1.msra.mxu0 %v957
        %2706 = vmatprep.subr.mxu0 %v990
        %2707 = vmatpush1.msra.mxu0 %v989
        %2708 = vmatprep.subr.mxu0 %v1022
        %2709 = vmatpush1.msra.mxu0 %v1021
        %2710 = vmatprep.subr.mxu0 %v1054
        %2711 = vmatpush1.msra.mxu0 %v1053
        %2712 = vmatprep.subr.mxu0 %v1086
        %2713 = vmatpush1.msra.mxu0 %v1085
        %2714 = vmatprep.subr.mxu0 %v1118
        %2715 = vmatpush1.msra.mxu0 %v1117
        %2716 = vmatprep.subr.mxu0 %v1150
        %2717 = vmatpush1.msra.mxu0 %v1149
        %2718 = vmatprep.subr.mxu0 %v1182
        %2719 = vmatpush1.msra.mxu0 %v1181
        %2720 = vmatprep.subr.mxu0 %v1214
        %2721 = vmatpush1.msra.mxu0 %v1213
        %2722 = vmatprep.subr.mxu0 %v1246
        %2723 = vmatpush1.msra.mxu0 %v1245
        %2724 = vmatprep.mubr.f32.mxu0 %v1705
        %2725 = vmatmul.mubr.f32.gmra.mrb[0].mxu0 %v1697
        %v2726 = vpop.f32.mrb[0].mxu0
        %v2727 = vadd.f32 %v1580, %v2726
        %v2728 = vpop.f32.mrb[0].mxu0
        %v2729 = vadd.f32 %v1584, %v2728
        %2730 = vdwg.mxu0
        %2731 = vmatprep.subr.mxu0 %v1278
        %2732 = vmatpush1.msra.mxu0 %v1277
        %2733 = vmatprep.subr.mxu0 %v1310
        %2734 = vmatpush1.msra.mxu0 %v1309
        %2735 = vmatprep.subr.mxu0 %v1342
        %2736 = vmatpush1.msra.mxu0 %v1341
        %2737 = vmatprep.subr.mxu0 %v1374
        %2738 = vmatpush1.msra.mxu0 %v1373
        %2739 = vmatprep.subr.mxu0 %v1406
        %2740 = vmatpush1.msra.mxu0 %v1405
        %2741 = vmatprep.subr.mxu0 %v1438
        %2742 = vmatpush1.msra.mxu0 %v1437
        %2743 = vmatprep.subr.mxu0 %v1470
        %2744 = vmatpush1.msra.mxu0 %v1469
        %2745 = vmatprep.subr.mxu0 %v1752
        %2746 = vmatpush1.msra.mxu0 %v1749
        %2747 = vmatprep.subr.mxu0 0.0
        %2748 = vmatpush1.msra.mxu0 0.0
        %2749 = vmatprep.subr.mxu0 0.0
        %2750 = vmatpush1.msra.mxu0 0.0
        %2751 = vmatprep.subr.mxu0 0.0
        %2752 = vmatpush1.msra.mxu0 0.0
        %2753 = vmatprep.subr.mxu0 0.0
        %2754 = vmatpush1.msra.mxu0 0.0
        %2755 = vmatprep.subr.mxu0 0.0
        %2756 = vmatpush1.msra.mxu0 0.0
        %2757 = vmatprep.subr.mxu0 0.0
        %2758 = vmatpush1.msra.mxu0 0.0
        %2759 = vmatprep.subr.mxu0 0.0
        %2760 = vmatpush1.msra.mxu0 0.0
        %2761 = vmatprep.subr.mxu0 0.0
        %2762 = vmatpush1.msra.mxu0 0.0
        %2763 = vmatprep.subr.mxu0 0.0
        %2764 = vmatpush1.msra.mxu0 0.0
        %2765 = vmatprep.subr.mxu0 0.0
        %2766 = vmatpush1.msra.mxu0 0.0
        %2767 = vmatprep.subr.mxu0 0.0
        %2768 = vmatpush1.msra.mxu0 0.0
        %2769 = vmatprep.subr.mxu0 0.0
        %2770 = vmatpush1.msra.mxu0 0.0
        %2771 = vmatprep.subr.mxu0 0.0
        %2772 = vmatpush1.msra.mxu0 0.0
        %2773 = vmatprep.subr.mxu0 0.0
        %2774 = vmatpush1.msra.mxu0 0.0
        %2775 = vmatprep.subr.mxu0 0.0
        %2776 = vmatpush1.msra.mxu0 0.0
        %2777 = vmatprep.subr.mxu0 0.0
        %2778 = vmatpush1.msra.mxu0 0.0
        %2779 = vmatprep.subr.mxu0 0.0
        %2780 = vmatpush1.msra.mxu0 0.0
        %2781 = vmatprep.subr.mxu0 0.0
        %2782 = vmatpush1.msra.mxu0 0.0
        %2783 = vmatprep.subr.mxu0 0.0
        %2784 = vmatpush1.msra.mxu0 0.0
        %2785 = vmatprep.subr.mxu0 0.0
        %2786 = vmatpush1.msra.mxu0 0.0
        %2787 = vmatprep.subr.mxu0 0.0
        %2788 = vmatpush1.msra.mxu0 0.0
        %2789 = vmatprep.subr.mxu0 0.0
        %2790 = vmatpush1.msra.mxu0 0.0
        %2791 = vmatprep.subr.mxu0 0.0
        %2792 = vmatpush1.msra.mxu0 0.0
        %2793 = vmatprep.subr.mxu0 0.0
        %2794 = vmatpush1.msra.mxu0 0.0
        %2795 = vmatprep.mubr.f32.mxu0 0.0
        %2796 = vmatmul.mubr.f32.gmra.mrb[0].mxu0 %v1709
        %v2797 = vpop.f32.mrb[0].mxu0
        %v2798 = vadd.f32 %v2727, %v2797
        %v2799 = vpop.f32.mrb[0].mxu0
        %v2800 = vadd.f32 %v2729, %v2799
        %2801 = vdwg.mxu0
        %2802 = vmatprep.subr.mxu0 %v256
        %2803 = vmatpush1.msra.mxu0 %v255
        %2804 = vmatprep.subr.mxu0 %v288
        %2805 = vmatpush1.msra.mxu0 %v287
        %2806 = vmatprep.subr.mxu0 %v320
        %2807 = vmatpush1.msra.mxu0 %v319
        %2808 = vmatprep.subr.mxu0 %v352
        %2809 = vmatpush1.msra.mxu0 %v351
        %2810 = vmatprep.subr.mxu0 %v384
        %2811 = vmatpush1.msra.mxu0 %v383
        %2812 = vmatprep.subr.mxu0 %v416
        %2813 = vmatpush1.msra.mxu0 %v415
        %2814 = vmatprep.subr.mxu0 %v448
        %2815 = vmatpush1.msra.mxu0 %v447
        %2816 = vmatprep.subr.mxu0 %v480
        %2817 = vmatpush1.msra.mxu0 %v479
        %2818 = vmatprep.subr.mxu0 %v512
        %2819 = vmatpush1.msra.mxu0 %v511
        %2820 = vmatprep.subr.mxu0 %v544
        %2821 = vmatpush1.msra.mxu0 %v543
        %2822 = vmatprep.subr.mxu0 %v576
        %2823 = vmatpush1.msra.mxu0 %v575
        %2824 = vmatprep.subr.mxu0 %v608
        %2825 = vmatpush1.msra.mxu0 %v607
        %2826 = vmatprep.subr.mxu0 %v640
        %2827 = vmatpush1.msra.mxu0 %v639
        %2828 = vmatprep.subr.mxu0 %v672
        %2829 = vmatpush1.msra.mxu0 %v671
        %2830 = vmatprep.subr.mxu0 %v704
        %2831 = vmatpush1.msra.mxu0 %v703
        %2832 = vmatprep.subr.mxu0 %v736
        %2833 = vmatpush1.msra.mxu0 %v735
        %2834 = vmatprep.subr.mxu0 %v768
        %2835 = vmatpush1.msra.mxu0 %v767
        %2836 = vmatprep.subr.mxu0 %v800
        %2837 = vmatpush1.msra.mxu0 %v799
        %2838 = vmatprep.subr.mxu0 %v832
        %2839 = vmatpush1.msra.mxu0 %v831
        %2840 = vmatprep.subr.mxu0 %v864
        %2841 = vmatpush1.msra.mxu0 %v863
        %2842 = vmatprep.subr.mxu0 %v896
        %2843 = vmatpush1.msra.mxu0 %v895
        %2844 = vmatprep.subr.mxu0 %v928
        %2845 = vmatpush1.msra.mxu0 %v927
        %2846 = vmatprep.subr.mxu0 %v960
        %2847 = vmatpush1.msra.mxu0 %v959
        %2848 = vmatprep.subr.mxu0 %v992
        %2849 = vmatpush1.msra.mxu0 %v991
        %2850 = vmatprep.subr.mxu0 %v1024
        %2851 = vmatpush1.msra.mxu0 %v1023
        %2852 = vmatprep.subr.mxu0 %v1056
        %2853 = vmatpush1.msra.mxu0 %v1055
        %2854 = vmatprep.subr.mxu0 %v1088
        %2855 = vmatpush1.msra.mxu0 %v1087
        %2856 = vmatprep.subr.mxu0 %v1120
        %2857 = vmatpush1.msra.mxu0 %v1119
        %2858 = vmatprep.subr.mxu0 %v1152
        %2859 = vmatpush1.msra.mxu0 %v1151
        %2860 = vmatprep.subr.mxu0 %v1184
        %2861 = vmatpush1.msra.mxu0 %v1183
        %2862 = vmatprep.subr.mxu0 %v1216
        %2863 = vmatpush1.msra.mxu0 %v1215
        %2864 = vmatprep.subr.mxu0 %v1248
        %2865 = vmatpush1.msra.mxu0 %v1247
        %2866 = vmatprep.mubr.f32.mxu0 %v1705
        %2867 = vmatmul.mubr.f32.gmra.mrb[0].mxu0 %v1697
        %v2868 = vpop.f32.mrb[0].mxu0
        %v2869 = vadd.f32 %v1588, %v2868
        %v2870 = vpop.f32.mrb[0].mxu0
        %v2871 = vadd.f32 %v1592, %v2870
        %2872 = vdwg.mxu0
        %2873 = vmatprep.subr.mxu0 %v1280
        %2874 = vmatpush1.msra.mxu0 %v1279
        %2875 = vmatprep.subr.mxu0 %v1312
        %2876 = vmatpush1.msra.mxu0 %v1311
        %2877 = vmatprep.subr.mxu0 %v1344
        %2878 = vmatpush1.msra.mxu0 %v1343
        %2879 = vmatprep.subr.mxu0 %v1376
        %2880 = vmatpush1.msra.mxu0 %v1375
        %2881 = vmatprep.subr.mxu0 %v1408
        %2882 = vmatpush1.msra.mxu0 %v1407
        %2883 = vmatprep.subr.mxu0 %v1440
        %2884 = vmatpush1.msra.mxu0 %v1439
        %2885 = vmatprep.subr.mxu0 %v1472
        %2886 = vmatpush1.msra.mxu0 %v1471
        %2887 = vmatprep.subr.mxu0 %v1758
        %2888 = vmatpush1.msra.mxu0 %v1755
        %2889 = vmatprep.subr.mxu0 0.0
        %2890 = vmatpush1.msra.mxu0 0.0
        %2891 = vmatprep.subr.mxu0 0.0
        %2892 = vmatpush1.msra.mxu0 0.0
        %2893 = vmatprep.subr.mxu0 0.0
        %2894 = vmatpush1.msra.mxu0 0.0
        %2895 = vmatprep.subr.mxu0 0.0
        %2896 = vmatpush1.msra.mxu0 0.0
        %2897 = vmatprep.subr.mxu0 0.0
        %2898 = vmatpush1.msra.mxu0 0.0
        %2899 = vmatprep.subr.mxu0 0.0
        %2900 = vmatpush1.msra.mxu0 0.0
        %2901 = vmatprep.subr.mxu0 0.0
        %2902 = vmatpush1.msra.mxu0 0.0
        %2903 = vmatprep.subr.mxu0 0.0
        %2904 = vmatpush1.msra.mxu0 0.0
        %2905 = vmatprep.subr.mxu0 0.0
        %2906 = vmatpush1.msra.mxu0 0.0
        %2907 = vmatprep.subr.mxu0 0.0
        %2908 = vmatpush1.msra.mxu0 0.0
        %2909 = vmatprep.subr.mxu0 0.0
        %2910 = vmatpush1.msra.mxu0 0.0
        %2911 = vmatprep.subr.mxu0 0.0
        %2912 = vmatpush1.msra.mxu0 0.0
        %2913 = vmatprep.subr.mxu0 0.0
        %2914 = vmatpush1.msra.mxu0 0.0
        %2915 = vmatprep.subr.mxu0 0.0
        %2916 = vmatpush1.msra.mxu0 0.0
        %2917 = vmatprep.subr.mxu0 0.0
        %2918 = vmatpush1.msra.mxu0 0.0
        %2919 = vmatprep.subr.mxu0 0.0
        %2920 = vmatpush1.msra.mxu0 0.0
        %2921 = vmatprep.subr.mxu0 0.0
        %2922 = vmatpush1.msra.mxu0 0.0
        %2923 = vmatprep.subr.mxu0 0.0
        %2924 = vmatpush1.msra.mxu0 0.0
        %2925 = vmatprep.subr.mxu0 0.0
        %2926 = vmatpush1.msra.mxu0 0.0
        %2927 = vmatprep.subr.mxu0 0.0
        %2928 = vmatpush1.msra.mxu0 0.0
        %2929 = vmatprep.subr.mxu0 0.0
        %2930 = vmatpush1.msra.mxu0 0.0
        %2931 = vmatprep.subr.mxu0 0.0
        %2932 = vmatpush1.msra.mxu0 0.0
        %2933 = vmatprep.subr.mxu0 0.0
        %2934 = vmatpush1.msra.mxu0 0.0
        %2935 = vmatprep.subr.mxu0 0.0
        %2936 = vmatpush1.msra.mxu0 0.0
        %2937 = vmatprep.mubr.f32.mxu0 0.0
        %2938 = vmatmul.mubr.f32.gmra.mrb[0].mxu0 %v1709
        %v2939 = vpop.f32.mrb[0].mxu0
        %v2940 = vadd.f32 %v2869, %v2939
        %v2941 = vpop.f32.mrb[0].mxu0
        %v2942 = vadd.f32 %v2871, %v2941
        %2943 = vdwg.mxu0
        %2944 = vmatprep.subr.mxu0 %v258
        %2945 = vmatpush1.msra.mxu0 %v257
        %2946 = vmatprep.subr.mxu0 %v290
        %2947 = vmatpush1.msra.mxu0 %v289
        %2948 = vmatprep.subr.mxu0 %v322
        %2949 = vmatpush1.msra.mxu0 %v321
        %2950 = vmatprep.subr.mxu0 %v354
        %2951 = vmatpush1.msra.mxu0 %v353
        %2952 = vmatprep.subr.mxu0 %v386
        %2953 = vmatpush1.msra.mxu0 %v385
        %2954 = vmatprep.subr.mxu0 %v418
        %2955 = vmatpush1.msra.mxu0 %v417
        %2956 = vmatprep.subr.mxu0 %v450
        %2957 = vmatpush1.msra.mxu0 %v449
        %2958 = vmatprep.subr.mxu0 %v482
        %2959 = vmatpush1.msra.mxu0 %v481
        %2960 = vmatprep.subr.mxu0 %v514
        %2961 = vmatpush1.msra.mxu0 %v513
        %2962 = vmatprep.subr.mxu0 %v546
        %2963 = vmatpush1.msra.mxu0 %v545
        %2964 = vmatprep.subr.mxu0 %v578
        %2965 = vmatpush1.msra.mxu0 %v577
        %2966 = vmatprep.subr.mxu0 %v610
        %2967 = vmatpush1.msra.mxu0 %v609
        %2968 = vmatprep.subr.mxu0 %v642
        %2969 = vmatpush1.msra.mxu0 %v641
        %2970 = vmatprep.subr.mxu0 %v674
        %2971 = vmatpush1.msra.mxu0 %v673
        %2972 = vmatprep.subr.mxu0 %v706
        %2973 = vmatpush1.msra.mxu0 %v705
        %2974 = vmatprep.subr.mxu0 %v738
        %2975 = vmatpush1.msra.mxu0 %v737
        %2976 = vmatprep.subr.mxu0 %v770
        %2977 = vmatpush1.msra.mxu0 %v769
        %2978 = vmatprep.subr.mxu0 %v802
        %2979 = vmatpush1.msra.mxu0 %v801
        %2980 = vmatprep.subr.mxu0 %v834
        %2981 = vmatpush1.msra.mxu0 %v833
        %2982 = vmatprep.subr.mxu0 %v866
        %2983 = vmatpush1.msra.mxu0 %v865
        %2984 = vmatprep.subr.mxu0 %v898
        %2985 = vmatpush1.msra.mxu0 %v897
        %2986 = vmatprep.subr.mxu0 %v930
        %2987 = vmatpush1.msra.mxu0 %v929
        %2988 = vmatprep.subr.mxu0 %v962
        %2989 = vmatpush1.msra.mxu0 %v961
        %2990 = vmatprep.subr.mxu0 %v994
        %2991 = vmatpush1.msra.mxu0 %v993
        %2992 = vmatprep.subr.mxu0 %v1026
        %2993 = vmatpush1.msra.mxu0 %v1025
        %2994 = vmatprep.subr.mxu0 %v1058
        %2995 = vmatpush1.msra.mxu0 %v1057
        %2996 = vmatprep.subr.mxu0 %v1090
        %2997 = vmatpush1.msra.mxu0 %v1089
        %2998 = vmatprep.subr.mxu0 %v1122
        %2999 = vmatpush1.msra.mxu0 %v1121
        %3000 = vmatprep.subr.mxu0 %v1154
        %3001 = vmatpush1.msra.mxu0 %v1153
        %3002 = vmatprep.subr.mxu0 %v1186
        %3003 = vmatpush1.msra.mxu0 %v1185
        %3004 = vmatprep.subr.mxu0 %v1218
        %3005 = vmatpush1.msra.mxu0 %v1217
        %3006 = vmatprep.subr.mxu0 %v1250
        %3007 = vmatpush1.msra.mxu0 %v1249
        %3008 = vmatprep.mubr.f32.mxu0 %v1705
        %3009 = vmatmul.mubr.f32.gmra.mrb[0].mxu0 %v1697
        %v3010 = vpop.f32.mrb[0].mxu0
        %v3011 = vadd.f32 %v1596, %v3010
        %v3012 = vpop.f32.mrb[0].mxu0
        %v3013 = vadd.f32 %v1600, %v3012
        %3014 = vdwg.mxu0
        %3015 = vmatprep.subr.mxu0 %v1282
        %3016 = vmatpush1.msra.mxu0 %v1281
        %3017 = vmatprep.subr.mxu0 %v1314
        %3018 = vmatpush1.msra.mxu0 %v1313
        %3019 = vmatprep.subr.mxu0 %v1346
        %3020 = vmatpush1.msra.mxu0 %v1345
        %3021 = vmatprep.subr.mxu0 %v1378
        %3022 = vmatpush1.msra.mxu0 %v1377
        %3023 = vmatprep.subr.mxu0 %v1410
        %3024 = vmatpush1.msra.mxu0 %v1409
        %3025 = vmatprep.subr.mxu0 %v1442
        %3026 = vmatpush1.msra.mxu0 %v1441
        %3027 = vmatprep.subr.mxu0 %v1474
        %3028 = vmatpush1.msra.mxu0 %v1473
        %3029 = vmatprep.subr.mxu0 %v1764
        %3030 = vmatpush1.msra.mxu0 %v1761
        %3031 = vmatprep.subr.mxu0 0.0
        %3032 = vmatpush1.msra.mxu0 0.0
        %3033 = vmatprep.subr.mxu0 0.0
        %3034 = vmatpush1.msra.mxu0 0.0
        %3035 = vmatprep.subr.mxu0 0.0
        %3036 = vmatpush1.msra.mxu0 0.0
        %3037 = vmatprep.subr.mxu0 0.0
        %3038 = vmatpush1.msra.mxu0 0.0
        %3039 = vmatprep.subr.mxu0 0.0
        %3040 = vmatpush1.msra.mxu0 0.0
        %3041 = vmatprep.subr.mxu0 0.0
        %3042 = vmatpush1.msra.mxu0 0.0
        %3043 = vmatprep.subr.mxu0 0.0
        %3044 = vmatpush1.msra.mxu0 0.0
        %3045 = vmatprep.subr.mxu0 0.0
        %3046 = vmatpush1.msra.mxu0 0.0
        %3047 = vmatprep.subr.mxu0 0.0
        %3048 = vmatpush1.msra.mxu0 0.0
        %3049 = vmatprep.subr.mxu0 0.0
        %3050 = vmatpush1.msra.mxu0 0.0
        %3051 = vmatprep.subr.mxu0 0.0
        %3052 = vmatpush1.msra.mxu0 0.0
        %3053 = vmatprep.subr.mxu0 0.0
        %3054 = vmatpush1.msra.mxu0 0.0
        %3055 = vmatprep.subr.mxu0 0.0
        %3056 = vmatpush1.msra.mxu0 0.0
        %3057 = vmatprep.subr.mxu0 0.0
        %3058 = vmatpush1.msra.mxu0 0.0
        %3059 = vmatprep.subr.mxu0 0.0
        %3060 = vmatpush1.msra.mxu0 0.0
        %3061 = vmatprep.subr.mxu0 0.0
        %3062 = vmatpush1.msra.mxu0 0.0
        %3063 = vmatprep.subr.mxu0 0.0
        %3064 = vmatpush1.msra.mxu0 0.0
        %3065 = vmatprep.subr.mxu0 0.0
        %3066 = vmatpush1.msra.mxu0 0.0
        %3067 = vmatprep.subr.mxu0 0.0
        %3068 = vmatpush1.msra.mxu0 0.0
        %3069 = vmatprep.subr.mxu0 0.0
        %3070 = vmatpush1.msra.mxu0 0.0
        %3071 = vmatprep.subr.mxu0 0.0
        %3072 = vmatpush1.msra.mxu0 0.0
        %3073 = vmatprep.subr.mxu0 0.0
        %3074 = vmatpush1.msra.mxu0 0.0
        %3075 = vmatprep.subr.mxu0 0.0
        %3076 = vmatpush1.msra.mxu0 0.0
        %3077 = vmatprep.subr.mxu0 0.0
        %3078 = vmatpush1.msra.mxu0 0.0
        %3079 = vmatprep.mubr.f32.mxu0 0.0
        %3080 = vmatmul.mubr.f32.gmra.mrb[0].mxu0 %v1709
        %v3081 = vpop.f32.mrb[0].mxu0
        %v3082 = vadd.f32 %v3011, %v3081
        %v3083 = vpop.f32.mrb[0].mxu0
        %v3084 = vadd.f32 %v3013, %v3083
        %3085 = vdwg.mxu0
        %3086 = vmatprep.subr.mxu0 %v260
        %3087 = vmatpush1.msra.mxu0 %v259
        %3088 = vmatprep.subr.mxu0 %v292
        %3089 = vmatpush1.msra.mxu0 %v291
        %3090 = vmatprep.subr.mxu0 %v324
        %3091 = vmatpush1.msra.mxu0 %v323
        %3092 = vmatprep.subr.mxu0 %v356
        %3093 = vmatpush1.msra.mxu0 %v355
        %3094 = vmatprep.subr.mxu0 %v388
        %3095 = vmatpush1.msra.mxu0 %v387
        %3096 = vmatprep.subr.mxu0 %v420
        %3097 = vmatpush1.msra.mxu0 %v419
        %3098 = vmatprep.subr.mxu0 %v452
        %3099 = vmatpush1.msra.mxu0 %v451
        %3100 = vmatprep.subr.mxu0 %v484
        %3101 = vmatpush1.msra.mxu0 %v483
        %3102 = vmatprep.subr.mxu0 %v516
        %3103 = vmatpush1.msra.mxu0 %v515
        %3104 = vmatprep.subr.mxu0 %v548
        %3105 = vmatpush1.msra.mxu0 %v547
        %3106 = vmatprep.subr.mxu0 %v580
        %3107 = vmatpush1.msra.mxu0 %v579
        %3108 = vmatprep.subr.mxu0 %v612
        %3109 = vmatpush1.msra.mxu0 %v611
        %3110 = vmatprep.subr.mxu0 %v644
        %3111 = vmatpush1.msra.mxu0 %v643
        %3112 = vmatprep.subr.mxu0 %v676
        %3113 = vmatpush1.msra.mxu0 %v675
        %3114 = vmatprep.subr.mxu0 %v708
        %3115 = vmatpush1.msra.mxu0 %v707
        %3116 = vmatprep.subr.mxu0 %v740
        %3117 = vmatpush1.msra.mxu0 %v739
        %3118 = vmatprep.subr.mxu0 %v772
        %3119 = vmatpush1.msra.mxu0 %v771
        %3120 = vmatprep.subr.mxu0 %v804
        %3121 = vmatpush1.msra.mxu0 %v803
        %3122 = vmatprep.subr.mxu0 %v836
        %3123 = vmatpush1.msra.mxu0 %v835
        %3124 = vmatprep.subr.mxu0 %v868
        %3125 = vmatpush1.msra.mxu0 %v867
        %3126 = vmatprep.subr.mxu0 %v900
        %3127 = vmatpush1.msra.mxu0 %v899
        %3128 = vmatprep.subr.mxu0 %v932
        %3129 = vmatpush1.msra.mxu0 %v931
        %3130 = vmatprep.subr.mxu0 %v964
        %3131 = vmatpush1.msra.mxu0 %v963
        %3132 = vmatprep.subr.mxu0 %v996
        %3133 = vmatpush1.msra.mxu0 %v995
        %3134 = vmatprep.subr.mxu0 %v1028
        %3135 = vmatpush1.msra.mxu0 %v1027
        %3136 = vmatprep.subr.mxu0 %v1060
        %3137 = vmatpush1.msra.mxu0 %v1059
        %3138 = vmatprep.subr.mxu0 %v1092
        %3139 = vmatpush1.msra.mxu0 %v1091
        %3140 = vmatprep.subr.mxu0 %v1124
        %3141 = vmatpush1.msra.mxu0 %v1123
        %3142 = vmatprep.subr.mxu0 %v1156
        %3143 = vmatpush1.msra.mxu0 %v1155
        %3144 = vmatprep.subr.mxu0 %v1188
        %3145 = vmatpush1.msra.mxu0 %v1187
        %3146 = vmatprep.subr.mxu0 %v1220
        %3147 = vmatpush1.msra.mxu0 %v1219
        %3148 = vmatprep.subr.mxu0 %v1252
        %3149 = vmatpush1.msra.mxu0 %v1251
        %3150 = vmatprep.mubr.f32.mxu0 %v1705
        %3151 = vmatmul.mubr.f32.gmra.mrb[0].mxu0 %v1697
        %v3152 = vpop.f32.mrb[0].mxu0
        %v3153 = vadd.f32 %v1604, %v3152
        %v3154 = vpop.f32.mrb[0].mxu0
        %v3155 = vadd.f32 %v1608, %v3154
        %3156 = vdwg.mxu0
        %3157 = vmatprep.subr.mxu0 %v1284
        %3158 = vmatpush1.msra.mxu0 %v1283
        %3159 = vmatprep.subr.mxu0 %v1316
        %3160 = vmatpush1.msra.mxu0 %v1315
        %3161 = vmatprep.subr.mxu0 %v1348
        %3162 = vmatpush1.msra.mxu0 %v1347
        %3163 = vmatprep.subr.mxu0 %v1380
        %3164 = vmatpush1.msra.mxu0 %v1379
        %3165 = vmatprep.subr.mxu0 %v1412
        %3166 = vmatpush1.msra.mxu0 %v1411
        %3167 = vmatprep.subr.mxu0 %v1444
        %3168 = vmatpush1.msra.mxu0 %v1443
        %3169 = vmatprep.subr.mxu0 %v1476
        %3170 = vmatpush1.msra.mxu0 %v1475
        %3171 = vmatprep.subr.mxu0 %v1770
        %3172 = vmatpush1.msra.mxu0 %v1767
        %3173 = vmatprep.subr.mxu0 0.0
        %3174 = vmatpush1.msra.mxu0 0.0
        %3175 = vmatprep.subr.mxu0 0.0
        %3176 = vmatpush1.msra.mxu0 0.0
        %3177 = vmatprep.subr.mxu0 0.0
        %3178 = vmatpush1.msra.mxu0 0.0
        %3179 = vmatprep.subr.mxu0 0.0
        %3180 = vmatpush1.msra.mxu0 0.0
        %3181 = vmatprep.subr.mxu0 0.0
        %3182 = vmatpush1.msra.mxu0 0.0
        %3183 = vmatprep.subr.mxu0 0.0
        %3184 = vmatpush1.msra.mxu0 0.0
        %3185 = vmatprep.subr.mxu0 0.0
        %3186 = vmatpush1.msra.mxu0 0.0
        %3187 = vmatprep.subr.mxu0 0.0
        %3188 = vmatpush1.msra.mxu0 0.0
        %3189 = vmatprep.subr.mxu0 0.0
        %3190 = vmatpush1.msra.mxu0 0.0
        %3191 = vmatprep.subr.mxu0 0.0
        %3192 = vmatpush1.msra.mxu0 0.0
        %3193 = vmatprep.subr.mxu0 0.0
        %3194 = vmatpush1.msra.mxu0 0.0
        %3195 = vmatprep.subr.mxu0 0.0
        %3196 = vmatpush1.msra.mxu0 0.0
        %3197 = vmatprep.subr.mxu0 0.0
        %3198 = vmatpush1.msra.mxu0 0.0
        %3199 = vmatprep.subr.mxu0 0.0
        %3200 = vmatpush1.msra.mxu0 0.0
        %3201 = vmatprep.subr.mxu0 0.0
        %3202 = vmatpush1.msra.mxu0 0.0
        %3203 = vmatprep.subr.mxu0 0.0
        %3204 = vmatpush1.msra.mxu0 0.0
        %3205 = vmatprep.subr.mxu0 0.0
        %3206 = vmatpush1.msra.mxu0 0.0
        %3207 = vmatprep.subr.mxu0 0.0
        %3208 = vmatpush1.msra.mxu0 0.0
        %3209 = vmatprep.subr.mxu0 0.0
        %3210 = vmatpush1.msra.mxu0 0.0
        %3211 = vmatprep.subr.mxu0 0.0
        %3212 = vmatpush1.msra.mxu0 0.0
        %3213 = vmatprep.subr.mxu0 0.0
        %3214 = vmatpush1.msra.mxu0 0.0
        %3215 = vmatprep.subr.mxu0 0.0
        %3216 = vmatpush1.msra.mxu0 0.0
        %3217 = vmatprep.subr.mxu0 0.0
        %3218 = vmatpush1.msra.mxu0 0.0
        %3219 = vmatprep.subr.mxu0 0.0
        %3220 = vmatpush1.msra.mxu0 0.0
        %3221 = vmatprep.mubr.f32.mxu0 0.0
        %3222 = vmatmul.mubr.f32.gmra.mrb[0].mxu0 %v1709
        %v3223 = vpop.f32.mrb[0].mxu0
        %v3224 = vadd.f32 %v3153, %v3223
        %v3225 = vpop.f32.mrb[0].mxu0
        %v3226 = vadd.f32 %v3155, %v3225
        %3227 = vdwg.mxu0
        %3228 = vmatprep.subr.mxu0 %v262
        %3229 = vmatpush1.msra.mxu0 %v261
        %3230 = vmatprep.subr.mxu0 %v294
        %3231 = vmatpush1.msra.mxu0 %v293
        %3232 = vmatprep.subr.mxu0 %v326
        %3233 = vmatpush1.msra.mxu0 %v325
        %3234 = vmatprep.subr.mxu0 %v358
        %3235 = vmatpush1.msra.mxu0 %v357
        %3236 = vmatprep.subr.mxu0 %v390
        %3237 = vmatpush1.msra.mxu0 %v389
        %3238 = vmatprep.subr.mxu0 %v422
        %3239 = vmatpush1.msra.mxu0 %v421
        %3240 = vmatprep.subr.mxu0 %v454
        %3241 = vmatpush1.msra.mxu0 %v453
        %3242 = vmatprep.subr.mxu0 %v486
        %3243 = vmatpush1.msra.mxu0 %v485
        %3244 = vmatprep.subr.mxu0 %v518
        %3245 = vmatpush1.msra.mxu0 %v517
        %3246 = vmatprep.subr.mxu0 %v550
        %3247 = vmatpush1.msra.mxu0 %v549
        %3248 = vmatprep.subr.mxu0 %v582
        %3249 = vmatpush1.msra.mxu0 %v581
        %3250 = vmatprep.subr.mxu0 %v614
        %3251 = vmatpush1.msra.mxu0 %v613
        %3252 = vmatprep.subr.mxu0 %v646
        %3253 = vmatpush1.msra.mxu0 %v645
        %3254 = vmatprep.subr.mxu0 %v678
        %3255 = vmatpush1.msra.mxu0 %v677
        %3256 = vmatprep.subr.mxu0 %v710
        %3257 = vmatpush1.msra.mxu0 %v709
        %3258 = vmatprep.subr.mxu0 %v742
        %3259 = vmatpush1.msra.mxu0 %v741
        %3260 = vmatprep.subr.mxu0 %v774
        %3261 = vmatpush1.msra.mxu0 %v773
        %3262 = vmatprep.subr.mxu0 %v806
        %3263 = vmatpush1.msra.mxu0 %v805
        %3264 = vmatprep.subr.mxu0 %v838
        %3265 = vmatpush1.msra.mxu0 %v837
        %3266 = vmatprep.subr.mxu0 %v870
        %3267 = vmatpush1.msra.mxu0 %v869
        %3268 = vmatprep.subr.mxu0 %v902
        %3269 = vmatpush1.msra.mxu0 %v901
        %3270 = vmatprep.subr.mxu0 %v934
        %3271 = vmatpush1.msra.mxu0 %v933
        %3272 = vmatprep.subr.mxu0 %v966
        %3273 = vmatpush1.msra.mxu0 %v965
        %3274 = vmatprep.subr.mxu0 %v998
        %3275 = vmatpush1.msra.mxu0 %v997
        %3276 = vmatprep.subr.mxu0 %v1030
        %3277 = vmatpush1.msra.mxu0 %v1029
        %3278 = vmatprep.subr.mxu0 %v1062
        %3279 = vmatpush1.msra.mxu0 %v1061
        %3280 = vmatprep.subr.mxu0 %v1094
        %3281 = vmatpush1.msra.mxu0 %v1093
        %3282 = vmatprep.subr.mxu0 %v1126
        %3283 = vmatpush1.msra.mxu0 %v1125
        %3284 = vmatprep.subr.mxu0 %v1158
        %3285 = vmatpush1.msra.mxu0 %v1157
        %3286 = vmatprep.subr.mxu0 %v1190
        %3287 = vmatpush1.msra.mxu0 %v1189
        %3288 = vmatprep.subr.mxu0 %v1222
        %3289 = vmatpush1.msra.mxu0 %v1221
        %3290 = vmatprep.subr.mxu0 %v1254
        %3291 = vmatpush1.msra.mxu0 %v1253
        %3292 = vmatprep.mubr.f32.mxu0 %v1705
        %3293 = vmatmul.mubr.f32.gmra.mrb[0].mxu0 %v1697
        %v3294 = vpop.f32.mrb[0].mxu0
        %v3295 = vadd.f32 %v1612, %v3294
        %v3296 = vpop.f32.mrb[0].mxu0
        %v3297 = vadd.f32 %v1616, %v3296
        %3298 = vdwg.mxu0
        %3299 = vmatprep.subr.mxu0 %v1286
        %3300 = vmatpush1.msra.mxu0 %v1285
        %3301 = vmatprep.subr.mxu0 %v1318
        %3302 = vmatpush1.msra.mxu0 %v1317
        %3303 = vmatprep.subr.mxu0 %v1350
        %3304 = vmatpush1.msra.mxu0 %v1349
        %3305 = vmatprep.subr.mxu0 %v1382
        %3306 = vmatpush1.msra.mxu0 %v1381
        %3307 = vmatprep.subr.mxu0 %v1414
        %3308 = vmatpush1.msra.mxu0 %v1413
        %3309 = vmatprep.subr.mxu0 %v1446
        %3310 = vmatpush1.msra.mxu0 %v1445
        %3311 = vmatprep.subr.mxu0 %v1478
        %3312 = vmatpush1.msra.mxu0 %v1477
        %3313 = vmatprep.subr.mxu0 %v1776
        %3314 = vmatpush1.msra.mxu0 %v1773
        %3315 = vmatprep.subr.mxu0 0.0
        %3316 = vmatpush1.msra.mxu0 0.0
        %3317 = vmatprep.subr.mxu0 0.0
        %3318 = vmatpush1.msra.mxu0 0.0
        %3319 = vmatprep.subr.mxu0 0.0
        %3320 = vmatpush1.msra.mxu0 0.0
        %3321 = vmatprep.subr.mxu0 0.0
        %3322 = vmatpush1.msra.mxu0 0.0
        %3323 = vmatprep.subr.mxu0 0.0
        %3324 = vmatpush1.msra.mxu0 0.0
        %3325 = vmatprep.subr.mxu0 0.0
        %3326 = vmatpush1.msra.mxu0 0.0
        %3327 = vmatprep.subr.mxu0 0.0
        %3328 = vmatpush1.msra.mxu0 0.0
        %3329 = vmatprep.subr.mxu0 0.0
        %3330 = vmatpush1.msra.mxu0 0.0
        %3331 = vmatprep.subr.mxu0 0.0
        %3332 = vmatpush1.msra.mxu0 0.0
        %3333 = vmatprep.subr.mxu0 0.0
        %3334 = vmatpush1.msra.mxu0 0.0
        %3335 = vmatprep.subr.mxu0 0.0
        %3336 = vmatpush1.msra.mxu0 0.0
        %3337 = vmatprep.subr.mxu0 0.0
        %3338 = vmatpush1.msra.mxu0 0.0
        %3339 = vmatprep.subr.mxu0 0.0
        %3340 = vmatpush1.msra.mxu0 0.0
        %3341 = vmatprep.subr.mxu0 0.0
        %3342 = vmatpush1.msra.mxu0 0.0
        %3343 = vmatprep.subr.mxu0 0.0
        %3344 = vmatpush1.msra.mxu0 0.0
        %3345 = vmatprep.subr.mxu0 0.0
        %3346 = vmatpush1.msra.mxu0 0.0
        %3347 = vmatprep.subr.mxu0 0.0
        %3348 = vmatpush1.msra.mxu0 0.0
        %3349 = vmatprep.subr.mxu0 0.0
        %3350 = vmatpush1.msra.mxu0 0.0
        %3351 = vmatprep.subr.mxu0 0.0
        %3352 = vmatpush1.msra.mxu0 0.0
        %3353 = vmatprep.subr.mxu0 0.0
        %3354 = vmatpush1.msra.mxu0 0.0
        %3355 = vmatprep.subr.mxu0 0.0
        %3356 = vmatpush1.msra.mxu0 0.0
        %3357 = vmatprep.subr.mxu0 0.0
        %3358 = vmatpush1.msra.mxu0 0.0
        %3359 = vmatprep.subr.mxu0 0.0
        %3360 = vmatpush1.msra.mxu0 0.0
        %3361 = vmatprep.subr.mxu0 0.0
        %3362 = vmatpush1.msra.mxu0 0.0
        %3363 = vmatprep.mubr.f32.mxu0 0.0
        %3364 = vmatmul.mubr.f32.gmra.mrb[0].mxu0 %v1709
        %v3365 = vpop.f32.mrb[0].mxu0
        %v3366 = vadd.f32 %v3295, %v3365
        %v3367 = vpop.f32.mrb[0].mxu0
        %v3368 = vadd.f32 %v3297, %v3367
        %3369 = vdwg.mxu0
        %3370 = vmatprep.subr.mxu0 %v264
        %3371 = vmatpush1.msra.mxu0 %v263
        %3372 = vmatprep.subr.mxu0 %v296
        %3373 = vmatpush1.msra.mxu0 %v295
        %3374 = vmatprep.subr.mxu0 %v328
        %3375 = vmatpush1.msra.mxu0 %v327
        %3376 = vmatprep.subr.mxu0 %v360
        %3377 = vmatpush1.msra.mxu0 %v359
        %3378 = vmatprep.subr.mxu0 %v392
        %3379 = vmatpush1.msra.mxu0 %v391
        %3380 = vmatprep.subr.mxu0 %v424
        %3381 = vmatpush1.msra.mxu0 %v423
        %3382 = vmatprep.subr.mxu0 %v456
        %3383 = vmatpush1.msra.mxu0 %v455
        %3384 = vmatprep.subr.mxu0 %v488
        %3385 = vmatpush1.msra.mxu0 %v487
        %3386 = vmatprep.subr.mxu0 %v520
        %3387 = vmatpush1.msra.mxu0 %v519
        %3388 = vmatprep.subr.mxu0 %v552
        %3389 = vmatpush1.msra.mxu0 %v551
        %3390 = vmatprep.subr.mxu0 %v584
        %3391 = vmatpush1.msra.mxu0 %v583
        %3392 = vmatprep.subr.mxu0 %v616
        %3393 = vmatpush1.msra.mxu0 %v615
        %3394 = vmatprep.subr.mxu0 %v648
        %3395 = vmatpush1.msra.mxu0 %v647
        %3396 = vmatprep.subr.mxu0 %v680
        %3397 = vmatpush1.msra.mxu0 %v679
        %3398 = vmatprep.subr.mxu0 %v712
        %3399 = vmatpush1.msra.mxu0 %v711
        %3400 = vmatprep.subr.mxu0 %v744
        %3401 = vmatpush1.msra.mxu0 %v743
        %3402 = vmatprep.subr.mxu0 %v776
        %3403 = vmatpush1.msra.mxu0 %v775
        %3404 = vmatprep.subr.mxu0 %v808
        %3405 = vmatpush1.msra.mxu0 %v807
        %3406 = vmatprep.subr.mxu0 %v840
        %3407 = vmatpush1.msra.mxu0 %v839
        %3408 = vmatprep.subr.mxu0 %v872
        %3409 = vmatpush1.msra.mxu0 %v871
        %3410 = vmatprep.subr.mxu0 %v904
        %3411 = vmatpush1.msra.mxu0 %v903
        %3412 = vmatprep.subr.mxu0 %v936
        %3413 = vmatpush1.msra.mxu0 %v935
        %3414 = vmatprep.subr.mxu0 %v968
        %3415 = vmatpush1.msra.mxu0 %v967
        %3416 = vmatprep.subr.mxu0 %v1000
        %3417 = vmatpush1.msra.mxu0 %v999
        %3418 = vmatprep.subr.mxu0 %v1032
        %3419 = vmatpush1.msra.mxu0 %v1031
        %3420 = vmatprep.subr.mxu0 %v1064
        %3421 = vmatpush1.msra.mxu0 %v1063
        %3422 = vmatprep.subr.mxu0 %v1096
        %3423 = vmatpush1.msra.mxu0 %v1095
        %3424 = vmatprep.subr.mxu0 %v1128
        %3425 = vmatpush1.msra.mxu0 %v1127
        %3426 = vmatprep.subr.mxu0 %v1160
        %3427 = vmatpush1.msra.mxu0 %v1159
        %3428 = vmatprep.subr.mxu0 %v1192
        %3429 = vmatpush1.msra.mxu0 %v1191
        %3430 = vmatprep.subr.mxu0 %v1224
        %3431 = vmatpush1.msra.mxu0 %v1223
        %3432 = vmatprep.subr.mxu0 %v1256
        %3433 = vmatpush1.msra.mxu0 %v1255
        %3434 = vmatprep.mubr.f32.mxu0 %v1705
        %3435 = vmatmul.mubr.f32.gmra.mrb[0].mxu0 %v1697
        %v3436 = vpop.f32.mrb[0].mxu0
        %v3437 = vadd.f32 %v1620, %v3436
        %v3438 = vpop.f32.mrb[0].mxu0
        %v3439 = vadd.f32 %v1624, %v3438
        %3440 = vdwg.mxu0
        %3441 = vmatprep.subr.mxu0 %v1288
        %3442 = vmatpush1.msra.mxu0 %v1287
        %3443 = vmatprep.subr.mxu0 %v1320
        %3444 = vmatpush1.msra.mxu0 %v1319
        %3445 = vmatprep.subr.mxu0 %v1352
        %3446 = vmatpush1.msra.mxu0 %v1351
        %3447 = vmatprep.subr.mxu0 %v1384
        %3448 = vmatpush1.msra.mxu0 %v1383
        %3449 = vmatprep.subr.mxu0 %v1416
        %3450 = vmatpush1.msra.mxu0 %v1415
        %3451 = vmatprep.subr.mxu0 %v1448
        %3452 = vmatpush1.msra.mxu0 %v1447
        %3453 = vmatprep.subr.mxu0 %v1480
        %3454 = vmatpush1.msra.mxu0 %v1479
        %3455 = vmatprep.subr.mxu0 %v1782
        %3456 = vmatpush1.msra.mxu0 %v1779
        %3457 = vmatprep.subr.mxu0 0.0
        %3458 = vmatpush1.msra.mxu0 0.0
        %3459 = vmatprep.subr.mxu0 0.0
        %3460 = vmatpush1.msra.mxu0 0.0
        %3461 = vmatprep.subr.mxu0 0.0
        %3462 = vmatpush1.msra.mxu0 0.0
        %3463 = vmatprep.subr.mxu0 0.0
        %3464 = vmatpush1.msra.mxu0 0.0
        %3465 = vmatprep.subr.mxu0 0.0
        %3466 = vmatpush1.msra.mxu0 0.0
        %3467 = vmatprep.subr.mxu0 0.0
        %3468 = vmatpush1.msra.mxu0 0.0
        %3469 = vmatprep.subr.mxu0 0.0
        %3470 = vmatpush1.msra.mxu0 0.0
        %3471 = vmatprep.subr.mxu0 0.0
        %3472 = vmatpush1.msra.mxu0 0.0
        %3473 = vmatprep.subr.mxu0 0.0
        %3474 = vmatpush1.msra.mxu0 0.0
        %3475 = vmatprep.subr.mxu0 0.0
        %3476 = vmatpush1.msra.mxu0 0.0
        %3477 = vmatprep.subr.mxu0 0.0
        %3478 = vmatpush1.msra.mxu0 0.0
        %3479 = vmatprep.subr.mxu0 0.0
        %3480 = vmatpush1.msra.mxu0 0.0
        %3481 = vmatprep.subr.mxu0 0.0
        %3482 = vmatpush1.msra.mxu0 0.0
        %3483 = vmatprep.subr.mxu0 0.0
        %3484 = vmatpush1.msra.mxu0 0.0
        %3485 = vmatprep.subr.mxu0 0.0
        %3486 = vmatpush1.msra.mxu0 0.0
        %3487 = vmatprep.subr.mxu0 0.0
        %3488 = vmatpush1.msra.mxu0 0.0
        %3489 = vmatprep.subr.mxu0 0.0
        %3490 = vmatpush1.msra.mxu0 0.0
        %3491 = vmatprep.subr.mxu0 0.0
        %3492 = vmatpush1.msra.mxu0 0.0
        %3493 = vmatprep.subr.mxu0 0.0
        %3494 = vmatpush1.msra.mxu0 0.0
        %3495 = vmatprep.subr.mxu0 0.0
        %3496 = vmatpush1.msra.mxu0 0.0
        %3497 = vmatprep.subr.mxu0 0.0
        %3498 = vmatpush1.msra.mxu0 0.0
        %3499 = vmatprep.subr.mxu0 0.0
        %3500 = vmatpush1.msra.mxu0 0.0
        %3501 = vmatprep.subr.mxu0 0.0
        %3502 = vmatpush1.msra.mxu0 0.0
        %3503 = vmatprep.subr.mxu0 0.0
        %3504 = vmatpush1.msra.mxu0 0.0
        %3505 = vmatprep.mubr.f32.mxu0 0.0
        %3506 = vmatmul.mubr.f32.gmra.mrb[0].mxu0 %v1709
        %v3507 = vpop.f32.mrb[0].mxu0
        %v3508 = vadd.f32 %v3437, %v3507
        %v3509 = vpop.f32.mrb[0].mxu0
        %v3510 = vadd.f32 %v3439, %v3509
        %3511 = vdwg.mxu0
        %3512 = vmatprep.subr.mxu0 %v266
        %3513 = vmatpush1.msra.mxu0 %v265
        %3514 = vmatprep.subr.mxu0 %v298
        %3515 = vmatpush1.msra.mxu0 %v297
        %3516 = vmatprep.subr.mxu0 %v330
        %3517 = vmatpush1.msra.mxu0 %v329
        %3518 = vmatprep.subr.mxu0 %v362
        %3519 = vmatpush1.msra.mxu0 %v361
        %3520 = vmatprep.subr.mxu0 %v394
        %3521 = vmatpush1.msra.mxu0 %v393
        %3522 = vmatprep.subr.mxu0 %v426
        %3523 = vmatpush1.msra.mxu0 %v425
        %3524 = vmatprep.subr.mxu0 %v458
        %3525 = vmatpush1.msra.mxu0 %v457
        %3526 = vmatprep.subr.mxu0 %v490
        %3527 = vmatpush1.msra.mxu0 %v489
        %3528 = vmatprep.subr.mxu0 %v522
        %3529 = vmatpush1.msra.mxu0 %v521
        %3530 = vmatprep.subr.mxu0 %v554
        %3531 = vmatpush1.msra.mxu0 %v553
        %3532 = vmatprep.subr.mxu0 %v586
        %3533 = vmatpush1.msra.mxu0 %v585
        %3534 = vmatprep.subr.mxu0 %v618
        %3535 = vmatpush1.msra.mxu0 %v617
        %3536 = vmatprep.subr.mxu0 %v650
        %3537 = vmatpush1.msra.mxu0 %v649
        %3538 = vmatprep.subr.mxu0 %v682
        %3539 = vmatpush1.msra.mxu0 %v681
        %3540 = vmatprep.subr.mxu0 %v714
        %3541 = vmatpush1.msra.mxu0 %v713
        %3542 = vmatprep.subr.mxu0 %v746
        %3543 = vmatpush1.msra.mxu0 %v745
        %3544 = vmatprep.subr.mxu0 %v778
        %3545 = vmatpush1.msra.mxu0 %v777
        %3546 = vmatprep.subr.mxu0 %v810
        %3547 = vmatpush1.msra.mxu0 %v809
        %3548 = vmatprep.subr.mxu0 %v842
        %3549 = vmatpush1.msra.mxu0 %v841
        %3550 = vmatprep.subr.mxu0 %v874
        %3551 = vmatpush1.msra.mxu0 %v873
        %3552 = vmatprep.subr.mxu0 %v906
        %3553 = vmatpush1.msra.mxu0 %v905
        %3554 = vmatprep.subr.mxu0 %v938
        %3555 = vmatpush1.msra.mxu0 %v937
        %3556 = vmatprep.subr.mxu0 %v970
        %3557 = vmatpush1.msra.mxu0 %v969
        %3558 = vmatprep.subr.mxu0 %v1002
        %3559 = vmatpush1.msra.mxu0 %v1001
        %3560 = vmatprep.subr.mxu0 %v1034
        %3561 = vmatpush1.msra.mxu0 %v1033
        %3562 = vmatprep.subr.mxu0 %v1066
        %3563 = vmatpush1.msra.mxu0 %v1065
        %3564 = vmatprep.subr.mxu0 %v1098
        %3565 = vmatpush1.msra.mxu0 %v1097
        %3566 = vmatprep.subr.mxu0 %v1130
        %3567 = vmatpush1.msra.mxu0 %v1129
        %3568 = vmatprep.subr.mxu0 %v1162
        %3569 = vmatpush1.msra.mxu0 %v1161
        %3570 = vmatprep.subr.mxu0 %v1194
        %3571 = vmatpush1.msra.mxu0 %v1193
        %3572 = vmatprep.subr.mxu0 %v1226
        %3573 = vmatpush1.msra.mxu0 %v1225
        %3574 = vmatprep.subr.mxu0 %v1258
        %3575 = vmatpush1.msra.mxu0 %v1257
        %3576 = vmatprep.mubr.f32.mxu0 %v1705
        %3577 = vmatmul.mubr.f32.gmra.mrb[0].mxu0 %v1697
        %v3578 = vpop.f32.mrb[0].mxu0
        %v3579 = vadd.f32 %v1628, %v3578
        %v3580 = vpop.f32.mrb[0].mxu0
        %v3581 = vadd.f32 %v1632, %v3580
        %3582 = vdwg.mxu0
        %3583 = vmatprep.subr.mxu0 %v1290
        %3584 = vmatpush1.msra.mxu0 %v1289
        %3585 = vmatprep.subr.mxu0 %v1322
        %3586 = vmatpush1.msra.mxu0 %v1321
        %3587 = vmatprep.subr.mxu0 %v1354
        %3588 = vmatpush1.msra.mxu0 %v1353
        %3589 = vmatprep.subr.mxu0 %v1386
        %3590 = vmatpush1.msra.mxu0 %v1385
        %3591 = vmatprep.subr.mxu0 %v1418
        %3592 = vmatpush1.msra.mxu0 %v1417
        %3593 = vmatprep.subr.mxu0 %v1450
        %3594 = vmatpush1.msra.mxu0 %v1449
        %3595 = vmatprep.subr.mxu0 %v1482
        %3596 = vmatpush1.msra.mxu0 %v1481
        %3597 = vmatprep.subr.mxu0 %v1788
        %3598 = vmatpush1.msra.mxu0 %v1785
        %3599 = vmatprep.subr.mxu0 0.0
        %3600 = vmatpush1.msra.mxu0 0.0
        %3601 = vmatprep.subr.mxu0 0.0
        %3602 = vmatpush1.msra.mxu0 0.0
        %3603 = vmatprep.subr.mxu0 0.0
        %3604 = vmatpush1.msra.mxu0 0.0
        %3605 = vmatprep.subr.mxu0 0.0
        %3606 = vmatpush1.msra.mxu0 0.0
        %3607 = vmatprep.subr.mxu0 0.0
        %3608 = vmatpush1.msra.mxu0 0.0
        %3609 = vmatprep.subr.mxu0 0.0
        %3610 = vmatpush1.msra.mxu0 0.0
        %3611 = vmatprep.subr.mxu0 0.0
        %3612 = vmatpush1.msra.mxu0 0.0
        %3613 = vmatprep.subr.mxu0 0.0
        %3614 = vmatpush1.msra.mxu0 0.0
        %3615 = vmatprep.subr.mxu0 0.0
        %3616 = vmatpush1.msra.mxu0 0.0
        %3617 = vmatprep.subr.mxu0 0.0
        %3618 = vmatpush1.msra.mxu0 0.0
        %3619 = vmatprep.subr.mxu0 0.0
        %3620 = vmatpush1.msra.mxu0 0.0
        %3621 = vmatprep.subr.mxu0 0.0
        %3622 = vmatpush1.msra.mxu0 0.0
        %3623 = vmatprep.subr.mxu0 0.0
        %3624 = vmatpush1.msra.mxu0 0.0
        %3625 = vmatprep.subr.mxu0 0.0
        %3626 = vmatpush1.msra.mxu0 0.0
        %3627 = vmatprep.subr.mxu0 0.0
        %3628 = vmatpush1.msra.mxu0 0.0
        %3629 = vmatprep.subr.mxu0 0.0
        %3630 = vmatpush1.msra.mxu0 0.0
        %3631 = vmatprep.subr.mxu0 0.0
        %3632 = vmatpush1.msra.mxu0 0.0
        %3633 = vmatprep.subr.mxu0 0.0
        %3634 = vmatpush1.msra.mxu0 0.0
        %3635 = vmatprep.subr.mxu0 0.0
        %3636 = vmatpush1.msra.mxu0 0.0
        %3637 = vmatprep.subr.mxu0 0.0
        %3638 = vmatpush1.msra.mxu0 0.0
        %3639 = vmatprep.subr.mxu0 0.0
        %3640 = vmatpush1.msra.mxu0 0.0
        %3641 = vmatprep.subr.mxu0 0.0
        %3642 = vmatpush1.msra.mxu0 0.0
        %3643 = vmatprep.subr.mxu0 0.0
        %3644 = vmatpush1.msra.mxu0 0.0
        %3645 = vmatprep.subr.mxu0 0.0
        %3646 = vmatpush1.msra.mxu0 0.0
        %3647 = vmatprep.mubr.f32.mxu0 0.0
        %3648 = vmatmul.mubr.f32.gmra.mrb[0].mxu0 %v1709
        %v3649 = vpop.f32.mrb[0].mxu0
        %v3650 = vadd.f32 %v3579, %v3649
        %v3651 = vpop.f32.mrb[0].mxu0
        %v3652 = vadd.f32 %v3581, %v3651
        %3653 = vdwg.mxu0
        %3654 = vmatprep.subr.mxu0 %v268
        %3655 = vmatpush1.msra.mxu0 %v267
        %3656 = vmatprep.subr.mxu0 %v300
        %3657 = vmatpush1.msra.mxu0 %v299
        %3658 = vmatprep.subr.mxu0 %v332
        %3659 = vmatpush1.msra.mxu0 %v331
        %3660 = vmatprep.subr.mxu0 %v364
        %3661 = vmatpush1.msra.mxu0 %v363
        %3662 = vmatprep.subr.mxu0 %v396
        %3663 = vmatpush1.msra.mxu0 %v395
        %3664 = vmatprep.subr.mxu0 %v428
        %3665 = vmatpush1.msra.mxu0 %v427
        %3666 = vmatprep.subr.mxu0 %v460
        %3667 = vmatpush1.msra.mxu0 %v459
        %3668 = vmatprep.subr.mxu0 %v492
        %3669 = vmatpush1.msra.mxu0 %v491
        %3670 = vmatprep.subr.mxu0 %v524
        %3671 = vmatpush1.msra.mxu0 %v523
        %3672 = vmatprep.subr.mxu0 %v556
        %3673 = vmatpush1.msra.mxu0 %v555
        %3674 = vmatprep.subr.mxu0 %v588
        %3675 = vmatpush1.msra.mxu0 %v587
        %3676 = vmatprep.subr.mxu0 %v620
        %3677 = vmatpush1.msra.mxu0 %v619
        %3678 = vmatprep.subr.mxu0 %v652
        %3679 = vmatpush1.msra.mxu0 %v651
        %3680 = vmatprep.subr.mxu0 %v684
        %3681 = vmatpush1.msra.mxu0 %v683
        %3682 = vmatprep.subr.mxu0 %v716
        %3683 = vmatpush1.msra.mxu0 %v715
        %3684 = vmatprep.subr.mxu0 %v748
        %3685 = vmatpush1.msra.mxu0 %v747
        %3686 = vmatprep.subr.mxu0 %v780
        %3687 = vmatpush1.msra.mxu0 %v779
        %3688 = vmatprep.subr.mxu0 %v812
        %3689 = vmatpush1.msra.mxu0 %v811
        %3690 = vmatprep.subr.mxu0 %v844
        %3691 = vmatpush1.msra.mxu0 %v843
        %3692 = vmatprep.subr.mxu0 %v876
        %3693 = vmatpush1.msra.mxu0 %v875
        %3694 = vmatprep.subr.mxu0 %v908
        %3695 = vmatpush1.msra.mxu0 %v907
        %3696 = vmatprep.subr.mxu0 %v940
        %3697 = vmatpush1.msra.mxu0 %v939
        %3698 = vmatprep.subr.mxu0 %v972
        %3699 = vmatpush1.msra.mxu0 %v971
        %3700 = vmatprep.subr.mxu0 %v1004
        %3701 = vmatpush1.msra.mxu0 %v1003
        %3702 = vmatprep.subr.mxu0 %v1036
        %3703 = vmatpush1.msra.mxu0 %v1035
        %3704 = vmatprep.subr.mxu0 %v1068
        %3705 = vmatpush1.msra.mxu0 %v1067
        %3706 = vmatprep.subr.mxu0 %v1100
        %3707 = vmatpush1.msra.mxu0 %v1099
        %3708 = vmatprep.subr.mxu0 %v1132
        %3709 = vmatpush1.msra.mxu0 %v1131
        %3710 = vmatprep.subr.mxu0 %v1164
        %3711 = vmatpush1.msra.mxu0 %v1163
        %3712 = vmatprep.subr.mxu0 %v1196
        %3713 = vmatpush1.msra.mxu0 %v1195
        %3714 = vmatprep.subr.mxu0 %v1228
        %3715 = vmatpush1.msra.mxu0 %v1227
        %3716 = vmatprep.subr.mxu0 %v1260
        %3717 = vmatpush1.msra.mxu0 %v1259
        %3718 = vmatprep.mubr.f32.mxu0 %v1705
        %3719 = vmatmul.mubr.f32.gmra.mrb[0].mxu0 %v1697
        %v3720 = vpop.f32.mrb[0].mxu0
        %v3721 = vadd.f32 %v1636, %v3720
        %v3722 = vpop.f32.mrb[0].mxu0
        %v3723 = vadd.f32 %v1640, %v3722
        %3724 = vdwg.mxu0
        %3725 = vmatprep.subr.mxu0 %v1292
        %3726 = vmatpush1.msra.mxu0 %v1291
        %3727 = vmatprep.subr.mxu0 %v1324
        %3728 = vmatpush1.msra.mxu0 %v1323
        %3729 = vmatprep.subr.mxu0 %v1356
        %3730 = vmatpush1.msra.mxu0 %v1355
        %3731 = vmatprep.subr.mxu0 %v1388
        %3732 = vmatpush1.msra.mxu0 %v1387
        %3733 = vmatprep.subr.mxu0 %v1420
        %3734 = vmatpush1.msra.mxu0 %v1419
        %3735 = vmatprep.subr.mxu0 %v1452
        %3736 = vmatpush1.msra.mxu0 %v1451
        %3737 = vmatprep.subr.mxu0 %v1484
        %3738 = vmatpush1.msra.mxu0 %v1483
        %3739 = vmatprep.subr.mxu0 %v1794
        %3740 = vmatpush1.msra.mxu0 %v1791
        %3741 = vmatprep.subr.mxu0 0.0
        %3742 = vmatpush1.msra.mxu0 0.0
        %3743 = vmatprep.subr.mxu0 0.0
        %3744 = vmatpush1.msra.mxu0 0.0
        %3745 = vmatprep.subr.mxu0 0.0
        %3746 = vmatpush1.msra.mxu0 0.0
        %3747 = vmatprep.subr.mxu0 0.0
        %3748 = vmatpush1.msra.mxu0 0.0
        %3749 = vmatprep.subr.mxu0 0.0
        %3750 = vmatpush1.msra.mxu0 0.0
        %3751 = vmatprep.subr.mxu0 0.0
        %3752 = vmatpush1.msra.mxu0 0.0
        %3753 = vmatprep.subr.mxu0 0.0
        %3754 = vmatpush1.msra.mxu0 0.0
        %3755 = vmatprep.subr.mxu0 0.0
        %3756 = vmatpush1.msra.mxu0 0.0
        %3757 = vmatprep.subr.mxu0 0.0
        %3758 = vmatpush1.msra.mxu0 0.0
        %3759 = vmatprep.subr.mxu0 0.0
        %3760 = vmatpush1.msra.mxu0 0.0
        %3761 = vmatprep.subr.mxu0 0.0
        %3762 = vmatpush1.msra.mxu0 0.0
        %3763 = vmatprep.subr.mxu0 0.0
        %3764 = vmatpush1.msra.mxu0 0.0
        %3765 = vmatprep.subr.mxu0 0.0
        %3766 = vmatpush1.msra.mxu0 0.0
        %3767 = vmatprep.subr.mxu0 0.0
        %3768 = vmatpush1.msra.mxu0 0.0
        %3769 = vmatprep.subr.mxu0 0.0
        %3770 = vmatpush1.msra.mxu0 0.0
        %3771 = vmatprep.subr.mxu0 0.0
        %3772 = vmatpush1.msra.mxu0 0.0
        %3773 = vmatprep.subr.mxu0 0.0
        %3774 = vmatpush1.msra.mxu0 0.0
        %3775 = vmatprep.subr.mxu0 0.0
        %3776 = vmatpush1.msra.mxu0 0.0
        %3777 = vmatprep.subr.mxu0 0.0
        %3778 = vmatpush1.msra.mxu0 0.0
        %3779 = vmatprep.subr.mxu0 0.0
        %3780 = vmatpush1.msra.mxu0 0.0
        %3781 = vmatprep.subr.mxu0 0.0
        %3782 = vmatpush1.msra.mxu0 0.0
        %3783 = vmatprep.subr.mxu0 0.0
        %3784 = vmatpush1.msra.mxu0 0.0
        %3785 = vmatprep.subr.mxu0 0.0
        %3786 = vmatpush1.msra.mxu0 0.0
        %3787 = vmatprep.subr.mxu0 0.0
        %3788 = vmatpush1.msra.mxu0 0.0
        %3789 = vmatprep.mubr.f32.mxu0 0.0
        %3790 = vmatmul.mubr.f32.gmra.mrb[0].mxu0 %v1709
        %v3791 = vpop.f32.mrb[0].mxu0
        %v3792 = vadd.f32 %v3721, %v3791
        %v3793 = vpop.f32.mrb[0].mxu0
        %v3794 = vadd.f32 %v3723, %v3793
        %3795 = vdwg.mxu0
        %3796 = vmatprep.subr.mxu0 %v270
        %3797 = vmatpush1.msra.mxu0 %v269
        %3798 = vmatprep.subr.mxu0 %v302
        %3799 = vmatpush1.msra.mxu0 %v301
        %3800 = vmatprep.subr.mxu0 %v334
        %3801 = vmatpush1.msra.mxu0 %v333
        %3802 = vmatprep.subr.mxu0 %v366
        %3803 = vmatpush1.msra.mxu0 %v365
        %3804 = vmatprep.subr.mxu0 %v398
        %3805 = vmatpush1.msra.mxu0 %v397
        %3806 = vmatprep.subr.mxu0 %v430
        %3807 = vmatpush1.msra.mxu0 %v429
        %3808 = vmatprep.subr.mxu0 %v462
        %3809 = vmatpush1.msra.mxu0 %v461
        %3810 = vmatprep.subr.mxu0 %v494
        %3811 = vmatpush1.msra.mxu0 %v493
        %3812 = vmatprep.subr.mxu0 %v526
        %3813 = vmatpush1.msra.mxu0 %v525
        %3814 = vmatprep.subr.mxu0 %v558
        %3815 = vmatpush1.msra.mxu0 %v557
        %3816 = vmatprep.subr.mxu0 %v590
        %3817 = vmatpush1.msra.mxu0 %v589
        %3818 = vmatprep.subr.mxu0 %v622
        %3819 = vmatpush1.msra.mxu0 %v621
        %3820 = vmatprep.subr.mxu0 %v654
        %3821 = vmatpush1.msra.mxu0 %v653
        %3822 = vmatprep.subr.mxu0 %v686
        %3823 = vmatpush1.msra.mxu0 %v685
        %3824 = vmatprep.subr.mxu0 %v718
        %3825 = vmatpush1.msra.mxu0 %v717
        %3826 = vmatprep.subr.mxu0 %v750
        %3827 = vmatpush1.msra.mxu0 %v749
        %3828 = vmatprep.subr.mxu0 %v782
        %3829 = vmatpush1.msra.mxu0 %v781
        %3830 = vmatprep.subr.mxu0 %v814
        %3831 = vmatpush1.msra.mxu0 %v813
        %3832 = vmatprep.subr.mxu0 %v846
        %3833 = vmatpush1.msra.mxu0 %v845
        %3834 = vmatprep.subr.mxu0 %v878
        %3835 = vmatpush1.msra.mxu0 %v877
        %3836 = vmatprep.subr.mxu0 %v910
        %3837 = vmatpush1.msra.mxu0 %v909
        %3838 = vmatprep.subr.mxu0 %v942
        %3839 = vmatpush1.msra.mxu0 %v941
        %3840 = vmatprep.subr.mxu0 %v974
        %3841 = vmatpush1.msra.mxu0 %v973
        %3842 = vmatprep.subr.mxu0 %v1006
        %3843 = vmatpush1.msra.mxu0 %v1005
        %3844 = vmatprep.subr.mxu0 %v1038
        %3845 = vmatpush1.msra.mxu0 %v1037
        %3846 = vmatprep.subr.mxu0 %v1070
        %3847 = vmatpush1.msra.mxu0 %v1069
        %3848 = vmatprep.subr.mxu0 %v1102
        %3849 = vmatpush1.msra.mxu0 %v1101
        %3850 = vmatprep.subr.mxu0 %v1134
        %3851 = vmatpush1.msra.mxu0 %v1133
        %3852 = vmatprep.subr.mxu0 %v1166
        %3853 = vmatpush1.msra.mxu0 %v1165
        %3854 = vmatprep.subr.mxu0 %v1198
        %3855 = vmatpush1.msra.mxu0 %v1197
        %3856 = vmatprep.subr.mxu0 %v1230
        %3857 = vmatpush1.msra.mxu0 %v1229
        %3858 = vmatprep.subr.mxu0 %v1262
        %3859 = vmatpush1.msra.mxu0 %v1261
        %3860 = vmatprep.mubr.f32.mxu0 %v1705
        %3861 = vmatmul.mubr.f32.gmra.mrb[0].mxu0 %v1697
        %v3862 = vpop.f32.mrb[0].mxu0
        %v3863 = vadd.f32 %v1644, %v3862
        %v3864 = vpop.f32.mrb[0].mxu0
        %v3865 = vadd.f32 %v1648, %v3864
        %3866 = vdwg.mxu0
        %3867 = vmatprep.subr.mxu0 %v1294
        %3868 = vmatpush1.msra.mxu0 %v1293
        %3869 = vmatprep.subr.mxu0 %v1326
        %3870 = vmatpush1.msra.mxu0 %v1325
        %3871 = vmatprep.subr.mxu0 %v1358
        %3872 = vmatpush1.msra.mxu0 %v1357
        %3873 = vmatprep.subr.mxu0 %v1390
        %3874 = vmatpush1.msra.mxu0 %v1389
        %3875 = vmatprep.subr.mxu0 %v1422
        %3876 = vmatpush1.msra.mxu0 %v1421
        %3877 = vmatprep.subr.mxu0 %v1454
        %3878 = vmatpush1.msra.mxu0 %v1453
        %3879 = vmatprep.subr.mxu0 %v1486
        %3880 = vmatpush1.msra.mxu0 %v1485
        %3881 = vmatprep.subr.mxu0 %v1800
        %3882 = vmatpush1.msra.mxu0 %v1797
        %3883 = vmatprep.subr.mxu0 0.0
        %3884 = vmatpush1.msra.mxu0 0.0
        %3885 = vmatprep.subr.mxu0 0.0
        %3886 = vmatpush1.msra.mxu0 0.0
        %3887 = vmatprep.subr.mxu0 0.0
        %3888 = vmatpush1.msra.mxu0 0.0
        %3889 = vmatprep.subr.mxu0 0.0
        %3890 = vmatpush1.msra.mxu0 0.0
        %3891 = vmatprep.subr.mxu0 0.0
        %3892 = vmatpush1.msra.mxu0 0.0
        %3893 = vmatprep.subr.mxu0 0.0
        %3894 = vmatpush1.msra.mxu0 0.0
        %3895 = vmatprep.subr.mxu0 0.0
        %3896 = vmatpush1.msra.mxu0 0.0
        %3897 = vmatprep.subr.mxu0 0.0
        %3898 = vmatpush1.msra.mxu0 0.0
        %3899 = vmatprep.subr.mxu0 0.0
        %3900 = vmatpush1.msra.mxu0 0.0
        %3901 = vmatprep.subr.mxu0 0.0
        %3902 = vmatpush1.msra.mxu0 0.0
        %3903 = vmatprep.subr.mxu0 0.0
        %3904 = vmatpush1.msra.mxu0 0.0
        %3905 = vmatprep.subr.mxu0 0.0
        %3906 = vmatpush1.msra.mxu0 0.0
        %3907 = vmatprep.subr.mxu0 0.0
        %3908 = vmatpush1.msra.mxu0 0.0
        %3909 = vmatprep.subr.mxu0 0.0
        %3910 = vmatpush1.msra.mxu0 0.0
        %3911 = vmatprep.subr.mxu0 0.0
        %3912 = vmatpush1.msra.mxu0 0.0
        %3913 = vmatprep.subr.mxu0 0.0
        %3914 = vmatpush1.msra.mxu0 0.0
        %3915 = vmatprep.subr.mxu0 0.0
        %3916 = vmatpush1.msra.mxu0 0.0
        %3917 = vmatprep.subr.mxu0 0.0
        %3918 = vmatpush1.msra.mxu0 0.0
        %3919 = vmatprep.subr.mxu0 0.0
        %3920 = vmatpush1.msra.mxu0 0.0
        %3921 = vmatprep.subr.mxu0 0.0
        %3922 = vmatpush1.msra.mxu0 0.0
        %3923 = vmatprep.subr.mxu0 0.0
        %3924 = vmatpush1.msra.mxu0 0.0
        %3925 = vmatprep.subr.mxu0 0.0
        %3926 = vmatpush1.msra.mxu0 0.0
        %3927 = vmatprep.subr.mxu0 0.0
        %3928 = vmatpush1.msra.mxu0 0.0
        %3929 = vmatprep.subr.mxu0 0.0
        %3930 = vmatpush1.msra.mxu0 0.0
        %3931 = vmatprep.mubr.f32.mxu0 0.0
        %3932 = vmatmul.mubr.f32.gmra.mrb[0].mxu0 %v1709
        %v3933 = vpop.f32.mrb[0].mxu0
        %v3934 = vadd.f32 %v3863, %v3933
        %v3935 = vpop.f32.mrb[0].mxu0
        %v3936 = vadd.f32 %v3865, %v3935
        %3937 = vdwg.mxu0
        %3938 = vmatprep.subr.mxu0 %v272
        %3939 = vmatpush1.msra.mxu0 %v271
        %3940 = vmatprep.subr.mxu0 %v304
        %3941 = vmatpush1.msra.mxu0 %v303
        %3942 = vmatprep.subr.mxu0 %v336
        %3943 = vmatpush1.msra.mxu0 %v335
        %3944 = vmatprep.subr.mxu0 %v368
        %3945 = vmatpush1.msra.mxu0 %v367
        %3946 = vmatprep.subr.mxu0 %v400
        %3947 = vmatpush1.msra.mxu0 %v399
        %3948 = vmatprep.subr.mxu0 %v432
        %3949 = vmatpush1.msra.mxu0 %v431
        %3950 = vmatprep.subr.mxu0 %v464
        %3951 = vmatpush1.msra.mxu0 %v463
        %3952 = vmatprep.subr.mxu0 %v496
        %3953 = vmatpush1.msra.mxu0 %v495
        %3954 = vmatprep.subr.mxu0 %v528
        %3955 = vmatpush1.msra.mxu0 %v527
        %3956 = vmatprep.subr.mxu0 %v560
        %3957 = vmatpush1.msra.mxu0 %v559
        %3958 = vmatprep.subr.mxu0 %v592
        %3959 = vmatpush1.msra.mxu0 %v591
        %3960 = vmatprep.subr.mxu0 %v624
        %3961 = vmatpush1.msra.mxu0 %v623
        %3962 = vmatprep.subr.mxu0 %v656
        %3963 = vmatpush1.msra.mxu0 %v655
        %3964 = vmatprep.subr.mxu0 %v688
        %3965 = vmatpush1.msra.mxu0 %v687
        %3966 = vmatprep.subr.mxu0 %v720
        %3967 = vmatpush1.msra.mxu0 %v719
        %3968 = vmatprep.subr.mxu0 %v752
        %3969 = vmatpush1.msra.mxu0 %v751
        %3970 = vmatprep.subr.mxu0 %v784
        %3971 = vmatpush1.msra.mxu0 %v783
        %3972 = vmatprep.subr.mxu0 %v816
        %3973 = vmatpush1.msra.mxu0 %v815
        %3974 = vmatprep.subr.mxu0 %v848
        %3975 = vmatpush1.msra.mxu0 %v847
        %3976 = vmatprep.subr.mxu0 %v880
        %3977 = vmatpush1.msra.mxu0 %v879
        %3978 = vmatprep.subr.mxu0 %v912
        %3979 = vmatpush1.msra.mxu0 %v911
        %3980 = vmatprep.subr.mxu0 %v944
        %3981 = vmatpush1.msra.mxu0 %v943
        %3982 = vmatprep.subr.mxu0 %v976
        %3983 = vmatpush1.msra.mxu0 %v975
        %3984 = vmatprep.subr.mxu0 %v1008
        %3985 = vmatpush1.msra.mxu0 %v1007
        %3986 = vmatprep.subr.mxu0 %v1040
        %3987 = vmatpush1.msra.mxu0 %v1039
        %3988 = vmatprep.subr.mxu0 %v1072
        %3989 = vmatpush1.msra.mxu0 %v1071
        %3990 = vmatprep.subr.mxu0 %v1104
        %3991 = vmatpush1.msra.mxu0 %v1103
        %3992 = vmatprep.subr.mxu0 %v1136
        %3993 = vmatpush1.msra.mxu0 %v1135
        %3994 = vmatprep.subr.mxu0 %v1168
        %3995 = vmatpush1.msra.mxu0 %v1167
        %3996 = vmatprep.subr.mxu0 %v1200
        %3997 = vmatpush1.msra.mxu0 %v1199
        %3998 = vmatprep.subr.mxu0 %v1232
        %3999 = vmatpush1.msra.mxu0 %v1231
        %4000 = vmatprep.subr.mxu0 %v1264
        %4001 = vmatpush1.msra.mxu0 %v1263
        %4002 = vmatprep.mubr.f32.mxu0 %v1705
        %4003 = vmatmul.mubr.f32.gmra.mrb[0].mxu0 %v1697
        %v4004 = vpop.f32.mrb[0].mxu0
        %v4005 = vadd.f32 %v1652, %v4004
        %v4006 = vpop.f32.mrb[0].mxu0
        %v4007 = vadd.f32 %v1656, %v4006
        %4008 = vdwg.mxu0
        %4009 = vmatprep.subr.mxu0 %v1296
        %4010 = vmatpush1.msra.mxu0 %v1295
        %4011 = vmatprep.subr.mxu0 %v1328
        %4012 = vmatpush1.msra.mxu0 %v1327
        %4013 = vmatprep.subr.mxu0 %v1360
        %4014 = vmatpush1.msra.mxu0 %v1359
        %4015 = vmatprep.subr.mxu0 %v1392
        %4016 = vmatpush1.msra.mxu0 %v1391
        %4017 = vmatprep.subr.mxu0 %v1424
        %4018 = vmatpush1.msra.mxu0 %v1423
        %4019 = vmatprep.subr.mxu0 %v1456
        %4020 = vmatpush1.msra.mxu0 %v1455
        %4021 = vmatprep.subr.mxu0 %v1488
        %4022 = vmatpush1.msra.mxu0 %v1487
        %4023 = vmatprep.subr.mxu0 %v1806
        %4024 = vmatpush1.msra.mxu0 %v1803
        %4025 = vmatprep.subr.mxu0 0.0
        %4026 = vmatpush1.msra.mxu0 0.0
        %4027 = vmatprep.subr.mxu0 0.0
        %4028 = vmatpush1.msra.mxu0 0.0
        %4029 = vmatprep.subr.mxu0 0.0
        %4030 = vmatpush1.msra.mxu0 0.0
        %4031 = vmatprep.subr.mxu0 0.0
        %4032 = vmatpush1.msra.mxu0 0.0
        %4033 = vmatprep.subr.mxu0 0.0
        %4034 = vmatpush1.msra.mxu0 0.0
        %4035 = vmatprep.subr.mxu0 0.0
        %4036 = vmatpush1.msra.mxu0 0.0
        %4037 = vmatprep.subr.mxu0 0.0
        %4038 = vmatpush1.msra.mxu0 0.0
        %4039 = vmatprep.subr.mxu0 0.0
        %4040 = vmatpush1.msra.mxu0 0.0
        %4041 = vmatprep.subr.mxu0 0.0
        %4042 = vmatpush1.msra.mxu0 0.0
        %4043 = vmatprep.subr.mxu0 0.0
        %4044 = vmatpush1.msra.mxu0 0.0
        %4045 = vmatprep.subr.mxu0 0.0
        %4046 = vmatpush1.msra.mxu0 0.0
        %4047 = vmatprep.subr.mxu0 0.0
        %4048 = vmatpush1.msra.mxu0 0.0
        %4049 = vmatprep.subr.mxu0 0.0
        %4050 = vmatpush1.msra.mxu0 0.0
        %4051 = vmatprep.subr.mxu0 0.0
        %4052 = vmatpush1.msra.mxu0 0.0
        %4053 = vmatprep.subr.mxu0 0.0
        %4054 = vmatpush1.msra.mxu0 0.0
        %4055 = vmatprep.subr.mxu0 0.0
        %4056 = vmatpush1.msra.mxu0 0.0
        %4057 = vmatprep.subr.mxu0 0.0
        %4058 = vmatpush1.msra.mxu0 0.0
        %4059 = vmatprep.subr.mxu0 0.0
        %4060 = vmatpush1.msra.mxu0 0.0
        %4061 = vmatprep.subr.mxu0 0.0
        %4062 = vmatpush1.msra.mxu0 0.0
        %4063 = vmatprep.subr.mxu0 0.0
        %4064 = vmatpush1.msra.mxu0 0.0
        %4065 = vmatprep.subr.mxu0 0.0
        %4066 = vmatpush1.msra.mxu0 0.0
        %4067 = vmatprep.subr.mxu0 0.0
        %4068 = vmatpush1.msra.mxu0 0.0
        %4069 = vmatprep.subr.mxu0 0.0
        %4070 = vmatpush1.msra.mxu0 0.0
        %4071 = vmatprep.subr.mxu0 0.0
        %4072 = vmatpush1.msra.mxu0 0.0
        %4073 = vmatprep.mubr.f32.mxu0 0.0
        %4074 = vmatmul.mubr.f32.gmra.mrb[0].mxu0 %v1709
        %v4075 = vpop.f32.mrb[0].mxu0
        %v4076 = vadd.f32 %v4005, %v4075
        %v4077 = vpop.f32.mrb[0].mxu0
        %v4078 = vadd.f32 %v4007, %v4077
        %4079 = vdwg.mxu0
        %v4080 = vmax.f32 %v1946, 0.0
        %v4081 = vmax.f32 %v1948, 0.0
        %v4082 = vmax.f32 %v2088, 0.0
        %v4083 = vmax.f32 %v2090, 0.0
        %v4084 = vmax.f32 %v2230, 0.0
        %v4085 = vmax.f32 %v2232, 0.0
        %v4086 = vmax.f32 %v2372, 0.0
        %v4087 = vmax.f32 %v2374, 0.0
        %v4088 = vmax.f32 %v2514, 0.0
        %v4089 = vmax.f32 %v2516, 0.0
        %v4090 = vmax.f32 %v2656, 0.0
        %v4091 = vmax.f32 %v2658, 0.0
        %v4092 = vmax.f32 %v2798, 0.0
        %v4093 = vmax.f32 %v2800, 0.0
        %v4094 = vmax.f32 %v2940, 0.0
        %v4095 = vmax.f32 %v2942, 0.0
        %v4096 = vmax.f32 %v3082, 0.0
        %v4097 = vmax.f32 %v3084, 0.0
        %v4098 = vmax.f32 %v3224, 0.0
        %v4099 = vmax.f32 %v3226, 0.0
        %v4100 = vmax.f32 %v3366, 0.0
        %v4101 = vmax.f32 %v3368, 0.0
        %v4102 = vmax.f32 %v3508, 0.0
        %v4103 = vmax.f32 %v3510, 0.0
        %v4104 = vmax.f32 %v3650, 0.0
        %v4105 = vmax.f32 %v3652, 0.0
        %v4106 = vmax.f32 %v3792, 0.0
        %v4107 = vmax.f32 %v3794, 0.0
        %v4108 = vmax.f32 %v3934, 0.0
        %v4109 = vmax.f32 %v3936, 0.0
        %v4110 = vmax.f32 %v4076, 0.0
        %v4111 = vmax.f32 %v4078, 0.0
        %v4144 = vcombine.low %v4080, %v4081
        %v4145 = vcombine.low %v4082, %v4083
        %v4147 = vunpack.c.l.s4 1983009808
        %v4148 = vunpack.c.0.s8 %v4147
        %v4149 = vlaneseq
        %v4150 = vshrl.u32 %v4149, 7
        %v4151 = vsub.s32 %v4148, %v4150
        %v4152 = vrot.slane %v4144, %v4151
        %v4154 = vunpack.c.l.s4 1983009808
        %v4155 = vunpack.c.0.s8 %v4154
        %v4156 = vlaneseq
        %v4157 = vshrl.u32 %v4156, 7
        %v4158 = vsub.s32 %v4155, %v4157
        %v4159 = vrot.slane %v4145, %v4158
        %v4160 = vcombine.low %v4152, %v4159
        %v4161 = vcombine.low %v4084, %v4085
        %v4162 = vcombine.low %v4086, %v4087
        %v4164 = vunpack.c.l.s4 1983009808
        %v4165 = vunpack.c.0.s8 %v4164
        %v4166 = vlaneseq
        %v4167 = vshrl.u32 %v4166, 7
        %v4168 = vsub.s32 %v4165, %v4167
        %v4169 = vrot.slane %v4161, %v4168
        %v4171 = vunpack.c.l.s4 1983009808
        %v4172 = vunpack.c.0.s8 %v4171
        %v4173 = vlaneseq
        %v4174 = vshrl.u32 %v4173, 7
        %v4175 = vsub.s32 %v4172, %v4174
        %v4176 = vrot.slane %v4162, %v4175
        %v4177 = vcombine.low %v4169, %v4176
        %v4178 = vcombine.low %v4088, %v4089
        %v4179 = vcombine.low %v4090, %v4091
        %v4181 = vunpack.c.l.s4 1983009808
        %v4182 = vunpack.c.0.s8 %v4181
        %v4183 = vlaneseq
        %v4184 = vshrl.u32 %v4183, 7
        %v4185 = vsub.s32 %v4182, %v4184
        %v4186 = vrot.slane %v4178, %v4185
        %v4188 = vunpack.c.l.s4 1983009808
        %v4189 = vunpack.c.0.s8 %v4188
        %v4190 = vlaneseq
        %v4191 = vshrl.u32 %v4190, 7
        %v4192 = vsub.s32 %v4189, %v4191
        %v4193 = vrot.slane %v4179, %v4192
        %v4194 = vcombine.low %v4186, %v4193
        %v4195 = vcombine.low %v4092, %v4093
        %v4196 = vcombine.low %v4094, %v4095
        %v4198 = vunpack.c.l.s4 1983009808
        %v4199 = vunpack.c.0.s8 %v4198
        %v4200 = vlaneseq
        %v4201 = vshrl.u32 %v4200, 7
        %v4202 = vsub.s32 %v4199, %v4201
        %v4203 = vrot.slane %v4195, %v4202
        %v4205 = vunpack.c.l.s4 1983009808
        %v4206 = vunpack.c.0.s8 %v4205
        %v4207 = vlaneseq
        %v4208 = vshrl.u32 %v4207, 7
        %v4209 = vsub.s32 %v4206, %v4208
        %v4210 = vrot.slane %v4196, %v4209
        %v4211 = vcombine.low %v4203, %v4210
        %v4212 = vcombine.low %v4096, %v4097
        %v4213 = vcombine.low %v4098, %v4099
        %v4215 = vunpack.c.l.s4 1983009808
        %v4216 = vunpack.c.0.s8 %v4215
        %v4217 = vlaneseq
        %v4218 = vshrl.u32 %v4217, 7
        %v4219 = vsub.s32 %v4216, %v4218
        %v4220 = vrot.slane %v4212, %v4219
        %v4222 = vunpack.c.l.s4 1983009808
        %v4223 = vunpack.c.0.s8 %v4222
        %v4224 = vlaneseq
        %v4225 = vshrl.u32 %v4224, 7
        %v4226 = vsub.s32 %v4223, %v4225
        %v4227 = vrot.slane %v4213, %v4226
        %v4228 = vcombine.low %v4220, %v4227
        %v4229 = vcombine.low %v4100, %v4101
        %v4230 = vcombine.low %v4102, %v4103
        %v4232 = vunpack.c.l.s4 1983009808
        %v4233 = vunpack.c.0.s8 %v4232
        %v4234 = vlaneseq
        %v4235 = vshrl.u32 %v4234, 7
        %v4236 = vsub.s32 %v4233, %v4235
        %v4237 = vrot.slane %v4229, %v4236
        %v4239 = vunpack.c.l.s4 1983009808
        %v4240 = vunpack.c.0.s8 %v4239
        %v4241 = vlaneseq
        %v4242 = vshrl.u32 %v4241, 7
        %v4243 = vsub.s32 %v4240, %v4242
        %v4244 = vrot.slane %v4230, %v4243
        %v4245 = vcombine.low %v4237, %v4244
        %v4246 = vcombine.low %v4104, %v4105
        %v4247 = vcombine.low %v4106, %v4107
        %v4249 = vunpack.c.l.s4 1983009808
        %v4250 = vunpack.c.0.s8 %v4249
        %v4251 = vlaneseq
        %v4252 = vshrl.u32 %v4251, 7
        %v4253 = vsub.s32 %v4250, %v4252
        %v4254 = vrot.slane %v4246, %v4253
        %v4256 = vunpack.c.l.s4 1983009808
        %v4257 = vunpack.c.0.s8 %v4256
        %v4258 = vlaneseq
        %v4259 = vshrl.u32 %v4258, 7
        %v4260 = vsub.s32 %v4257, %v4259
        %v4261 = vrot.slane %v4247, %v4260
        %v4262 = vcombine.low %v4254, %v4261
        %v4263 = vcombine.low %v4108, %v4109
        %v4264 = vcombine.low %v4110, %v4111
        %v4266 = vunpack.c.l.s4 1983009808
        %v4267 = vunpack.c.0.s8 %v4266
        %v4268 = vlaneseq
        %v4269 = vshrl.u32 %v4268, 7
        %v4270 = vsub.s32 %v4267, %v4269
        %v4271 = vrot.slane %v4263, %v4270
        %v4273 = vunpack.c.l.s4 1983009808
        %v4274 = vunpack.c.0.s8 %v4273
        %v4275 = vlaneseq
        %v4276 = vshrl.u32 %v4275, 7
        %v4277 = vsub.s32 %v4274, %v4276
        %v4278 = vrot.slane %v4264, %v4277
        %v4279 = vcombine.low %v4271, %v4278
        %4288 = vst [vmem:[%s236] sm:$0xff] %v4160
        %4289 = vst [vmem:[%s236 + $0x8] sm:$0xff] %v4177
        %4290 = vst [vmem:[%s236 + $0x10] sm:$0xff] %v4194
        %4291 = vst [vmem:[%s236 + $0x18] sm:$0xff] %v4211
        %4292 = vst [vmem:[%s236 + $0x20] sm:$0xff] %v4228
        %4293 = vst [vmem:[%s236 + $0x28] sm:$0xff] %v4245
        %4294 = vst [vmem:[%s236 + $0x30] sm:$0xff] %v4262
        %4295 = vst [vmem:[%s236 + $0x38] sm:$0xff] %v4279
        %s4296 = sand.u32 %s102, 1
        %s4297 = scalar_lea.sflag [#allocation4], %s4296
        %s4298 = sand.u32 %s102, 1
        %s4299 = smul.addr %s4298, 64
        %s4300 = scalar_lea.vmem [#allocation8], %s4299
        // Predicated region
        $region45: #{tpu_custom_call.1} parent=31 // pred_check
          %p4301 = pneg %p112
        $region46: #{tpu_custom_call.1} parent=31 // pred_check_branch
          %4303 = sbr.rel (%p4301) target = $region48
        $region47: #{tpu_custom_call.1} parent=31 // pred_region
          %s4304 = smul.u32 32, %s21
          %s4306 = ssub.s32 1024, 1024
          %4307 = vsyncadd %s4297, %s4306
          %s4308 = smul.addr %s4304, 32
          %s4309 = scalar_lea.hbm %s3, %s4308
          %s4311 = sshll.u32 %s4300, 4
          %s4312 = int_to_ptr.vmem [resolvable:$true] %s4311
          %4314 = dma.vmem_to_hbm [thread:$0]  %s4312, 1024, %s4309, %s4297
        $region48: #{tpu_custom_call.1} parent=31 // pred_fallthru
          _
      $region32: #{tpu_custom_call.1} parent=5 // pred_fallthru
        _
      %p4315 = scmp.le.s32.totalorder 2, %s16
      // Predicated region
      $region49: #{tpu_custom_call.1} parent=5 // pred_check
        %p4316 = pneg %p4315
      $region50: #{tpu_custom_call.1} parent=5 // pred_check_branch
        %4318 = sbr.rel (%p4316) target = $region52
      $region51: #{tpu_custom_call.1} parent=5 // pred_region
        %s4319 = ssub.s32 %s16, 2
        // Predicated region
        $region53: #{tpu_custom_call.1} parent=51 // pred_check
          %p4320 = pneg %p118
        $region54: #{tpu_custom_call.1} parent=51 // pred_check_branch
          %4322 = sbr.rel (%p4320) target = $region56
        $region55: #{tpu_custom_call.1} parent=51 // pred_region
          %s4323 = sand.u32 %s103, 1
          %s4324 = scalar_lea.sflag [#allocation4], %s4323
          %s4325 = sand.u32 %s103, 1
          %s4326 = smul.addr %s4325, 64
          %s4327 = scalar_lea.vmem [#allocation8], %s4326
          %4328 = dma.done %s4324, 1024
        $region56: #{tpu_custom_call.1} parent=51 // pred_fallthru
          _
      $region52: #{tpu_custom_call.1} parent=5 // pred_fallthru
        _
    $region6: #{tpu_custom_call.1} parent=1 // loop_footer
      %s20 = sadd.s32 1, %s16
    $region7: #{tpu_custom_call.1} parent=1 // loop_footer_branch
      %15 = sbr.rel target = $region3
    $region8: #{tpu_custom_call.1} parent=1 // loop_exit
      _
    %4329 = vsyncpa [#allocation3], 1
    %s4330 = scalar_lea.sflag [#allocation3], 1
    %4331 = vsyncpa %s4330, 1
    %4332 = vsyncpa [#allocation6], 1
    %s4333 = scalar_lea.sflag [#allocation6], 1
    %4334 = vsyncpa %s4333, 1
    %4335 = vsyncpa [#allocation4], 1
    %s4336 = scalar_lea.sflag [#allocation4], 1
    %4337 = vsyncpa %s4336, 1

</llo_original>
